<compile_context>
chip_gen: v7x
topology: tpu7x:2x2x1
jax: 0.10.0
libtpu: 0.0.40
codegen_flags: <defaults>
</compile_context>

<pallas_src>
import math

import jax
import jax.numpy as jnp
from jax.experimental import pallas as pl
from jax.experimental.pallas import tpu as pltpu

EPS = 1e-6
NUM_HEADS = 2
OUT_DIM = 7
OUT_PAD = 128        # lane-dense padded prediction output (sliced to 7 outside)


# --------------------------- packed param layout ---------------------------- #

def _offsets(widths):
    offs, o = [], 0
    for w in widths:
        offs.append(o)
        o += w
    return offs, o


def _layout(D):
    """Static lane offsets for the packed weight / bias slabs."""
    dff = 4 * D
    # wA: all weights whose matmul input dim is D.
    wa_names = ["qkv", "wo", "ffn1", "mlp1", "pre1", "pred"]
    wa_w = [3 * D, D, dff, 2 * D, 2 * D, OUT_PAD]
    wa_off, wa_tot = _offsets(wa_w)
    # wB: input dim 2D.
    wb_names = ["mlp2", "pre2"]
    wb_w = [dff, dff]
    wb_off, wb_tot = _offsets(wb_w)
    # wC: input dim 4D.
    wc_names = ["ffn2", "mlp3", "pre3"]
    wc_w = [D, D, D]
    wc_off, wc_tot = _offsets(wc_w)
    # bias slab (also carries the LayerNorm gains/biases), f32.
    b_names = ["ln1_g", "ln1_b", "ln2_g", "ln2_b",
               "b_qkv", "b_o", "b_f1", "b_f2",
               "b_m1", "b_m2", "b_m3",
               "b_p1", "b_p2", "b_p3",
               "b_pred"]
    b_w = [D, D, D, D,
           3 * D, D, dff, D,
           2 * D, dff, D,
           2 * D, dff, D,
           OUT_PAD]
    b_off, b_tot = _offsets(b_w)
    return dict(
        wa=dict(zip(wa_names, zip(wa_off, wa_w))), wa_tot=wa_tot,
        wb=dict(zip(wb_names, zip(wb_off, wb_w))), wb_tot=wb_tot,
        wc=dict(zip(wc_names, zip(wc_off, wc_w))), wc_tot=wc_tot,
        b=dict(zip(b_names, zip(b_off, b_w))), b_tot=b_tot,
    )


# --------------------------------- kernel ----------------------------------- #

def _make_kernel(rows, T, D, lay):
    dk = D // NUM_HEADS
    M = rows * T
    wa_l, wb_l, wc_l, b_l = lay["wa"], lay["wb"], lay["wc"], lay["b"]

    def _wa(ref, name):
        off, w = wa_l[name]
        return ref[:, off:off + w]

    def _wb(ref, name):
        off, w = wb_l[name]
        return ref[:, off:off + w]

    def _wc(ref, name):
        off, w = wc_l[name]
        return ref[:, off:off + w]

    def _b(ref, name):
        off, w = b_l[name]
        return ref[:, off:off + w]

    def layernorm(x, g, b):
        mean = jnp.mean(x, axis=-1, keepdims=True)
        var = jnp.mean((x - mean) ** 2, axis=-1, keepdims=True)
        return (x - mean) * jax.lax.rsqrt(var + EPS) * g + b

    def mm(x, w):
        # bf16 MXU inputs, f32 accumulation.
        return jnp.dot(x.astype(jnp.bfloat16), w,
                       preferred_element_type=jnp.float32)

    def kernel(x_ref, b_ref, wa_ref, wb_ref, wc_ref, o_ref):
        x = x_ref[...]                                       # (M, D) f32

        # ---- self-attention sublayer (pre-norm residual) --------------------
        h = layernorm(x, _b(b_ref, "ln1_g"), _b(b_ref, "ln1_b"))
        # fused q/k/v projection; 1/sqrt(dk) folded into the q columns at init.
        qkv = mm(h, _wa(wa_ref, "qkv")) + _b(b_ref, "b_qkv")  # (M, 3D) f32
        qkv = qkv.reshape(rows, T, 3 * D)
        heads = []
        for hd in range(NUM_HEADS):                          # static unroll
            q = qkv[:, :, hd * dk:(hd + 1) * dk]             # (rows, T, dk)
            k = qkv[:, :, D + hd * dk:D + (hd + 1) * dk]
            v = qkv[:, :, 2 * D + hd * dk:2 * D + (hd + 1) * dk]
            s = jnp.einsum("rtd,rsd->rts",
                           q.astype(jnp.bfloat16), k.astype(jnp.bfloat16),
                           preferred_element_type=jnp.float32)  # (rows, T, T)
            m = jnp.max(s, axis=-1, keepdims=True)
            p = jnp.exp(s - m)
            p = p / jnp.sum(p, axis=-1, keepdims=True)        # exact softmax
            heads.append(jnp.einsum("rts,rsd->rtd",
                                    p.astype(jnp.bfloat16),
                                    v.astype(jnp.bfloat16),
                                    preferred_element_type=jnp.float32))
        o = jnp.concatenate(heads, axis=-1).reshape(M, D)     # (M, D) f32
        x = x + mm(o, _wa(wa_ref, "wo")) + _b(b_ref, "b_o")

        # ---- feed-forward sublayer (pre-norm residual) -----------------------
        h = layernorm(x, _b(b_ref, "ln2_g"), _b(b_ref, "ln2_b"))
        f = mm(h, _wa(wa_ref, "ffn1")) + _b(b_ref, "b_f1")
        # TODO(synk): torch.nn.GELU defaults to exact erf; tanh approx used.
        f = jax.nn.gelu(f)
        f = mm(f, _wc(wc_ref, "ffn2")) + _b(b_ref, "b_f2")
        x = x + f

        # ---- sum over the sequence (T) axis ---------------------------------
        y = jnp.sum(x.reshape(rows, T, D), axis=1)            # (rows, D)

        # ---- fused MLP head: mlp -> pretrain_linear -> pred_linear ----------
        def lin_relu(z, w, b):
            return jnp.maximum(mm(z, w) + b, 0.0)

        y = lin_relu(y, _wa(wa_ref, "mlp1"), _b(b_ref, "b_m1"))
        y = lin_relu(y, _wb(wb_ref, "mlp2"), _b(b_ref, "b_m2"))
        y = lin_relu(y, _wc(wc_ref, "mlp3"), _b(b_ref, "b_m3"))
        y = lin_relu(y, _wa(wa_ref, "pre1"), _b(b_ref, "b_p1"))
        y = lin_relu(y, _wb(wb_ref, "pre2"), _b(b_ref, "b_p2"))
        y = lin_relu(y, _wc(wc_ref, "pre3"), _b(b_ref, "b_p3"))
        o_ref[...] = mm(y, _wa(wa_ref, "pred")) + _b(b_ref, "b_pred")

    return kernel


# --------------------------------- wrapper ----------------------------------- #

def _choose_rows(n_seq, seq_len):
    """~1024 flattened tokens per block, rows a multiple of 8."""
    target_rows = max(8, 1024 // max(seq_len, 1))
    rows = min(((n_seq + 7) // 8) * 8, ((target_rows + 7) // 8) * 8)
    return max(rows, 8)


def pretrain_model_forward(bert_input, params):
    bias_slab, wA, wB, wC = params
    B, S, T, D = bert_input.shape
    N = B * S
    x = bert_input.astype(jnp.float32).reshape(N, T, D)

    rows = _choose_rows(N, T)
    n_blocks = max(2, -(-N // rows))     # >= 2 grid steps (v7x: feed both TCs)
    n_pad = n_blocks * rows
    if n_pad != N:
        x = jnp.pad(x, ((0, n_pad - N), (0, 0), (0, 0)))
    x = x.reshape(n_pad * T, D)          # flattened token slab
    m_tok = rows * T

    lay = _layout(D)
    kernel = _make_kernel(rows, T, D, lay)

    def _const_spec(shape):
        return pl.BlockSpec(shape, lambda i, _n=len(shape): (0,) * _n)

    out = pl.pallas_call(
        kernel,
        out_shape=jax.ShapeDtypeStruct((n_pad, OUT_PAD), jnp.float32),
        grid=(n_blocks,),
        in_specs=[pl.BlockSpec((m_tok, D), lambda i: (i, 0)),
                  _const_spec(bias_slab.shape),
                  _const_spec(wA.shape),
                  _const_spec(wB.shape),
                  _const_spec(wC.shape)],
        out_specs=pl.BlockSpec((rows, OUT_PAD), lambda i: (i, 0)),
        compiler_params=pltpu.CompilerParams(
            dimension_semantics=("parallel",),
            # blocks sized so everything fits the 32 MiB scoped default,
            # which is also safe under v7x's 64 MiB physical VMEM.
            vmem_limit_bytes=32 * 1024 * 1024),
    )(x, bias_slab, wA, wB, wC)
    return out[:N, :OUT_DIM].reshape(B, S, OUT_DIM)


# ------------------------------ parameter init ------------------------------- #

def _init_linear(key, din, dout):
    kw, kb = jax.random.split(key)
    lim = 1.0 / math.sqrt(din)
    w = jax.random.uniform(kw, (din, dout), jnp.float32, -lim, lim)
    b = jax.random.uniform(kb, (dout,), jnp.float32, -lim, lim)
    return w, b


def init_params(key, D):
    dff = 4 * D
    dk = D // NUM_HEADS
    scale = 1.0 / math.sqrt(dk)
    lay = _layout(D)
    keys = iter(jax.random.split(key, 16))

    # --- transformer weights ---
    wq, bq = _init_linear(next(keys), D, D)
    wk, bk = _init_linear(next(keys), D, D)
    wv, bv = _init_linear(next(keys), D, D)
    wq, bq = wq * scale, bq * scale                 # fold 1/sqrt(dk) into q
    wo, bo = _init_linear(next(keys), D, D)
    w1, b1 = _init_linear(next(keys), D, dff)
    w2, b2 = _init_linear(next(keys), dff, D)

    # --- mlp, pretrain_linear, pred_linear weights ---
    m_w1, m_b1 = _init_linear(next(keys), D, 2 * D)
    m_w2, m_b2 = _init_linear(next(keys), 2 * D, dff)
    m_w3, m_b3 = _init_linear(next(keys), dff, D)
    p_w1, p_b1 = _init_linear(next(keys), D, 2 * D)
    p_w2, p_b2 = _init_linear(next(keys), 2 * D, dff)
    p_w3, p_b3 = _init_linear(next(keys), dff, D)
    pr_w, pr_b = _init_linear(next(keys), D, OUT_DIM)
    pr_w = jnp.pad(pr_w, ((0, 0), (0, OUT_PAD - OUT_DIM)))
    pr_b = jnp.pad(pr_b, (0, OUT_PAD - OUT_DIM))

    # --- pack: bf16 weight slabs grouped by input dim + one f32 bias/LN slab ---
    wA = jnp.concatenate([jnp.concatenate([wq, wk, wv], axis=1),
                          wo, w1, m_w1, p_w1, pr_w], axis=1).astype(jnp.bfloat16)
    wB = jnp.concatenate([m_w2, p_w2], axis=1).astype(jnp.bfloat16)
    wC = jnp.concatenate([w2, m_w3, p_w3], axis=1).astype(jnp.bfloat16)

    ones = jnp.ones((D,), jnp.float32)
    zeros = jnp.zeros((D,), jnp.float32)
    bias_slab = jnp.concatenate(
        [ones, zeros, ones, zeros,                  # ln1_g ln1_b ln2_g ln2_b
         bq, bk, bv, bo, b1, b2,
         m_b1, m_b2, m_b3, p_b1, p_b2, p_b3,
         pr_b])[None, :]                            # (1, total) f32

    assert wA.shape[1] == lay["wa_tot"]
    assert wB.shape[1] == lay["wb_tot"]
    assert wC.shape[1] == lay["wc_tot"]
    assert bias_slab.shape[1] == lay["b_tot"]
    return bias_slab, wA, wB, wC


# ----------------------------------- main ------------------------------------ #

if __name__ == "__main__":
    D = 32      # emb_dim (the PyTorch module hard-codes 300; small for the test)
    B, S, T = 2, 4, 8

    key = jax.random.PRNGKey(0)
    k_in, k_par = jax.random.split(key)
    bert_input = jax.random.normal(k_in, (B, S, T, D), jnp.float32)
    params = init_params(k_par, D)

    out = pretrain_model_forward(bert_input, params)
    out = jax.block_until_ready(out)
    assert out.shape == (B, S, OUT_DIM) and out.dtype == jnp.float32
    print("KERNEL_OK")
</pallas_src>

<mosaic_0001>
module attributes {stable_mosaic.version = 11 : i64} {
  func.func @kernel(%arg0: i32, %arg1: memref<64x32xf32, #tpu.memory_space<vmem>>, %arg2: memref<1x992xf32, #tpu.memory_space<vmem>>, %arg3: memref<32x512xbf16, #tpu.memory_space<vmem>>, %arg4: memref<64x256xbf16, #tpu.memory_space<vmem>>, %arg5: memref<128x96xbf16, #tpu.memory_space<vmem>>, %arg6: memref<8x128xf32, #tpu.memory_space<vmem>>) attributes {dimension_semantics = [#tpu.dimension_semantics<parallel>], iteration_bounds = array<i64: 2>, scalar_prefetch = 0 : i64, scratch_operands = 0 : i64, tpu.core_type = #tpu.core_type<tc>, window_params = [{transform_indices = @transform_0, window_bounds = array<i64: 64, 32>}, {pipeline_mode = #tpu.pipeline_mode<synchronous>, transform_indices = @transform_1, window_bounds = array<i64: 1, 992>}, {pipeline_mode = #tpu.pipeline_mode<synchronous>, transform_indices = @transform_2, window_bounds = array<i64: 32, 512>}, {pipeline_mode = #tpu.pipeline_mode<synchronous>, transform_indices = @transform_3, window_bounds = array<i64: 64, 256>}, {pipeline_mode = #tpu.pipeline_mode<synchronous>, transform_indices = @transform_4, window_bounds = array<i64: 128, 96>}, {transform_indices = @transform_5, window_bounds = array<i64: 8, 128>}]} {
    %c0 = arith.constant 0 : index
    %c0_0 = arith.constant 0 : index
    %0 = vector.load %arg1[%c0, %c0_0] : memref<64x32xf32, #tpu.memory_space<vmem>>, vector<64x32xf32>
    %c0_1 = arith.constant 0 : index
    %c0_2 = arith.constant 0 : index
    %1 = vector.load %arg2[%c0_1, %c0_2] : memref<1x992xf32, #tpu.memory_space<vmem>>, vector<1x32xf32>
    %c0_3 = arith.constant 0 : index
    %c32 = arith.constant 32 : index
    %2 = vector.load %arg2[%c0_3, %c32] : memref<1x992xf32, #tpu.memory_space<vmem>>, vector<1x32xf32>
    %cst = arith.constant dense<0.000000e+00> : vector<64xf32>
    %3 = vector.multi_reduction <add>, %0, %cst [1] : vector<64x32xf32> to vector<64xf32>
    %4 = vector.shape_cast %3 : vector<64xf32> to vector<64x1xf32>
    %cst_4 = arith.constant 3.200000e+01 : f32
    %5 = vector.broadcast %cst_4 : f32 to vector<64x1xf32>
    %6 = arith.divf %4, %5 : vector<64x1xf32>
    %7 = vector.broadcast %6 : vector<64x1xf32> to vector<64x32xf32>
    %8 = arith.subf %0, %7 : vector<64x32xf32>
    %9 = arith.mulf %8, %8 : vector<64x32xf32>
    %cst_5 = arith.constant dense<0.000000e+00> : vector<64xf32>
    %10 = vector.multi_reduction <add>, %9, %cst_5 [1] : vector<64x32xf32> to vector<64xf32>
    %11 = vector.shape_cast %10 : vector<64xf32> to vector<64x1xf32>
    %cst_6 = arith.constant 3.200000e+01 : f32
    %12 = vector.broadcast %cst_6 : f32 to vector<64x1xf32>
    %13 = arith.divf %11, %12 : vector<64x1xf32>
    %14 = vector.broadcast %6 : vector<64x1xf32> to vector<64x32xf32>
    %15 = arith.subf %0, %14 : vector<64x32xf32>
    %cst_7 = arith.constant 9.99999997E-7 : f32
    %16 = vector.broadcast %cst_7 : f32 to vector<64x1xf32>
    %17 = arith.addf %13, %16 : vector<64x1xf32>
    %18 = math.rsqrt %17 : vector<64x1xf32>
    %19 = vector.broadcast %18 : vector<64x1xf32> to vector<64x32xf32>
    %20 = arith.mulf %15, %19 : vector<64x32xf32>
    %21 = vector.broadcast %1 : vector<1x32xf32> to vector<64x32xf32>
    %22 = arith.mulf %20, %21 : vector<64x32xf32>
    %23 = vector.broadcast %2 : vector<1x32xf32> to vector<64x32xf32>
    %24 = arith.addf %22, %23 : vector<64x32xf32>
    %c0_8 = arith.constant 0 : index
    %c0_9 = arith.constant 0 : index
    %25 = vector.load %arg3[%c0_8, %c0_9] : memref<32x512xbf16, #tpu.memory_space<vmem>>, vector<32x96xbf16>
    %26 = arith.truncf %24 : vector<64x32xf32> to vector<64x32xbf16>
    %cst_10 = arith.constant dense<0.000000e+00> : vector<64x96xf32>
    %27 = tpu.matmul %26, %25, %cst_10 {dimension_numbers = #tpu.dot_dimension_numbers<[1], [0], [0], [1], [0, 0, 1, 1], [], []>} : vector<64x32xbf16>, vector<32x96xbf16>, vector<64x96xf32> -> vector<64x96xf32>
    %c0_11 = arith.constant 0 : index
    %c128 = arith.constant 128 : index
    %28 = vector.load %arg2[%c0_11, %c128] : memref<1x992xf32, #tpu.memory_space<vmem>>, vector<1x96xf32>
    %29 = vector.broadcast %28 : vector<1x96xf32> to vector<64x96xf32>
    %30 = arith.addf %27, %29 : vector<64x96xf32>
    %31 = vector.shape_cast %30 : vector<64x96xf32> to vector<8x8x96xf32>
    %32 = vector.extract_strided_slice %31 {offsets = [0, 0, 0], sizes = [8, 8, 16], strides = [1, 1, 1]} : vector<8x8x96xf32> to vector<8x8x16xf32>
    %33 = vector.extract_strided_slice %31 {offsets = [0, 0, 32], sizes = [8, 8, 16], strides = [1, 1, 1]} : vector<8x8x96xf32> to vector<8x8x16xf32>
    %34 = vector.extract_strided_slice %31 {offsets = [0, 0, 64], sizes = [8, 8, 16], strides = [1, 1, 1]} : vector<8x8x96xf32> to vector<8x8x16xf32>
    %35 = arith.truncf %32 : vector<8x8x16xf32> to vector<8x8x16xbf16>
    %36 = arith.truncf %33 : vector<8x8x16xf32> to vector<8x8x16xbf16>
    "tpu.trace_start"() <{level = 10 : i32, message = "rtd,rsd->rts"}> : () -> ()
    %cst_12 = arith.constant dense<0.000000e+00> : vector<8x8x8xf32>
    %37 = tpu.matmul %35, %36, %cst_12 {dimension_numbers = #tpu.dot_dimension_numbers<[2], [2], [1], [1], [0, 0, 0, 1, 1, 1], [0], [0]>} : vector<8x8x16xbf16>, vector<8x8x16xbf16>, vector<8x8x8xf32> -> vector<8x8x8xf32>
    "tpu.trace_stop"() : () -> ()
    %cst_13 = arith.constant dense<0xFF800000> : vector<8x8xf32>
    %38 = vector.multi_reduction <maximumf>, %37, %cst_13 [2] : vector<8x8x8xf32> to vector<8x8xf32>
    %39 = vector.shape_cast %38 : vector<8x8xf32> to vector<8x8x1xf32>
    %40 = vector.broadcast %39 : vector<8x8x1xf32> to vector<8x8x8xf32>
    %41 = arith.subf %37, %40 : vector<8x8x8xf32>
    %42 = math.exp %41 : vector<8x8x8xf32>
    %cst_14 = arith.constant dense<0.000000e+00> : vector<8x8xf32>
    %43 = vector.multi_reduction <add>, %42, %cst_14 [2] : vector<8x8x8xf32> to vector<8x8xf32>
    %44 = vector.shape_cast %43 : vector<8x8xf32> to vector<8x8x1xf32>
    %45 = vector.broadcast %44 : vector<8x8x1xf32> to vector<8x8x8xf32>
    %46 = arith.divf %42, %45 : vector<8x8x8xf32>
    %47 = arith.truncf %46 : vector<8x8x8xf32> to vector<8x8x8xbf16>
    %48 = arith.truncf %34 : vector<8x8x16xf32> to vector<8x8x16xbf16>
    "tpu.trace_start"() <{level = 10 : i32, message = "rts,rsd->rtd"}> : () -> ()
    %cst_15 = arith.constant dense<0.000000e+00> : vector<8x8x16xf32>
    %49 = tpu.matmul %47, %48, %cst_15 {dimension_numbers = #tpu.dot_dimension_numbers<[2], [1], [1], [2], [0, 0, 0, 1, 1, 2], [0], [0]>} : vector<8x8x8xbf16>, vector<8x8x16xbf16>, vector<8x8x16xf32> -> vector<8x8x16xf32>
    "tpu.trace_stop"() : () -> ()
    %50 = vector.extract_strided_slice %31 {offsets = [0, 0, 16], sizes = [8, 8, 16], strides = [1, 1, 1]} : vector<8x8x96xf32> to vector<8x8x16xf32>
    %51 = vector.extract_strided_slice %31 {offsets = [0, 0, 48], sizes = [8, 8, 16], strides = [1, 1, 1]} : vector<8x8x96xf32> to vector<8x8x16xf32>
    %52 = vector.extract_strided_slice %31 {offsets = [0, 0, 80], sizes = [8, 8, 16], strides = [1, 1, 1]} : vector<8x8x96xf32> to vector<8x8x16xf32>
    %53 = arith.truncf %50 : vector<8x8x16xf32> to vector<8x8x16xbf16>
    %54 = arith.truncf %51 : vector<8x8x16xf32> to vector<8x8x16xbf16>
    "tpu.trace_start"() <{level = 10 : i32, message = "rtd,rsd->rts"}> : () -> ()
    %cst_16 = arith.constant dense<0.000000e+00> : vector<8x8x8xf32>
    %55 = tpu.matmul %53, %54, %cst_16 {dimension_numbers = #tpu.dot_dimension_numbers<[2], [2], [1], [1], [0, 0, 0, 1, 1, 1], [0], [0]>} : vector<8x8x16xbf16>, vector<8x8x16xbf16>, vector<8x8x8xf32> -> vector<8x8x8xf32>
    "tpu.trace_stop"() : () -> ()
    %cst_17 = arith.constant dense<0xFF800000> : vector<8x8xf32>
    %56 = vector.multi_reduction <maximumf>, %55, %cst_17 [2] : vector<8x8x8xf32> to vector<8x8xf32>
    %57 = vector.shape_cast %56 : vector<8x8xf32> to vector<8x8x1xf32>
    %58 = vector.broadcast %57 : vector<8x8x1xf32> to vector<8x8x8xf32>
    %59 = arith.subf %55, %58 : vector<8x8x8xf32>
    %60 = math.exp %59 : vector<8x8x8xf32>
    %cst_18 = arith.constant dense<0.000000e+00> : vector<8x8xf32>
    %61 = vector.multi_reduction <add>, %60, %cst_18 [2] : vector<8x8x8xf32> to vector<8x8xf32>
    %62 = vector.shape_cast %61 : vector<8x8xf32> to vector<8x8x1xf32>
    %63 = vector.broadcast %62 : vector<8x8x1xf32> to vector<8x8x8xf32>
    %64 = arith.divf %60, %63 : vector<8x8x8xf32>
    %65 = arith.truncf %64 : vector<8x8x8xf32> to vector<8x8x8xbf16>
    %66 = arith.truncf %52 : vector<8x8x16xf32> to vector<8x8x16xbf16>
    "tpu.trace_start"() <{level = 10 : i32, message = "rts,rsd->rtd"}> : () -> ()
    %cst_19 = arith.constant dense<0.000000e+00> : vector<8x8x16xf32>
    %67 = tpu.matmul %65, %66, %cst_19 {dimension_numbers = #tpu.dot_dimension_numbers<[2], [1], [1], [2], [0, 0, 0, 1, 1, 2], [0], [0]>} : vector<8x8x8xbf16>, vector<8x8x16xbf16>, vector<8x8x16xf32> -> vector<8x8x16xf32>
    "tpu.trace_stop"() : () -> ()
    %68 = tpu.concatenate %49, %67 in 2 : vector<8x8x16xf32>, vector<8x8x16xf32> -> vector<8x8x32xf32>
    %69 = vector.shape_cast %68 : vector<8x8x32xf32> to vector<64x32xf32>
    %c0_20 = arith.constant 0 : index
    %c96 = arith.constant 96 : index
    %70 = vector.load %arg3[%c0_20, %c96] : memref<32x512xbf16, #tpu.memory_space<vmem>>, vector<32x32xbf16>
    %71 = arith.truncf %69 : vector<64x32xf32> to vector<64x32xbf16>
    %cst_21 = arith.constant dense<0.000000e+00> : vector<64x32xf32>
    %72 = tpu.matmul %71, %70, %cst_21 {dimension_numbers = #tpu.dot_dimension_numbers<[1], [0], [0], [1], [0, 0, 1, 1], [], []>} : vector<64x32xbf16>, vector<32x32xbf16>, vector<64x32xf32> -> vector<64x32xf32>
    %73 = arith.addf %0, %72 : vector<64x32xf32>
    %c0_22 = arith.constant 0 : index
    %c224 = arith.constant 224 : index
    %74 = vector.load %arg2[%c0_22, %c224] : memref<1x992xf32, #tpu.memory_space<vmem>>, vector<1x32xf32>
    %75 = vector.broadcast %74 : vector<1x32xf32> to vector<64x32xf32>
    %76 = arith.addf %73, %75 : vector<64x32xf32>
    %c0_23 = arith.constant 0 : index
    %c64 = arith.constant 64 : index
    %77 = vector.load %arg2[%c0_23, %c64] : memref<1x992xf32, #tpu.memory_space<vmem>>, vector<1x32xf32>
    %c0_24 = arith.constant 0 : index
    %c96_25 = arith.constant 96 : index
    %78 = vector.load %arg2[%c0_24, %c96_25] : memref<1x992xf32, #tpu.memory_space<vmem>>, vector<1x32xf32>
    %cst_26 = arith.constant dense<0.000000e+00> : vector<64xf32>
    %79 = vector.multi_reduction <add>, %76, %cst_26 [1] : vector<64x32xf32> to vector<64xf32>
    %80 = vector.shape_cast %79 : vector<64xf32> to vector<64x1xf32>
    %cst_27 = arith.constant 3.200000e+01 : f32
    %81 = vector.broadcast %cst_27 : f32 to vector<64x1xf32>
    %82 = arith.divf %80, %81 : vector<64x1xf32>
    %83 = vector.broadcast %82 : vector<64x1xf32> to vector<64x32xf32>
    %84 = arith.subf %76, %83 : vector<64x32xf32>
    %85 = arith.mulf %84, %84 : vector<64x32xf32>
    %cst_28 = arith.constant dense<0.000000e+00> : vector<64xf32>
    %86 = vector.multi_reduction <add>, %85, %cst_28 [1] : vector<64x32xf32> to vector<64xf32>
    %87 = vector.shape_cast %86 : vector<64xf32> to vector<64x1xf32>
    %cst_29 = arith.constant 3.200000e+01 : f32
    %88 = vector.broadcast %cst_29 : f32 to vector<64x1xf32>
    %89 = arith.divf %87, %88 : vector<64x1xf32>
    %90 = vector.broadcast %82 : vector<64x1xf32> to vector<64x32xf32>
    %91 = arith.subf %76, %90 : vector<64x32xf32>
    %cst_30 = arith.constant 9.99999997E-7 : f32
    %92 = vector.broadcast %cst_30 : f32 to vector<64x1xf32>
    %93 = arith.addf %89, %92 : vector<64x1xf32>
    %94 = math.rsqrt %93 : vector<64x1xf32>
    %95 = vector.broadcast %94 : vector<64x1xf32> to vector<64x32xf32>
    %96 = arith.mulf %91, %95 : vector<64x32xf32>
    %97 = vector.broadcast %77 : vector<1x32xf32> to vector<64x32xf32>
    %98 = arith.mulf %96, %97 : vector<64x32xf32>
    %99 = vector.broadcast %78 : vector<1x32xf32> to vector<64x32xf32>
    %100 = arith.addf %98, %99 : vector<64x32xf32>
    %c0_31 = arith.constant 0 : index
    %c128_32 = arith.constant 128 : index
    %101 = vector.load %arg3[%c0_31, %c128_32] : memref<32x512xbf16, #tpu.memory_space<vmem>>, vector<32x128xbf16>
    %102 = arith.truncf %100 : vector<64x32xf32> to vector<64x32xbf16>
    %cst_33 = arith.constant dense<0.000000e+00> : vector<64x128xf32>
    %103 = tpu.matmul %102, %101, %cst_33 {dimension_numbers = #tpu.dot_dimension_numbers<[1], [0], [0], [1], [0, 0, 1, 1], [], []>} : vector<64x32xbf16>, vector<32x128xbf16>, vector<64x128xf32> -> vector<64x128xf32>
    %c0_34 = arith.constant 0 : index
    %c256 = arith.constant 256 : index
    %104 = vector.load %arg2[%c0_34, %c256] : memref<1x992xf32, #tpu.memory_space<vmem>>, vector<1x128xf32>
    %105 = vector.broadcast %104 : vector<1x128xf32> to vector<64x128xf32>
    %106 = arith.addf %103, %105 : vector<64x128xf32>
    %107 = arith.mulf %106, %106 : vector<64x128xf32>
    %108 = arith.mulf %106, %107 : vector<64x128xf32>
    %cst_35 = arith.constant 4.471500e-02 : f32
    %109 = vector.broadcast %cst_35 : f32 to vector<64x128xf32>
    %110 = arith.mulf %109, %108 : vector<64x128xf32>
    %111 = arith.addf %106, %110 : vector<64x128xf32>
    %cst_36 = arith.constant 0.797884583 : f32
    %112 = vector.broadcast %cst_36 : f32 to vector<64x128xf32>
    %113 = arith.mulf %112, %111 : vector<64x128xf32>
    %114 = math.tanh %113 : vector<64x128xf32>
    %cst_37 = arith.constant 1.000000e+00 : f32
    %115 = vector.broadcast %cst_37 : f32 to vector<64x128xf32>
    %116 = arith.addf %115, %114 : vector<64x128xf32>
    %cst_38 = arith.constant 5.000000e-01 : f32
    %117 = vector.broadcast %cst_38 : f32 to vector<64x128xf32>
    %118 = arith.mulf %117, %116 : vector<64x128xf32>
    %119 = arith.mulf %106, %118 : vector<64x128xf32>
    %c0_39 = arith.constant 0 : index
    %c0_40 = arith.constant 0 : index
    %120 = vector.load %arg5[%c0_39, %c0_40] : memref<128x96xbf16, #tpu.memory_space<vmem>>, vector<128x32xbf16>
    %121 = arith.truncf %119 : vector<64x128xf32> to vector<64x128xbf16>
    %cst_41 = arith.constant dense<0.000000e+00> : vector<64x32xf32>
    %122 = tpu.matmul %121, %120, %cst_41 {dimension_numbers = #tpu.dot_dimension_numbers<[1], [0], [0], [1], [0, 0, 1, 1], [], []>} : vector<64x128xbf16>, vector<128x32xbf16>, vector<64x32xf32> -> vector<64x32xf32>
    %c0_42 = arith.constant 0 : index
    %c384 = arith.constant 384 : index
    %123 = vector.load %arg2[%c0_42, %c384] : memref<1x992xf32, #tpu.memory_space<vmem>>, vector<1x32xf32>
    %124 = vector.broadcast %123 : vector<1x32xf32> to vector<64x32xf32>
    %125 = arith.addf %122, %124 : vector<64x32xf32>
    %126 = arith.addf %76, %125 : vector<64x32xf32>
    %127 = vector.shape_cast %126 : vector<64x32xf32> to vector<8x8x32xf32>
    %cst_43 = arith.constant dense<0.000000e+00> : vector<8x32xf32>
    %128 = vector.multi_reduction <add>, %127, %cst_43 [1] : vector<8x8x32xf32> to vector<8x32xf32>
    %c0_44 = arith.constant 0 : index
    %c256_45 = arith.constant 256 : index
    %129 = vector.load %arg3[%c0_44, %c256_45] : memref<32x512xbf16, #tpu.memory_space<vmem>>, vector<32x64xbf16>
    %c0_46 = arith.constant 0 : index
    %c416 = arith.constant 416 : index
    %130 = vector.load %arg2[%c0_46, %c416] : memref<1x992xf32, #tpu.memory_space<vmem>>, vector<1x64xf32>
    %131 = arith.truncf %128 : vector<8x32xf32> to vector<8x32xbf16>
    %cst_47 = arith.constant dense<0.000000e+00> : vector<8x64xf32>
    %132 = tpu.matmul %131, %129, %cst_47 {dimension_numbers = #tpu.dot_dimension_numbers<[1], [0], [0], [1], [0, 0, 1, 1], [], []>} : vector<8x32xbf16>, vector<32x64xbf16>, vector<8x64xf32> -> vector<8x64xf32>
    %133 = vector.broadcast %130 : vector<1x64xf32> to vector<8x64xf32>
    %134 = arith.addf %132, %133 : vector<8x64xf32>
    %cst_48 = arith.constant 0.000000e+00 : f32
    %135 = vector.broadcast %cst_48 : f32 to vector<8x64xf32>
    %136 = arith.maximumf %134, %135 : vector<8x64xf32>
    %c0_49 = arith.constant 0 : index
    %c0_50 = arith.constant 0 : index
    %137 = vector.load %arg4[%c0_49, %c0_50] : memref<64x256xbf16, #tpu.memory_space<vmem>>, vector<64x128xbf16>
    %c0_51 = arith.constant 0 : index
    %c480 = arith.constant 480 : index
    %138 = vector.load %arg2[%c0_51, %c480] : memref<1x992xf32, #tpu.memory_space<vmem>>, vector<1x128xf32>
    %139 = arith.truncf %136 : vector<8x64xf32> to vector<8x64xbf16>
    %cst_52 = arith.constant dense<0.000000e+00> : vector<8x128xf32>
    %140 = tpu.matmul %139, %137, %cst_52 {dimension_numbers = #tpu.dot_dimension_numbers<[1], [0], [0], [1], [0, 0, 1, 1], [], []>} : vector<8x64xbf16>, vector<64x128xbf16>, vector<8x128xf32> -> vector<8x128xf32>
    %141 = vector.broadcast %138 : vector<1x128xf32> to vector<8x128xf32>
    %142 = arith.addf %140, %141 : vector<8x128xf32>
    %cst_53 = arith.constant 0.000000e+00 : f32
    %143 = vector.broadcast %cst_53 : f32 to vector<8x128xf32>
    %144 = arith.maximumf %142, %143 : vector<8x128xf32>
    %c0_54 = arith.constant 0 : index
    %c32_55 = arith.constant 32 : index
    %145 = vector.load %arg5[%c0_54, %c32_55] : memref<128x96xbf16, #tpu.memory_space<vmem>>, vector<128x32xbf16>
    %c0_56 = arith.constant 0 : index
    %c608 = arith.constant 608 : index
    %146 = vector.load %arg2[%c0_56, %c608] : memref<1x992xf32, #tpu.memory_space<vmem>>, vector<1x32xf32>
    %147 = arith.truncf %144 : vector<8x128xf32> to vector<8x128xbf16>
    %cst_57 = arith.constant dense<0.000000e+00> : vector<8x32xf32>
    %148 = tpu.matmul %147, %145, %cst_57 {dimension_numbers = #tpu.dot_dimension_numbers<[1], [0], [0], [1], [0, 0, 1, 1], [], []>} : vector<8x128xbf16>, vector<128x32xbf16>, vector<8x32xf32> -> vector<8x32xf32>
    %149 = vector.broadcast %146 : vector<1x32xf32> to vector<8x32xf32>
    %150 = arith.addf %148, %149 : vector<8x32xf32>
    %cst_58 = arith.constant 0.000000e+00 : f32
    %151 = vector.broadcast %cst_58 : f32 to vector<8x32xf32>
    %152 = arith.maximumf %150, %151 : vector<8x32xf32>
    %c0_59 = arith.constant 0 : index
    %c320 = arith.constant 320 : index
    %153 = vector.load %arg3[%c0_59, %c320] : memref<32x512xbf16, #tpu.memory_space<vmem>>, vector<32x64xbf16>
    %c0_60 = arith.constant 0 : index
    %c640 = arith.constant 640 : index
    %154 = vector.load %arg2[%c0_60, %c640] : memref<1x992xf32, #tpu.memory_space<vmem>>, vector<1x64xf32>
    %155 = arith.truncf %152 : vector<8x32xf32> to vector<8x32xbf16>
    %cst_61 = arith.constant dense<0.000000e+00> : vector<8x64xf32>
    %156 = tpu.matmul %155, %153, %cst_61 {dimension_numbers = #tpu.dot_dimension_numbers<[1], [0], [0], [1], [0, 0, 1, 1], [], []>} : vector<8x32xbf16>, vector<32x64xbf16>, vector<8x64xf32> -> vector<8x64xf32>
    %157 = vector.broadcast %154 : vector<1x64xf32> to vector<8x64xf32>
    %158 = arith.addf %156, %157 : vector<8x64xf32>
    %cst_62 = arith.constant 0.000000e+00 : f32
    %159 = vector.broadcast %cst_62 : f32 to vector<8x64xf32>
    %160 = arith.maximumf %158, %159 : vector<8x64xf32>
    %c0_63 = arith.constant 0 : index
    %c128_64 = arith.constant 128 : index
    %161 = vector.load %arg4[%c0_63, %c128_64] : memref<64x256xbf16, #tpu.memory_space<vmem>>, vector<64x128xbf16>
    %c0_65 = arith.constant 0 : index
    %c704 = arith.constant 704 : index
    %162 = vector.load %arg2[%c0_65, %c704] : memref<1x992xf32, #tpu.memory_space<vmem>>, vector<1x128xf32>
    %163 = arith.truncf %160 : vector<8x64xf32> to vector<8x64xbf16>
    %cst_66 = arith.constant dense<0.000000e+00> : vector<8x128xf32>
    %164 = tpu.matmul %163, %161, %cst_66 {dimension_numbers = #tpu.dot_dimension_numbers<[1], [0], [0], [1], [0, 0, 1, 1], [], []>} : vector<8x64xbf16>, vector<64x128xbf16>, vector<8x128xf32> -> vector<8x128xf32>
    %165 = vector.broadcast %162 : vector<1x128xf32> to vector<8x128xf32>
    %166 = arith.addf %164, %165 : vector<8x128xf32>
    %cst_67 = arith.constant 0.000000e+00 : f32
    %167 = vector.broadcast %cst_67 : f32 to vector<8x128xf32>
    %168 = arith.maximumf %166, %167 : vector<8x128xf32>
    %c0_68 = arith.constant 0 : index
    %c64_69 = arith.constant 64 : index
    %169 = vector.load %arg5[%c0_68, %c64_69] : memref<128x96xbf16, #tpu.memory_space<vmem>>, vector<128x32xbf16>
    %c0_70 = arith.constant 0 : index
    %c832 = arith.constant 832 : index
    %170 = vector.load %arg2[%c0_70, %c832] : memref<1x992xf32, #tpu.memory_space<vmem>>, vector<1x32xf32>
    %171 = arith.truncf %168 : vector<8x128xf32> to vector<8x128xbf16>
    %cst_71 = arith.constant dense<0.000000e+00> : vector<8x32xf32>
    %172 = tpu.matmul %171, %169, %cst_71 {dimension_numbers = #tpu.dot_dimension_numbers<[1], [0], [0], [1], [0, 0, 1, 1], [], []>} : vector<8x128xbf16>, vector<128x32xbf16>, vector<8x32xf32> -> vector<8x32xf32>
    %173 = vector.broadcast %170 : vector<1x32xf32> to vector<8x32xf32>
    %174 = arith.addf %172, %173 : vector<8x32xf32>
    %cst_72 = arith.constant 0.000000e+00 : f32
    %175 = vector.broadcast %cst_72 : f32 to vector<8x32xf32>
    %176 = arith.maximumf %174, %175 : vector<8x32xf32>
    %c0_73 = arith.constant 0 : index
    %c384_74 = arith.constant 384 : index
    %177 = vector.load %arg3[%c0_73, %c384_74] : memref<32x512xbf16, #tpu.memory_space<vmem>>, vector<32x128xbf16>
    %178 = arith.truncf %176 : vector<8x32xf32> to vector<8x32xbf16>
    %cst_75 = arith.constant dense<0.000000e+00> : vector<8x128xf32>
    %179 = tpu.matmul %178, %177, %cst_75 {dimension_numbers = #tpu.dot_dimension_numbers<[1], [0], [0], [1], [0, 0, 1, 1], [], []>} : vector<8x32xbf16>, vector<32x128xbf16>, vector<8x128xf32> -> vector<8x128xf32>
    %c0_76 = arith.constant 0 : index
    %c864 = arith.constant 864 : index
    %180 = vector.load %arg2[%c0_76, %c864] : memref<1x992xf32, #tpu.memory_space<vmem>>, vector<1x128xf32>
    %181 = vector.broadcast %180 : vector<1x128xf32> to vector<8x128xf32>
    %182 = arith.addf %179, %181 : vector<8x128xf32>
    %c0_77 = arith.constant 0 : index
    %c0_78 = arith.constant 0 : index
    %183 = vector.load %arg6[%c0_77, %c0_78] : memref<8x128xf32, #tpu.memory_space<vmem>>, vector<8x128xf32>
    tpu.vector_store %arg6[%c0_77, %c0_78], %182 {strides = array<i32>} : memref<8x128xf32, #tpu.memory_space<vmem>>, vector<8x128xf32>,
    return
  }
  func.func @transform_0(%arg0: i32) -> (i32, i32) {
    %c0_i32 = arith.constant 0 : i32
    %c0_i32_0 = arith.constant 0 : i32
    return %arg0, %c0_i32 : i32, i32
  }
  func.func @transform_1(%arg0: i32) -> (i32, i32) {
    %c0_i32 = arith.constant 0 : i32
    %c0_i32_0 = arith.constant 0 : i32
    %c0_i32_1 = arith.constant 0 : i32
    return %c0_i32, %c0_i32_0 : i32, i32
  }
  func.func @transform_2(%arg0: i32) -> (i32, i32) {
    %c0_i32 = arith.constant 0 : i32
    %c0_i32_0 = arith.constant 0 : i32
    %c0_i32_1 = arith.constant 0 : i32
    return %c0_i32, %c0_i32_0 : i32, i32
  }
  func.func @transform_3(%arg0: i32) -> (i32, i32) {
    %c0_i32 = arith.constant 0 : i32
    %c0_i32_0 = arith.constant 0 : i32
    %c0_i32_1 = arith.constant 0 : i32
    return %c0_i32, %c0_i32_0 : i32, i32
  }
  func.func @transform_4(%arg0: i32) -> (i32, i32) {
    %c0_i32 = arith.constant 0 : i32
    %c0_i32_0 = arith.constant 0 : i32
    %c0_i32_1 = arith.constant 0 : i32
    return %c0_i32, %c0_i32_0 : i32, i32
  }
  func.func @transform_5(%arg0: i32) -> (i32, i32) {
    %c0_i32 = arith.constant 0 : i32
    %c0_i32_0 = arith.constant 0 : i32
    return %arg0, %c0_i32 : i32, i32
  }
}

</mosaic_0001>

<llo_original>
// kernel: tpu_custom_call.1
$region0: #{tpu_custom_call.1}
  #allocation0 [shape = 'u32[]', space=smem, size = 0x4, offset = 0x4, fixed_abs, tag = 'smem constant byte address 0x4 - core index']
  #allocation1 [shape = 'u32[144,128]{1,0:T(1,128)}', space=vmem, size = 0x12000, scoped, tag = 'internal scratch']
  %s0 = inlined_call_operand.vmem [shape: f32[128,32], index: 0, kind: input, shape index: {}]
  %s1 = inlined_call_operand.vmem [shape: f32[1,992], index: 1, kind: input, shape index: {}]
  %s2 = inlined_call_operand.vmem [shape: bf16[32,512], index: 2, kind: input, shape index: {}]
  %s3 = inlined_call_operand.vmem [shape: bf16[64,256], index: 3, kind: input, shape index: {}]
  %s4 = inlined_call_operand.vmem [shape: bf16[128,96], index: 4, kind: input, shape index: {}]
  %s5 = inlined_call_operand.hbm [shape: f32[16,128], index: 5, kind: output, shape index: {}]
  %s6 = sld [smem:[#allocation0]]
  $region53: #{tpu_custom_call.1} parent=0
    _
  %s8 = ssub.s32 1, %s6
  %s9 = scalar_select 0, %s8, %s6
  $region1: #{tpu_custom_call.1} parent=0
    #allocation2 [shape = 'u8[8192]{0}', space=vmem, size = 0x2000, scoped, tag = 'output window, operand 0']
    #allocation3 [shape = 's32[2]{0}', space=sflag, size = 0x8, scoped, tag = 'scoped memory for tpu_custom_call.1']
    %10 = vsyncpa [#allocation3], 0
    %s11 = scalar_lea.sflag [#allocation3], 1
    %12 = vsyncpa %s11, 0
    loop: start=0, step=1, limit=4
    $region2: #{tpu_custom_call.1} parent=1 // loop_pre_header
      _
    $region3: #{tpu_custom_call.1} parent=1 // loop_header
      %s14 = sphi 0, %s18
      %p15 = scmp.ge.s32.totalorder %s14, 4
      %s24 = sphi 0, %s26
      %s27 = sphi 0, %s24
      %s28 = sphi 0, %s27
      %s44 = sphi 0, %s28
      %s48 = sphi 0, %s48
      %s50 = sphi 0, %s48
      %s51 = sphi 0, %s50
      %s65 = sphi 0, %s51
      %s69 = sphi 0, %s69
      %s71 = sphi 0, %s69
      %s72 = sphi 0, %s71
      %s86 = sphi 0, %s72
      %s90 = sphi 0, %s90
      %s92 = sphi 0, %s90
      %s93 = sphi 0, %s92
      %s107 = sphi 0, %s93
      %s111 = sphi 0, %s111
      %s113 = sphi 0, %s111
      %s114 = sphi 0, %s113
      %s128 = sphi 0, %s114
      %s134 = sphi 0, %s136
      %s137 = sphi 0, %s134
      %s138 = sphi 0, %s137
      %s154 = sphi 0, %s138
    $region4: #{tpu_custom_call.1} parent=1 // loop_header_branch
      %17 = sbr.rel (%p15) target = $region8
    $region5: #{tpu_custom_call.1} parent=1 // loop_body
      %s19 = ssub.s32 %s14, 1
      %s20 = ssub.s32 %s14, 2
      %s21 = sadd.s32 %s14, 1
      %s22 = ssub.s32 %s14, %s21
      %p23 = scmp.eq.s32.totalorder %s22, 0
      %s25 = sadd.s32 %s24, 1
      %s26 = scalar_select %p23, %s24, %s25
      %p29 = pneg %p23
      %p30 = scmp.eq.s32.totalorder %s14, 1
      %p31 = por %p29, %p30
      %p32 = scmp.ne.s32.totalorder %s24, %s27
      %p33 = scmp.eq.s32.totalorder %s14, 0
      %p34 = por %p32, %p33
      %p35 = scmp.ne.s32.totalorder %s24, %s27
      %p36 = scmp.eq.s32.totalorder %s19, 1
      %p37 = por %p35, %p36
      %p38 = scmp.ne.s32.totalorder %s27, %s28
      %p39 = scmp.eq.s32.totalorder %s19, 0
      %p40 = por %p38, %p39
      %p41 = scmp.ne.s32.totalorder %s27, %s28
      %p42 = scmp.eq.s32.totalorder %s20, 1
      %p43 = por %p41, %p42
      %p45 = scmp.ne.s32.totalorder %s28, %s44
      %p46 = scmp.eq.s32.totalorder %s20, 0
      %p47 = por %p45, %p46
      %s49 = sadd.s32 %s48, 1
      %p52 = scmp.eq.s32.totalorder %s14, 1
      %p53 = scmp.ne.s32.totalorder %s48, %s50
      %p54 = scmp.eq.s32.totalorder %s14, 0
      %p55 = por %p53, %p54
      %p56 = scmp.ne.s32.totalorder %s48, %s50
      %p57 = scmp.eq.s32.totalorder %s19, 1
      %p58 = por %p56, %p57
      %p59 = scmp.ne.s32.totalorder %s50, %s51
      %p60 = scmp.eq.s32.totalorder %s19, 0
      %p61 = por %p59, %p60
      %p62 = scmp.ne.s32.totalorder %s50, %s51
      %p63 = scmp.eq.s32.totalorder %s20, 1
      %p64 = por %p62, %p63
      %p66 = scmp.ne.s32.totalorder %s51, %s65
      %p67 = scmp.eq.s32.totalorder %s20, 0
      %p68 = por %p66, %p67
      %s70 = sadd.s32 %s69, 1
      %p73 = scmp.eq.s32.totalorder %s14, 1
      %p74 = scmp.ne.s32.totalorder %s69, %s71
      %p75 = scmp.eq.s32.totalorder %s14, 0
      %p76 = por %p74, %p75
      %p77 = scmp.ne.s32.totalorder %s69, %s71
      %p78 = scmp.eq.s32.totalorder %s19, 1
      %p79 = por %p77, %p78
      %p80 = scmp.ne.s32.totalorder %s71, %s72
      %p81 = scmp.eq.s32.totalorder %s19, 0
      %p82 = por %p80, %p81
      %p83 = scmp.ne.s32.totalorder %s71, %s72
      %p84 = scmp.eq.s32.totalorder %s20, 1
      %p85 = por %p83, %p84
      %p87 = scmp.ne.s32.totalorder %s72, %s86
      %p88 = scmp.eq.s32.totalorder %s20, 0
      %p89 = por %p87, %p88
      %s91 = sadd.s32 %s90, 1
      %p94 = scmp.eq.s32.totalorder %s14, 1
      %p95 = scmp.ne.s32.totalorder %s90, %s92
      %p96 = scmp.eq.s32.totalorder %s14, 0
      %p97 = por %p95, %p96
      %p98 = scmp.ne.s32.totalorder %s90, %s92
      %p99 = scmp.eq.s32.totalorder %s19, 1
      %p100 = por %p98, %p99
      %p101 = scmp.ne.s32.totalorder %s92, %s93
      %p102 = scmp.eq.s32.totalorder %s19, 0
      %p103 = por %p101, %p102
      %p104 = scmp.ne.s32.totalorder %s92, %s93
      %p105 = scmp.eq.s32.totalorder %s20, 1
      %p106 = por %p104, %p105
      %p108 = scmp.ne.s32.totalorder %s93, %s107
      %p109 = scmp.eq.s32.totalorder %s20, 0
      %p110 = por %p108, %p109
      %s112 = sadd.s32 %s111, 1
      %p115 = scmp.eq.s32.totalorder %s14, 1
      %p116 = scmp.ne.s32.totalorder %s111, %s113
      %p117 = scmp.eq.s32.totalorder %s14, 0
      %p118 = por %p116, %p117
      %p119 = scmp.ne.s32.totalorder %s111, %s113
      %p120 = scmp.eq.s32.totalorder %s19, 1
      %p121 = por %p119, %p120
      %p122 = scmp.ne.s32.totalorder %s113, %s114
      %p123 = scmp.eq.s32.totalorder %s19, 0
      %p124 = por %p122, %p123
      %p125 = scmp.ne.s32.totalorder %s113, %s114
      %p126 = scmp.eq.s32.totalorder %s20, 1
      %p127 = por %p125, %p126
      %p129 = scmp.ne.s32.totalorder %s114, %s128
      %p130 = scmp.eq.s32.totalorder %s20, 0
      %p131 = por %p129, %p130
      %s132 = ssub.s32 %s14, %s21
      %p133 = scmp.eq.s32.totalorder %s132, 0
      %s135 = sadd.s32 %s134, 1
      %s136 = scalar_select %p133, %s134, %s135
      %p139 = pneg %p133
      %p140 = scmp.eq.s32.totalorder %s14, 1
      %p141 = por %p139, %p140
      %p142 = scmp.ne.s32.totalorder %s134, %s137
      %p143 = scmp.eq.s32.totalorder %s14, 0
      %p144 = por %p142, %p143
      %p145 = scmp.ne.s32.totalorder %s134, %s137
      %p146 = scmp.eq.s32.totalorder %s19, 1
      %p147 = por %p145, %p146
      %p148 = scmp.ne.s32.totalorder %s137, %s138
      %p149 = scmp.eq.s32.totalorder %s19, 0
      %p150 = por %p148, %p149
      %p151 = scmp.ne.s32.totalorder %s137, %s138
      %p152 = scmp.eq.s32.totalorder %s20, 1
      %p153 = por %p151, %p152
      %p155 = scmp.ne.s32.totalorder %s138, %s154
      %p156 = scmp.eq.s32.totalorder %s20, 0
      %p157 = por %p155, %p156
      %p158 = scmp.le.s32.totalorder 1, %s14
      %p159 = scmp.lt.s32.totalorder %s14, 3
      %p160 = pnand %p158, %p159
      %p161 = pneg %p160
      // Predicated region
      $region9: #{tpu_custom_call.1} parent=5 // pred_check
        _
      $region10: #{tpu_custom_call.1} parent=5 // pred_check_branch
        %163 = sbr.rel (%p160) target = $region12
      $region11: #{tpu_custom_call.1} parent=5 // pred_region
        %s164 = ssub.s32 %s14, 1
        // Predicated region
        $region13: #{tpu_custom_call.1} parent=11 // pred_check
          %p165 = pneg %p61
        $region14: #{tpu_custom_call.1} parent=11 // pred_check_branch
          %167 = sbr.rel (%p165) target = $region16
        $region15: #{tpu_custom_call.1} parent=11 // pred_region
          _
        $region16: #{tpu_custom_call.1} parent=11 // pred_fallthru
          _
        // Predicated region
        $region17: #{tpu_custom_call.1} parent=11 // pred_check
          %p168 = pneg %p82
        $region18: #{tpu_custom_call.1} parent=11 // pred_check_branch
          %170 = sbr.rel (%p168) target = $region20
        $region19: #{tpu_custom_call.1} parent=11 // pred_region
          _
        $region20: #{tpu_custom_call.1} parent=11 // pred_fallthru
          _
        // Predicated region
        $region21: #{tpu_custom_call.1} parent=11 // pred_check
          %p171 = pneg %p103
        $region22: #{tpu_custom_call.1} parent=11 // pred_check_branch
          %173 = sbr.rel (%p171) target = $region24
        $region23: #{tpu_custom_call.1} parent=11 // pred_region
          _
        $region24: #{tpu_custom_call.1} parent=11 // pred_fallthru
          _
        // Predicated region
        $region25: #{tpu_custom_call.1} parent=11 // pred_check
          %p174 = pneg %p124
        $region26: #{tpu_custom_call.1} parent=11 // pred_check_branch
          %176 = sbr.rel (%p174) target = $region28
        $region27: #{tpu_custom_call.1} parent=11 // pred_region
          _
        $region28: #{tpu_custom_call.1} parent=11 // pred_fallthru
          _
      $region12: #{tpu_custom_call.1} parent=5 // pred_fallthru
        _
      %p177 = scmp.lt.s32.totalorder %s14, 2
      // Predicated region
      $region29: #{tpu_custom_call.1} parent=5 // pred_check
        %p178 = pneg %p177
      $region30: #{tpu_custom_call.1} parent=5 // pred_check_branch
        %180 = sbr.rel (%p178) target = $region32
      $region31: #{tpu_custom_call.1} parent=5 // pred_region
        // Predicated region
        $region33: #{tpu_custom_call.1} parent=31 // pred_check
          %p181 = pneg %p34
        $region34: #{tpu_custom_call.1} parent=31 // pred_check_branch
          %183 = sbr.rel (%p181) target = $region36
        $region35: #{tpu_custom_call.1} parent=31 // pred_region
          %s184 = smul.u32 8, %s14
          %p185 = scmp.lt.s32.totalorder %s184, 15
          %s186 = scalar_select %p185, %s184, 15
          %s187 = smul.addr %s186, 8
          %s188 = scalar_lea.vmem %s0, %s187
          %s189 = smul.u32 8, %s14
        $region36: #{tpu_custom_call.1} parent=31 // pred_fallthru
          _
      $region32: #{tpu_custom_call.1} parent=5 // pred_fallthru
        _
      %p190 = scmp.le.s32.totalorder 1, %s14
      %p191 = scmp.lt.s32.totalorder %s14, 3
      %p192 = pnand %p190, %p191
      %p193 = pneg %p192
      // Predicated region
      $region37: #{tpu_custom_call.1} parent=5 // pred_check
        _
      $region38: #{tpu_custom_call.1} parent=5 // pred_check_branch
        %195 = sbr.rel (%p192) target = $region40
      $region39: #{tpu_custom_call.1} parent=5 // pred_region
        %s196 = ssub.s32 %s14, 1
        %s197 = smul.u32 8, %s19
        %p198 = scmp.lt.s32.totalorder %s197, 15
        %s199 = scalar_select %p198, %s197, 15
        %s200 = smul.addr %s199, 8
        %s201 = scalar_lea.vmem %s0, %s200
        %p202 = pneg %p40
        %p203 = pneg %p37
        %p204 = pneg %p61
        %p205 = pneg %p58
        %p206 = pneg %p82
        %p207 = pneg %p79
        %p208 = pneg %p103
        %p209 = pneg %p100
        %p210 = pneg %p124
        %p211 = pneg %p121
        %p212 = pneg %p150
        %p213 = pneg %p147
        %s214 = sand.u32 %s137, 1
        %s215 = scalar_lea.sflag [#allocation3], %s214
        %s216 = sand.u32 %s137, 1
        %s217 = smul.addr %s216, 8
        %s218 = scalar_lea.vmem [#allocation2], %s217
        %s219 = smul.u32 8, %s19
        %p220 = scmp.lt.s32.totalorder %s219, 15
        %s221 = scalar_select %p220, %s219, 15
        %s222 = smul.addr %s221, 8
        %s223 = scalar_lea.vmem %s0, %s222
        %s224 = smul.u32 8, %s19
        %v226 = vld [vmem:[%s223] sm:$0xff]
        %v227 = vld [vmem:[%s223 + $0x8] sm:$0xff]
        %v228 = vld [vmem:[%s223 + $0x10] sm:$0xff]
        %v229 = vld [vmem:[%s223 + $0x18] sm:$0xff]
        %v230 = vld [vmem:[%s223 + $0x20] sm:$0xff]
        %v231 = vld [vmem:[%s223 + $0x28] sm:$0xff]
        %v232 = vld [vmem:[%s223 + $0x30] sm:$0xff]
        %v233 = vld [vmem:[%s223 + $0x38] sm:$0xff]
        %v234 = vld [vmem:[%s1] sm:$0x1]
        %vm235 = vcmask 261120
        %v236 = vsel %vm235, %v226, 0.0
        %237 = vadd.xlane.f32.xlu0 %v236
        %v238 = vpop.xlane.xlu0 %237
        %v239 = vsel %vm235, %v227, 0.0
        %240 = vadd.xlane.f32.xlu0 %v239
        %v241 = vpop.xlane.xlu0 %240
        %v242 = vsel %vm235, %v228, 0.0
        %243 = vadd.xlane.f32.xlu0 %v242
        %v244 = vpop.xlane.xlu0 %243
        %v245 = vsel %vm235, %v229, 0.0
        %246 = vadd.xlane.f32.xlu0 %v245
        %v247 = vpop.xlane.xlu0 %246
        %v248 = vsel %vm235, %v230, 0.0
        %249 = vadd.xlane.f32.xlu0 %v248
        %v250 = vpop.xlane.xlu0 %249
        %v251 = vsel %vm235, %v231, 0.0
        %252 = vadd.xlane.f32.xlu0 %v251
        %v253 = vpop.xlane.xlu0 %252
        %v254 = vsel %vm235, %v232, 0.0
        %255 = vadd.xlane.f32.xlu0 %v254
        %v256 = vpop.xlane.xlu0 %255
        %v257 = vsel %vm235, %v233, 0.0
        %258 = vadd.xlane.f32.xlu0 %v257
        %v259 = vpop.xlane.xlu0 %258
        %v260 = vrcp.pop 32.0
        %v261 = vmul.f32 %v238, %v260
        %v262 = vmul.f32 %v241, %v260
        %v263 = vmul.f32 %v244, %v260
        %v264 = vmul.f32 %v247, %v260
        %v265 = vmul.f32 %v250, %v260
        %v266 = vmul.f32 %v253, %v260
        %v267 = vmul.f32 %v256, %v260
        %v268 = vmul.f32 %v259, %v260
        %v269 = vsub.f32 %v226, %v261
        %v270 = vsub.f32 %v227, %v262
        %v271 = vsub.f32 %v228, %v263
        %v272 = vsub.f32 %v229, %v264
        %v273 = vsub.f32 %v230, %v265
        %v274 = vsub.f32 %v231, %v266
        %v275 = vsub.f32 %v232, %v267
        %v276 = vsub.f32 %v233, %v268
        %v277 = vmul.f32 %v269, %v269
        %v278 = vmul.f32 %v270, %v270
        %v279 = vmul.f32 %v271, %v271
        %v280 = vmul.f32 %v272, %v272
        %v281 = vmul.f32 %v273, %v273
        %v282 = vmul.f32 %v274, %v274
        %v283 = vmul.f32 %v275, %v275
        %v284 = vmul.f32 %v276, %v276
        %v285 = vsel %vm235, %v277, 0.0
        %286 = vadd.xlane.f32.xlu0 %v285
        %v287 = vpop.xlane.xlu0 %286
        %v288 = vsel %vm235, %v278, 0.0
        %289 = vadd.xlane.f32.xlu0 %v288
        %v290 = vpop.xlane.xlu0 %289
        %v291 = vsel %vm235, %v279, 0.0
        %292 = vadd.xlane.f32.xlu0 %v291
        %v293 = vpop.xlane.xlu0 %292
        %v294 = vsel %vm235, %v280, 0.0
        %295 = vadd.xlane.f32.xlu0 %v294
        %v296 = vpop.xlane.xlu0 %295
        %v297 = vsel %vm235, %v281, 0.0
        %298 = vadd.xlane.f32.xlu0 %v297
        %v299 = vpop.xlane.xlu0 %298
        %v300 = vsel %vm235, %v282, 0.0
        %301 = vadd.xlane.f32.xlu0 %v300
        %v302 = vpop.xlane.xlu0 %301
        %v303 = vsel %vm235, %v283, 0.0
        %304 = vadd.xlane.f32.xlu0 %v303
        %v305 = vpop.xlane.xlu0 %304
        %v306 = vsel %vm235, %v284, 0.0
        %307 = vadd.xlane.f32.xlu0 %v306
        %v308 = vpop.xlane.xlu0 %307
        %v309 = vmul.f32 %v287, %v260
        %v310 = vmul.f32 %v290, %v260
        %v311 = vmul.f32 %v293, %v260
        %v312 = vmul.f32 %v296, %v260
        %v313 = vmul.f32 %v299, %v260
        %v314 = vmul.f32 %v302, %v260
        %v315 = vmul.f32 %v305, %v260
        %v316 = vmul.f32 %v308, %v260
        %v317 = vadd.f32 %v309, 1e-06
        %v318 = vadd.f32 %v310, 1e-06
        %v319 = vadd.f32 %v311, 1e-06
        %v320 = vadd.f32 %v312, 1e-06
        %v321 = vadd.f32 %v313, 1e-06
        %v322 = vadd.f32 %v314, 1e-06
        %v323 = vadd.f32 %v315, 1e-06
        %v324 = vadd.f32 %v316, 1e-06
        %v325 = vrsqrt.pop %v317
        %v326 = vrsqrt.pop %v318
        %v327 = vrsqrt.pop %v319
        %v328 = vrsqrt.pop %v320
        %v329 = vrsqrt.pop %v321
        %v330 = vrsqrt.pop %v322
        %v331 = vrsqrt.pop %v323
        %v332 = vrsqrt.pop %v324
        %v333 = vmul.f32 %v269, %v325
        %v334 = vmul.f32 %v270, %v326
        %v335 = vmul.f32 %v271, %v327
        %v336 = vmul.f32 %v272, %v328
        %v337 = vmul.f32 %v273, %v329
        %v338 = vmul.f32 %v274, %v330
        %v339 = vmul.f32 %v275, %v331
        %v340 = vmul.f32 %v276, %v332
        %v342 = vlaneseq
        %v343 = vshrl.u32 %v342, 7
        %v344 = vsub.s32 0, %v343
        %v345 = vrot.slane %v234, %v344
        %v347 = vmul.f32 %v333, %v345
        %v348 = vmul.f32 %v334, %v345
        %v349 = vmul.f32 %v335, %v345
        %v350 = vmul.f32 %v336, %v345
        %v351 = vmul.f32 %v337, %v345
        %v352 = vmul.f32 %v338, %v345
        %v353 = vmul.f32 %v339, %v345
        %v354 = vmul.f32 %v340, %v345
        %355 = vrot.lane.b32.xlu0 %v345, 96
        %v356 = vpop.permute.xlu0 %355
        %v358 = vadd.f32 %v347, %v356
        %v359 = vadd.f32 %v348, %v356
        %v360 = vadd.f32 %v349, %v356
        %v361 = vadd.f32 %v350, %v356
        %v362 = vadd.f32 %v351, %v356
        %v363 = vadd.f32 %v352, %v356
        %v364 = vadd.f32 %v353, %v356
        %v365 = vadd.f32 %v354, %v356
        %v366 = vld [vmem:[%s2] sm:$0xf]
        %v367 = vld [vmem:[%s2 + $0x10] sm:$0xf]
        %v368 = vld [vmem:[%s2 + $0x20] sm:$0xf]
        %v369 = vld [vmem:[%s2 + $0x30] sm:$0xf]
        %v370 = vpack.c.bf16 %v359, %v358
        %v371 = vpack.c.bf16 %v361, %v360
        %v372 = vpack.c.bf16 %v363, %v362
        %v373 = vpack.c.bf16 %v365, %v364
        %v374 = vld [vmem:[%s1 + $0x1] sm:$0x1]
        %v376 = vlaneseq
        %v377 = vshrl.u32 %v376, 7
        %v378 = vsub.s32 0, %v377
        %v379 = vrot.slane %v374, %v378
        %v385 = vunpack.c.l.b16 %v366
        %v386 = vunpack.c.l.b16 %v367
        %v387 = vunpack.c.l.b16 %v368
        %v388 = vunpack.c.l.b16 %v369
        %v389 = vpack.c.b16 %v386, %v385
        %v390 = vpack.c.b16 %v388, %v387
        %v394 = vsel %vm235, %v370, 0
        %v397 = vsel %vm235, %v371, 0
        %v400 = vsel %vm235, %v372, 0
        %v403 = vsel %vm235, %v373, 0
        %405 = vmatprep.subr.bf16.mxu0 0
        %406 = vmatpush1.bf16.msra.mxu0 %v389
        %407 = vmatprep.subr.bf16.mxu0 0
        %408 = vmatpush1.bf16.msra.mxu0 %v390
        %409 = vmatprep.subr.bf16.mxu0 0
        %410 = vmatpush1.bf16.msra.mxu0 0
        %411 = vmatprep.subr.bf16.mxu0 0
        %412 = vmatpush1.bf16.msra.mxu0 0
        %413 = vmatprep.subr.bf16.mxu0 0
        %414 = vmatpush1.bf16.msra.mxu0 0
        %415 = vmatprep.subr.bf16.mxu0 0
        %416 = vmatpush1.bf16.msra.mxu0 0
        %417 = vmatprep.subr.bf16.mxu0 0
        %418 = vmatpush1.bf16.msra.mxu0 0
        %419 = vmatprep.subr.bf16.mxu0 0
        %420 = vmatpush1.bf16.msra.mxu0 0
        %421 = vmatprep.subr.bf16.mxu0 0
        %422 = vmatpush1.bf16.msra.mxu0 0
        %423 = vmatprep.subr.bf16.mxu0 0
        %424 = vmatpush1.bf16.msra.mxu0 0
        %425 = vmatprep.subr.bf16.mxu0 0
        %426 = vmatpush1.bf16.msra.mxu0 0
        %427 = vmatprep.subr.bf16.mxu0 0
        %428 = vmatpush1.bf16.msra.mxu0 0
        %429 = vmatprep.subr.bf16.mxu0 0
        %430 = vmatpush1.bf16.msra.mxu0 0
        %431 = vmatprep.subr.bf16.mxu0 0
        %432 = vmatpush1.bf16.msra.mxu0 0
        %433 = vmatprep.subr.bf16.mxu0 0
        %434 = vmatpush1.bf16.msra.mxu0 0
        %435 = vmatprep.subr.bf16.mxu0 0
        %436 = vmatpush1.bf16.msra.mxu0 0
        %437 = vmatprep.mubr.bf16.mxu0 0
        %438 = vmatmul.mubr.bf16.gmra.mrb[0].mxu0 %v394
        %v439 = vpop.f32.mrb[0].mxu0
        %v440 = vadd.f32 %v379, %v439
        %v441 = vpop.f32.mrb[0].mxu0
        %v442 = vpop.f32.mrb[0].mxu0
        %v443 = vadd.f32 %v379, %v442
        %v444 = vpop.f32.mrb[0].mxu0
        %445 = vmatprep.mubr.bf16.mxu0 0
        %446 = vmatmul.mubr.bf16.gmra.mrb[0].mxu0 %v397
        %v447 = vpop.f32.mrb[0].mxu0
        %v448 = vadd.f32 %v379, %v447
        %v449 = vpop.f32.mrb[0].mxu0
        %v450 = vpop.f32.mrb[0].mxu0
        %v451 = vadd.f32 %v379, %v450
        %v452 = vpop.f32.mrb[0].mxu0
        %453 = vmatprep.mubr.bf16.mxu0 0
        %454 = vmatmul.mubr.bf16.gmra.mrb[0].mxu0 %v400
        %v455 = vpop.f32.mrb[0].mxu0
        %v456 = vadd.f32 %v379, %v455
        %v457 = vpop.f32.mrb[0].mxu0
        %v458 = vpop.f32.mrb[0].mxu0
        %v459 = vadd.f32 %v379, %v458
        %v460 = vpop.f32.mrb[0].mxu0
        %461 = vmatprep.mubr.bf16.mxu0 0
        %462 = vmatmul.mubr.bf16.gmra.mrb[0].mxu0 %v403
        %v463 = vpop.f32.mrb[0].mxu0
        %v464 = vadd.f32 %v379, %v463
        %v465 = vpop.f32.mrb[0].mxu0
        %v466 = vpop.f32.mrb[0].mxu0
        %v467 = vadd.f32 %v379, %v466
        %v468 = vpop.f32.mrb[0].mxu0
        %469 = vdwg.mxu0
        %v470 = vpack.c.bf16 %v440, %v440
        %v471 = vpack.c.bf16 %v443, %v443
        %v472 = vpack.c.bf16 %v448, %v448
        %v473 = vpack.c.bf16 %v451, %v451
        %v474 = vpack.c.bf16 %v456, %v456
        %v475 = vpack.c.bf16 %v459, %v459
        %v476 = vpack.c.bf16 %v464, %v464
        %v477 = vpack.c.bf16 %v467, %v467
        %479 = vrot.lane.b32.xlu0 %v470, 96
        %v480 = vpop.permute.xlu0 %479
        %vm481 = vcmask 130048
        %v483 = vsel %vm481, %v470, 0
        %v486 = vsel %vm481, %v480, 0
        %488 = vmatprep.subr.bf16.mxu0 0
        %489 = vmatpush1.bf16.xpose.msra.mxu0 %v486
        %490 = vmatprep.subr.bf16.mxu0 0
        %491 = vmatpush1.bf16.xpose.msra.mxu0 0
        %492 = vmatprep.subr.bf16.mxu0 0
        %493 = vmatpush1.bf16.xpose.msra.mxu0 0
        %494 = vmatprep.subr.bf16.mxu0 0
        %495 = vmatpush1.bf16.xpose.msra.mxu0 0
        %496 = vmatprep.subr.bf16.mxu0 0
        %497 = vmatpush1.bf16.xpose.msra.mxu0 0
        %498 = vmatprep.subr.bf16.mxu0 0
        %499 = vmatpush1.bf16.xpose.msra.mxu0 0
        %500 = vmatprep.subr.bf16.mxu0 0
        %501 = vmatpush1.bf16.xpose.msra.mxu0 0
        %502 = vmatprep.subr.bf16.mxu0 0
        %503 = vmatpush1.bf16.xpose.msra.mxu0 0
        %504 = vmatprep.subr.bf16.mxu0 0
        %505 = vmatpush1.bf16.xpose.msra.mxu0 0
        %506 = vmatprep.subr.bf16.mxu0 0
        %507 = vmatpush1.bf16.xpose.msra.mxu0 0
        %508 = vmatprep.subr.bf16.mxu0 0
        %509 = vmatpush1.bf16.xpose.msra.mxu0 0
        %510 = vmatprep.subr.bf16.mxu0 0
        %511 = vmatpush1.bf16.xpose.msra.mxu0 0
        %512 = vmatprep.subr.bf16.mxu0 0
        %513 = vmatpush1.bf16.xpose.msra.mxu0 0
        %514 = vmatprep.subr.bf16.mxu0 0
        %515 = vmatpush1.bf16.xpose.msra.mxu0 0
        %516 = vmatprep.subr.bf16.mxu0 0
        %517 = vmatpush1.bf16.xpose.msra.mxu0 0
        %518 = vmatprep.subr.bf16.mxu0 0
        %519 = vmatpush1.bf16.xpose.msra.mxu0 0
        %520 = vmatprep.mubr.bf16.mxu0 0
        %521 = vmatmul.mubr.bf16.gmra.mrb[0].mxu0 %v483
        %v522 = vpop.f32.mrb[0].mxu0
        %v523 = vadd.f32 0.0, %v522
        %v524 = vpop.f32.mrb[0].mxu0
        %v525 = vpop.f32.mrb[0].mxu0
        %v526 = vpop.f32.mrb[0].mxu0
        %527 = vdwg.mxu0
        %529 = vrot.lane.b32.xlu0 %v471, 96
        %v530 = vpop.permute.xlu0 %529
        %v532 = vsel %vm481, %v471, 0
        %v535 = vsel %vm481, %v530, 0
        %537 = vmatprep.subr.bf16.mxu0 0
        %538 = vmatpush1.bf16.xpose.msra.mxu0 %v535
        %539 = vmatprep.subr.bf16.mxu0 0
        %540 = vmatpush1.bf16.xpose.msra.mxu0 0
        %541 = vmatprep.subr.bf16.mxu0 0
        %542 = vmatpush1.bf16.xpose.msra.mxu0 0
        %543 = vmatprep.subr.bf16.mxu0 0
        %544 = vmatpush1.bf16.xpose.msra.mxu0 0
        %545 = vmatprep.subr.bf16.mxu0 0
        %546 = vmatpush1.bf16.xpose.msra.mxu0 0
        %547 = vmatprep.subr.bf16.mxu0 0
        %548 = vmatpush1.bf16.xpose.msra.mxu0 0
        %549 = vmatprep.subr.bf16.mxu0 0
        %550 = vmatpush1.bf16.xpose.msra.mxu0 0
        %551 = vmatprep.subr.bf16.mxu0 0
        %552 = vmatpush1.bf16.xpose.msra.mxu0 0
        %553 = vmatprep.subr.bf16.mxu0 0
        %554 = vmatpush1.bf16.xpose.msra.mxu0 0
        %555 = vmatprep.subr.bf16.mxu0 0
        %556 = vmatpush1.bf16.xpose.msra.mxu0 0
        %557 = vmatprep.subr.bf16.mxu0 0
        %558 = vmatpush1.bf16.xpose.msra.mxu0 0
        %559 = vmatprep.subr.bf16.mxu0 0
        %560 = vmatpush1.bf16.xpose.msra.mxu0 0
        %561 = vmatprep.subr.bf16.mxu0 0
        %562 = vmatpush1.bf16.xpose.msra.mxu0 0
        %563 = vmatprep.subr.bf16.mxu0 0
        %564 = vmatpush1.bf16.xpose.msra.mxu0 0
        %565 = vmatprep.subr.bf16.mxu0 0
        %566 = vmatpush1.bf16.xpose.msra.mxu0 0
        %567 = vmatprep.subr.bf16.mxu0 0
        %568 = vmatpush1.bf16.xpose.msra.mxu0 0
        %569 = vmatprep.mubr.bf16.mxu0 0
        %570 = vmatmul.mubr.bf16.gmra.mrb[0].mxu0 %v532
        %v571 = vpop.f32.mrb[0].mxu0
        %v572 = vadd.f32 0.0, %v571
        %v573 = vpop.f32.mrb[0].mxu0
        %v574 = vpop.f32.mrb[0].mxu0
        %v575 = vpop.f32.mrb[0].mxu0
        %576 = vdwg.mxu0
        %578 = vrot.lane.b32.xlu0 %v472, 96
        %v579 = vpop.permute.xlu0 %578
        %v581 = vsel %vm481, %v472, 0
        %v584 = vsel %vm481, %v579, 0
        %586 = vmatprep.subr.bf16.mxu0 0
        %587 = vmatpush1.bf16.xpose.msra.mxu0 %v584
        %588 = vmatprep.subr.bf16.mxu0 0
        %589 = vmatpush1.bf16.xpose.msra.mxu0 0
        %590 = vmatprep.subr.bf16.mxu0 0
        %591 = vmatpush1.bf16.xpose.msra.mxu0 0
        %592 = vmatprep.subr.bf16.mxu0 0
        %593 = vmatpush1.bf16.xpose.msra.mxu0 0
        %594 = vmatprep.subr.bf16.mxu0 0
        %595 = vmatpush1.bf16.xpose.msra.mxu0 0
        %596 = vmatprep.subr.bf16.mxu0 0
        %597 = vmatpush1.bf16.xpose.msra.mxu0 0
        %598 = vmatprep.subr.bf16.mxu0 0
        %599 = vmatpush1.bf16.xpose.msra.mxu0 0
        %600 = vmatprep.subr.bf16.mxu0 0
        %601 = vmatpush1.bf16.xpose.msra.mxu0 0
        %602 = vmatprep.subr.bf16.mxu0 0
        %603 = vmatpush1.bf16.xpose.msra.mxu0 0
        %604 = vmatprep.subr.bf16.mxu0 0
        %605 = vmatpush1.bf16.xpose.msra.mxu0 0
        %606 = vmatprep.subr.bf16.mxu0 0
        %607 = vmatpush1.bf16.xpose.msra.mxu0 0
        %608 = vmatprep.subr.bf16.mxu0 0
        %609 = vmatpush1.bf16.xpose.msra.mxu0 0
        %610 = vmatprep.subr.bf16.mxu0 0
        %611 = vmatpush1.bf16.xpose.msra.mxu0 0
        %612 = vmatprep.subr.bf16.mxu0 0
        %613 = vmatpush1.bf16.xpose.msra.mxu0 0
        %614 = vmatprep.subr.bf16.mxu0 0
        %615 = vmatpush1.bf16.xpose.msra.mxu0 0
        %616 = vmatprep.subr.bf16.mxu0 0
        %617 = vmatpush1.bf16.xpose.msra.mxu0 0
        %618 = vmatprep.mubr.bf16.mxu0 0
        %619 = vmatmul.mubr.bf16.gmra.mrb[0].mxu0 %v581
        %v620 = vpop.f32.mrb[0].mxu0
        %v621 = vadd.f32 0.0, %v620
        %v622 = vpop.f32.mrb[0].mxu0
        %v623 = vpop.f32.mrb[0].mxu0
        %v624 = vpop.f32.mrb[0].mxu0
        %625 = vdwg.mxu0
        %627 = vrot.lane.b32.xlu0 %v473, 96
        %v628 = vpop.permute.xlu0 %627
        %v630 = vsel %vm481, %v473, 0
        %v633 = vsel %vm481, %v628, 0
        %635 = vmatprep.subr.bf16.mxu0 0
        %636 = vmatpush1.bf16.xpose.msra.mxu0 %v633
        %637 = vmatprep.subr.bf16.mxu0 0
        %638 = vmatpush1.bf16.xpose.msra.mxu0 0
        %639 = vmatprep.subr.bf16.mxu0 0
        %640 = vmatpush1.bf16.xpose.msra.mxu0 0
        %641 = vmatprep.subr.bf16.mxu0 0
        %642 = vmatpush1.bf16.xpose.msra.mxu0 0
        %643 = vmatprep.subr.bf16.mxu0 0
        %644 = vmatpush1.bf16.xpose.msra.mxu0 0
        %645 = vmatprep.subr.bf16.mxu0 0
        %646 = vmatpush1.bf16.xpose.msra.mxu0 0
        %647 = vmatprep.subr.bf16.mxu0 0
        %648 = vmatpush1.bf16.xpose.msra.mxu0 0
        %649 = vmatprep.subr.bf16.mxu0 0
        %650 = vmatpush1.bf16.xpose.msra.mxu0 0
        %651 = vmatprep.subr.bf16.mxu0 0
        %652 = vmatpush1.bf16.xpose.msra.mxu0 0
        %653 = vmatprep.subr.bf16.mxu0 0
        %654 = vmatpush1.bf16.xpose.msra.mxu0 0
        %655 = vmatprep.subr.bf16.mxu0 0
        %656 = vmatpush1.bf16.xpose.msra.mxu0 0
        %657 = vmatprep.subr.bf16.mxu0 0
        %658 = vmatpush1.bf16.xpose.msra.mxu0 0
        %659 = vmatprep.subr.bf16.mxu0 0
        %660 = vmatpush1.bf16.xpose.msra.mxu0 0
        %661 = vmatprep.subr.bf16.mxu0 0
        %662 = vmatpush1.bf16.xpose.msra.mxu0 0
        %663 = vmatprep.subr.bf16.mxu0 0
        %664 = vmatpush1.bf16.xpose.msra.mxu0 0
        %665 = vmatprep.subr.bf16.mxu0 0
        %666 = vmatpush1.bf16.xpose.msra.mxu0 0
        %667 = vmatprep.mubr.bf16.mxu0 0
        %668 = vmatmul.mubr.bf16.gmra.mrb[0].mxu0 %v630
        %v669 = vpop.f32.mrb[0].mxu0
        %v670 = vadd.f32 0.0, %v669
        %v671 = vpop.f32.mrb[0].mxu0
        %v672 = vpop.f32.mrb[0].mxu0
        %v673 = vpop.f32.mrb[0].mxu0
        %674 = vdwg.mxu0
        %676 = vrot.lane.b32.xlu0 %v474, 96
        %v677 = vpop.permute.xlu0 %676
        %v679 = vsel %vm481, %v474, 0
        %v682 = vsel %vm481, %v677, 0
        %684 = vmatprep.subr.bf16.mxu0 0
        %685 = vmatpush1.bf16.xpose.msra.mxu0 %v682
        %686 = vmatprep.subr.bf16.mxu0 0
        %687 = vmatpush1.bf16.xpose.msra.mxu0 0
        %688 = vmatprep.subr.bf16.mxu0 0
        %689 = vmatpush1.bf16.xpose.msra.mxu0 0
        %690 = vmatprep.subr.bf16.mxu0 0
        %691 = vmatpush1.bf16.xpose.msra.mxu0 0
        %692 = vmatprep.subr.bf16.mxu0 0
        %693 = vmatpush1.bf16.xpose.msra.mxu0 0
        %694 = vmatprep.subr.bf16.mxu0 0
        %695 = vmatpush1.bf16.xpose.msra.mxu0 0
        %696 = vmatprep.subr.bf16.mxu0 0
        %697 = vmatpush1.bf16.xpose.msra.mxu0 0
        %698 = vmatprep.subr.bf16.mxu0 0
        %699 = vmatpush1.bf16.xpose.msra.mxu0 0
        %700 = vmatprep.subr.bf16.mxu0 0
        %701 = vmatpush1.bf16.xpose.msra.mxu0 0
        %702 = vmatprep.subr.bf16.mxu0 0
        %703 = vmatpush1.bf16.xpose.msra.mxu0 0
        %704 = vmatprep.subr.bf16.mxu0 0
        %705 = vmatpush1.bf16.xpose.msra.mxu0 0
        %706 = vmatprep.subr.bf16.mxu0 0
        %707 = vmatpush1.bf16.xpose.msra.mxu0 0
        %708 = vmatprep.subr.bf16.mxu0 0
        %709 = vmatpush1.bf16.xpose.msra.mxu0 0
        %710 = vmatprep.subr.bf16.mxu0 0
        %711 = vmatpush1.bf16.xpose.msra.mxu0 0
        %712 = vmatprep.subr.bf16.mxu0 0
        %713 = vmatpush1.bf16.xpose.msra.mxu0 0
        %714 = vmatprep.subr.bf16.mxu0 0
        %715 = vmatpush1.bf16.xpose.msra.mxu0 0
        %716 = vmatprep.mubr.bf16.mxu0 0
        %717 = vmatmul.mubr.bf16.gmra.mrb[0].mxu0 %v679
        %v718 = vpop.f32.mrb[0].mxu0
        %v719 = vadd.f32 0.0, %v718
        %v720 = vpop.f32.mrb[0].mxu0
        %v721 = vpop.f32.mrb[0].mxu0
        %v722 = vpop.f32.mrb[0].mxu0
        %723 = vdwg.mxu0
        %725 = vrot.lane.b32.xlu0 %v475, 96
        %v726 = vpop.permute.xlu0 %725
        %v728 = vsel %vm481, %v475, 0
        %v731 = vsel %vm481, %v726, 0
        %733 = vmatprep.subr.bf16.mxu0 0
        %734 = vmatpush1.bf16.xpose.msra.mxu0 %v731
        %735 = vmatprep.subr.bf16.mxu0 0
        %736 = vmatpush1.bf16.xpose.msra.mxu0 0
        %737 = vmatprep.subr.bf16.mxu0 0
        %738 = vmatpush1.bf16.xpose.msra.mxu0 0
        %739 = vmatprep.subr.bf16.mxu0 0
        %740 = vmatpush1.bf16.xpose.msra.mxu0 0
        %741 = vmatprep.subr.bf16.mxu0 0
        %742 = vmatpush1.bf16.xpose.msra.mxu0 0
        %743 = vmatprep.subr.bf16.mxu0 0
        %744 = vmatpush1.bf16.xpose.msra.mxu0 0
        %745 = vmatprep.subr.bf16.mxu0 0
        %746 = vmatpush1.bf16.xpose.msra.mxu0 0
        %747 = vmatprep.subr.bf16.mxu0 0
        %748 = vmatpush1.bf16.xpose.msra.mxu0 0
        %749 = vmatprep.subr.bf16.mxu0 0
        %750 = vmatpush1.bf16.xpose.msra.mxu0 0
        %751 = vmatprep.subr.bf16.mxu0 0
        %752 = vmatpush1.bf16.xpose.msra.mxu0 0
        %753 = vmatprep.subr.bf16.mxu0 0
        %754 = vmatpush1.bf16.xpose.msra.mxu0 0
        %755 = vmatprep.subr.bf16.mxu0 0
        %756 = vmatpush1.bf16.xpose.msra.mxu0 0
        %757 = vmatprep.subr.bf16.mxu0 0
        %758 = vmatpush1.bf16.xpose.msra.mxu0 0
        %759 = vmatprep.subr.bf16.mxu0 0
        %760 = vmatpush1.bf16.xpose.msra.mxu0 0
        %761 = vmatprep.subr.bf16.mxu0 0
        %762 = vmatpush1.bf16.xpose.msra.mxu0 0
        %763 = vmatprep.subr.bf16.mxu0 0
        %764 = vmatpush1.bf16.xpose.msra.mxu0 0
        %765 = vmatprep.mubr.bf16.mxu0 0
        %766 = vmatmul.mubr.bf16.gmra.mrb[0].mxu0 %v728
        %v767 = vpop.f32.mrb[0].mxu0
        %v768 = vadd.f32 0.0, %v767
        %v769 = vpop.f32.mrb[0].mxu0
        %v770 = vpop.f32.mrb[0].mxu0
        %v771 = vpop.f32.mrb[0].mxu0
        %772 = vdwg.mxu0
        %774 = vrot.lane.b32.xlu0 %v476, 96
        %v775 = vpop.permute.xlu0 %774
        %v777 = vsel %vm481, %v476, 0
        %v780 = vsel %vm481, %v775, 0
        %782 = vmatprep.subr.bf16.mxu0 0
        %783 = vmatpush1.bf16.xpose.msra.mxu0 %v780
        %784 = vmatprep.subr.bf16.mxu0 0
        %785 = vmatpush1.bf16.xpose.msra.mxu0 0
        %786 = vmatprep.subr.bf16.mxu0 0
        %787 = vmatpush1.bf16.xpose.msra.mxu0 0
        %788 = vmatprep.subr.bf16.mxu0 0
        %789 = vmatpush1.bf16.xpose.msra.mxu0 0
        %790 = vmatprep.subr.bf16.mxu0 0
        %791 = vmatpush1.bf16.xpose.msra.mxu0 0
        %792 = vmatprep.subr.bf16.mxu0 0
        %793 = vmatpush1.bf16.xpose.msra.mxu0 0
        %794 = vmatprep.subr.bf16.mxu0 0
        %795 = vmatpush1.bf16.xpose.msra.mxu0 0
        %796 = vmatprep.subr.bf16.mxu0 0
        %797 = vmatpush1.bf16.xpose.msra.mxu0 0
        %798 = vmatprep.subr.bf16.mxu0 0
        %799 = vmatpush1.bf16.xpose.msra.mxu0 0
        %800 = vmatprep.subr.bf16.mxu0 0
        %801 = vmatpush1.bf16.xpose.msra.mxu0 0
        %802 = vmatprep.subr.bf16.mxu0 0
        %803 = vmatpush1.bf16.xpose.msra.mxu0 0
        %804 = vmatprep.subr.bf16.mxu0 0
        %805 = vmatpush1.bf16.xpose.msra.mxu0 0
        %806 = vmatprep.subr.bf16.mxu0 0
        %807 = vmatpush1.bf16.xpose.msra.mxu0 0
        %808 = vmatprep.subr.bf16.mxu0 0
        %809 = vmatpush1.bf16.xpose.msra.mxu0 0
        %810 = vmatprep.subr.bf16.mxu0 0
        %811 = vmatpush1.bf16.xpose.msra.mxu0 0
        %812 = vmatprep.subr.bf16.mxu0 0
        %813 = vmatpush1.bf16.xpose.msra.mxu0 0
        %814 = vmatprep.mubr.bf16.mxu0 0
        %815 = vmatmul.mubr.bf16.gmra.mrb[0].mxu0 %v777
        %v816 = vpop.f32.mrb[0].mxu0
        %v817 = vadd.f32 0.0, %v816
        %v818 = vpop.f32.mrb[0].mxu0
        %v819 = vpop.f32.mrb[0].mxu0
        %v820 = vpop.f32.mrb[0].mxu0
        %821 = vdwg.mxu0
        %823 = vrot.lane.b32.xlu0 %v477, 96
        %v824 = vpop.permute.xlu0 %823
        %v826 = vsel %vm481, %v477, 0
        %v829 = vsel %vm481, %v824, 0
        %831 = vmatprep.subr.bf16.mxu0 0
        %832 = vmatpush1.bf16.xpose.msra.mxu0 %v829
        %833 = vmatprep.subr.bf16.mxu0 0
        %834 = vmatpush1.bf16.xpose.msra.mxu0 0
        %835 = vmatprep.subr.bf16.mxu0 0
        %836 = vmatpush1.bf16.xpose.msra.mxu0 0
        %837 = vmatprep.subr.bf16.mxu0 0
        %838 = vmatpush1.bf16.xpose.msra.mxu0 0
        %839 = vmatprep.subr.bf16.mxu0 0
        %840 = vmatpush1.bf16.xpose.msra.mxu0 0
        %841 = vmatprep.subr.bf16.mxu0 0
        %842 = vmatpush1.bf16.xpose.msra.mxu0 0
        %843 = vmatprep.subr.bf16.mxu0 0
        %844 = vmatpush1.bf16.xpose.msra.mxu0 0
        %845 = vmatprep.subr.bf16.mxu0 0
        %846 = vmatpush1.bf16.xpose.msra.mxu0 0
        %847 = vmatprep.subr.bf16.mxu0 0
        %848 = vmatpush1.bf16.xpose.msra.mxu0 0
        %849 = vmatprep.subr.bf16.mxu0 0
        %850 = vmatpush1.bf16.xpose.msra.mxu0 0
        %851 = vmatprep.subr.bf16.mxu0 0
        %852 = vmatpush1.bf16.xpose.msra.mxu0 0
        %853 = vmatprep.subr.bf16.mxu0 0
        %854 = vmatpush1.bf16.xpose.msra.mxu0 0
        %855 = vmatprep.subr.bf16.mxu0 0
        %856 = vmatpush1.bf16.xpose.msra.mxu0 0
        %857 = vmatprep.subr.bf16.mxu0 0
        %858 = vmatpush1.bf16.xpose.msra.mxu0 0
        %859 = vmatprep.subr.bf16.mxu0 0
        %860 = vmatpush1.bf16.xpose.msra.mxu0 0
        %861 = vmatprep.subr.bf16.mxu0 0
        %862 = vmatpush1.bf16.xpose.msra.mxu0 0
        %863 = vmatprep.mubr.bf16.mxu0 0
        %864 = vmatmul.mubr.bf16.gmra.mrb[0].mxu0 %v826
        %v865 = vpop.f32.mrb[0].mxu0
        %v866 = vadd.f32 0.0, %v865
        %v867 = vpop.f32.mrb[0].mxu0
        %v868 = vpop.f32.mrb[0].mxu0
        %v869 = vpop.f32.mrb[0].mxu0
        %870 = vdwg.mxu0
        %vm871 = vcmask 64512
        %v872 = vsel %vm871, %v523, -inf
        %873 = vmax.xlane.f32.xlu0 %v872
        %v874 = vpop.xlane.xlu0 %873
        %v875 = vsel %vm871, %v572, -inf
        %876 = vmax.xlane.f32.xlu0 %v875
        %v877 = vpop.xlane.xlu0 %876
        %v878 = vsel %vm871, %v621, -inf
        %879 = vmax.xlane.f32.xlu0 %v878
        %v880 = vpop.xlane.xlu0 %879
        %v881 = vsel %vm871, %v670, -inf
        %882 = vmax.xlane.f32.xlu0 %v881
        %v883 = vpop.xlane.xlu0 %882
        %v884 = vsel %vm871, %v719, -inf
        %885 = vmax.xlane.f32.xlu0 %v884
        %v886 = vpop.xlane.xlu0 %885
        %v887 = vsel %vm871, %v768, -inf
        %888 = vmax.xlane.f32.xlu0 %v887
        %v889 = vpop.xlane.xlu0 %888
        %v890 = vsel %vm871, %v817, -inf
        %891 = vmax.xlane.f32.xlu0 %v890
        %v892 = vpop.xlane.xlu0 %891
        %v893 = vsel %vm871, %v866, -inf
        %894 = vmax.xlane.f32.xlu0 %v893
        %v895 = vpop.xlane.xlu0 %894
        %v896 = vsub.f32 %v523, %v874
        %v897 = vsub.f32 %v572, %v877
        %v898 = vsub.f32 %v621, %v880
        %v899 = vsub.f32 %v670, %v883
        %v900 = vsub.f32 %v719, %v886
        %v901 = vsub.f32 %v768, %v889
        %v902 = vsub.f32 %v817, %v892
        %v903 = vsub.f32 %v866, %v895
        %v904 = vmul.f32 %v896, 1.442695
        %v905 = vpow.pop %v904
        %v906 = vmul.f32 %v897, 1.442695
        %v907 = vpow.pop %v906
        %v908 = vmul.f32 %v898, 1.442695
        %v909 = vpow.pop %v908
        %v910 = vmul.f32 %v899, 1.442695
        %v911 = vpow.pop %v910
        %v912 = vmul.f32 %v900, 1.442695
        %v913 = vpow.pop %v912
        %v914 = vmul.f32 %v901, 1.442695
        %v915 = vpow.pop %v914
        %v916 = vmul.f32 %v902, 1.442695
        %v917 = vpow.pop %v916
        %v918 = vmul.f32 %v903, 1.442695
        %v919 = vpow.pop %v918
        %v920 = vsel %vm871, %v905, 0.0
        %921 = vadd.xlane.f32.xlu0 %v920
        %v922 = vpop.xlane.xlu0 %921
        %v923 = vsel %vm871, %v907, 0.0
        %924 = vadd.xlane.f32.xlu0 %v923
        %v925 = vpop.xlane.xlu0 %924
        %v926 = vsel %vm871, %v909, 0.0
        %927 = vadd.xlane.f32.xlu0 %v926
        %v928 = vpop.xlane.xlu0 %927
        %v929 = vsel %vm871, %v911, 0.0
        %930 = vadd.xlane.f32.xlu0 %v929
        %v931 = vpop.xlane.xlu0 %930
        %v932 = vsel %vm871, %v913, 0.0
        %933 = vadd.xlane.f32.xlu0 %v932
        %v934 = vpop.xlane.xlu0 %933
        %v935 = vsel %vm871, %v915, 0.0
        %936 = vadd.xlane.f32.xlu0 %v935
        %v937 = vpop.xlane.xlu0 %936
        %v938 = vsel %vm871, %v917, 0.0
        %939 = vadd.xlane.f32.xlu0 %v938
        %v940 = vpop.xlane.xlu0 %939
        %v941 = vsel %vm871, %v919, 0.0
        %942 = vadd.xlane.f32.xlu0 %v941
        %v943 = vpop.xlane.xlu0 %942
        %v944 = vrcp.pop %v922
        %v945 = vmul.f32 %v905, %v944
        %v946 = vrcp.pop %v925
        %v947 = vmul.f32 %v907, %v946
        %v948 = vrcp.pop %v928
        %v949 = vmul.f32 %v909, %v948
        %v950 = vrcp.pop %v931
        %v951 = vmul.f32 %v911, %v950
        %v952 = vrcp.pop %v934
        %v953 = vmul.f32 %v913, %v952
        %v954 = vrcp.pop %v937
        %v955 = vmul.f32 %v915, %v954
        %v956 = vrcp.pop %v940
        %v957 = vmul.f32 %v917, %v956
        %v958 = vrcp.pop %v943
        %v959 = vmul.f32 %v919, %v958
        %v960 = vpack.c.bf16 %v945, %v945
        %v961 = vpack.c.bf16 %v947, %v947
        %v962 = vpack.c.bf16 %v949, %v949
        %v963 = vpack.c.bf16 %v951, %v951
        %v964 = vpack.c.bf16 %v953, %v953
        %v965 = vpack.c.bf16 %v955, %v955
        %v966 = vpack.c.bf16 %v957, %v957
        %v967 = vpack.c.bf16 %v959, %v959
        %968 = vrot.lane.b32.xlu0 %v470, 64
        %v969 = vpop.permute.xlu0 %968
        %v971 = vsel %vm871, %v960, 0
        %vm973 = vcmask 1043456
        %v975 = vsel %vm973, %v969, 0
        %977 = vmatprep.subr.bf16.mxu0 0
        %978 = vmatpush1.bf16.msra.mxu0 %v975
        %979 = vmatprep.subr.bf16.mxu0 0
        %980 = vmatpush1.bf16.msra.mxu0 0
        %981 = vmatprep.subr.bf16.mxu0 0
        %982 = vmatpush1.bf16.msra.mxu0 0
        %983 = vmatprep.subr.bf16.mxu0 0
        %984 = vmatpush1.bf16.msra.mxu0 0
        %985 = vmatprep.subr.bf16.mxu0 0
        %986 = vmatpush1.bf16.msra.mxu0 0
        %987 = vmatprep.subr.bf16.mxu0 0
        %988 = vmatpush1.bf16.msra.mxu0 0
        %989 = vmatprep.subr.bf16.mxu0 0
        %990 = vmatpush1.bf16.msra.mxu0 0
        %991 = vmatprep.subr.bf16.mxu0 0
        %992 = vmatpush1.bf16.msra.mxu0 0
        %993 = vmatprep.subr.bf16.mxu0 0
        %994 = vmatpush1.bf16.msra.mxu0 0
        %995 = vmatprep.subr.bf16.mxu0 0
        %996 = vmatpush1.bf16.msra.mxu0 0
        %997 = vmatprep.subr.bf16.mxu0 0
        %998 = vmatpush1.bf16.msra.mxu0 0
        %999 = vmatprep.subr.bf16.mxu0 0
        %1000 = vmatpush1.bf16.msra.mxu0 0
        %1001 = vmatprep.subr.bf16.mxu0 0
        %1002 = vmatpush1.bf16.msra.mxu0 0
        %1003 = vmatprep.subr.bf16.mxu0 0
        %1004 = vmatpush1.bf16.msra.mxu0 0
        %1005 = vmatprep.subr.bf16.mxu0 0
        %1006 = vmatpush1.bf16.msra.mxu0 0
        %1007 = vmatprep.subr.bf16.mxu0 0
        %1008 = vmatpush1.bf16.msra.mxu0 0
        %1009 = vmatprep.mubr.bf16.mxu0 0
        %1010 = vmatmul.mubr.bf16.gmra.mrb[0].mxu0 %v971
        %v1011 = vpop.f32.mrb[0].mxu0
        %v1012 = vadd.f32 0.0, %v1011
        %v1013 = vpop.f32.mrb[0].mxu0
        %v1014 = vpop.f32.mrb[0].mxu0
        %v1015 = vpop.f32.mrb[0].mxu0
        %1016 = vdwg.mxu0
        %1017 = vrot.lane.b32.xlu0 %v471, 64
        %v1018 = vpop.permute.xlu0 %1017
        %v1020 = vsel %vm871, %v961, 0
        %v1023 = vsel %vm973, %v1018, 0
        %1025 = vmatprep.subr.bf16.mxu0 0
        %1026 = vmatpush1.bf16.msra.mxu0 %v1023
        %1027 = vmatprep.subr.bf16.mxu0 0
        %1028 = vmatpush1.bf16.msra.mxu0 0
        %1029 = vmatprep.subr.bf16.mxu0 0
        %1030 = vmatpush1.bf16.msra.mxu0 0
        %1031 = vmatprep.subr.bf16.mxu0 0
        %1032 = vmatpush1.bf16.msra.mxu0 0
        %1033 = vmatprep.subr.bf16.mxu0 0
        %1034 = vmatpush1.bf16.msra.mxu0 0
        %1035 = vmatprep.subr.bf16.mxu0 0
        %1036 = vmatpush1.bf16.msra.mxu0 0
        %1037 = vmatprep.subr.bf16.mxu0 0
        %1038 = vmatpush1.bf16.msra.mxu0 0
        %1039 = vmatprep.subr.bf16.mxu0 0
        %1040 = vmatpush1.bf16.msra.mxu0 0
        %1041 = vmatprep.subr.bf16.mxu0 0
        %1042 = vmatpush1.bf16.msra.mxu0 0
        %1043 = vmatprep.subr.bf16.mxu0 0
        %1044 = vmatpush1.bf16.msra.mxu0 0
        %1045 = vmatprep.subr.bf16.mxu0 0
        %1046 = vmatpush1.bf16.msra.mxu0 0
        %1047 = vmatprep.subr.bf16.mxu0 0
        %1048 = vmatpush1.bf16.msra.mxu0 0
        %1049 = vmatprep.subr.bf16.mxu0 0
        %1050 = vmatpush1.bf16.msra.mxu0 0
        %1051 = vmatprep.subr.bf16.mxu0 0
        %1052 = vmatpush1.bf16.msra.mxu0 0
        %1053 = vmatprep.subr.bf16.mxu0 0
        %1054 = vmatpush1.bf16.msra.mxu0 0
        %1055 = vmatprep.subr.bf16.mxu0 0
        %1056 = vmatpush1.bf16.msra.mxu0 0
        %1057 = vmatprep.mubr.bf16.mxu0 0
        %1058 = vmatmul.mubr.bf16.gmra.mrb[0].mxu0 %v1020
        %v1059 = vpop.f32.mrb[0].mxu0
        %v1060 = vadd.f32 0.0, %v1059
        %v1061 = vpop.f32.mrb[0].mxu0
        %v1062 = vpop.f32.mrb[0].mxu0
        %v1063 = vpop.f32.mrb[0].mxu0
        %1064 = vdwg.mxu0
        %1065 = vrot.lane.b32.xlu0 %v472, 64
        %v1066 = vpop.permute.xlu0 %1065
        %v1068 = vsel %vm871, %v962, 0
        %v1071 = vsel %vm973, %v1066, 0
        %1073 = vmatprep.subr.bf16.mxu0 0
        %1074 = vmatpush1.bf16.msra.mxu0 %v1071
        %1075 = vmatprep.subr.bf16.mxu0 0
        %1076 = vmatpush1.bf16.msra.mxu0 0
        %1077 = vmatprep.subr.bf16.mxu0 0
        %1078 = vmatpush1.bf16.msra.mxu0 0
        %1079 = vmatprep.subr.bf16.mxu0 0
        %1080 = vmatpush1.bf16.msra.mxu0 0
        %1081 = vmatprep.subr.bf16.mxu0 0
        %1082 = vmatpush1.bf16.msra.mxu0 0
        %1083 = vmatprep.subr.bf16.mxu0 0
        %1084 = vmatpush1.bf16.msra.mxu0 0
        %1085 = vmatprep.subr.bf16.mxu0 0
        %1086 = vmatpush1.bf16.msra.mxu0 0
        %1087 = vmatprep.subr.bf16.mxu0 0
        %1088 = vmatpush1.bf16.msra.mxu0 0
        %1089 = vmatprep.subr.bf16.mxu0 0
        %1090 = vmatpush1.bf16.msra.mxu0 0
        %1091 = vmatprep.subr.bf16.mxu0 0
        %1092 = vmatpush1.bf16.msra.mxu0 0
        %1093 = vmatprep.subr.bf16.mxu0 0
        %1094 = vmatpush1.bf16.msra.mxu0 0
        %1095 = vmatprep.subr.bf16.mxu0 0
        %1096 = vmatpush1.bf16.msra.mxu0 0
        %1097 = vmatprep.subr.bf16.mxu0 0
        %1098 = vmatpush1.bf16.msra.mxu0 0
        %1099 = vmatprep.subr.bf16.mxu0 0
        %1100 = vmatpush1.bf16.msra.mxu0 0
        %1101 = vmatprep.subr.bf16.mxu0 0
        %1102 = vmatpush1.bf16.msra.mxu0 0
        %1103 = vmatprep.subr.bf16.mxu0 0
        %1104 = vmatpush1.bf16.msra.mxu0 0
        %1105 = vmatprep.mubr.bf16.mxu0 0
        %1106 = vmatmul.mubr.bf16.gmra.mrb[0].mxu0 %v1068
        %v1107 = vpop.f32.mrb[0].mxu0
        %v1108 = vadd.f32 0.0, %v1107
        %v1109 = vpop.f32.mrb[0].mxu0
        %v1110 = vpop.f32.mrb[0].mxu0
        %v1111 = vpop.f32.mrb[0].mxu0
        %1112 = vdwg.mxu0
        %1113 = vrot.lane.b32.xlu0 %v473, 64
        %v1114 = vpop.permute.xlu0 %1113
        %v1116 = vsel %vm871, %v963, 0
        %v1119 = vsel %vm973, %v1114, 0
        %1121 = vmatprep.subr.bf16.mxu0 0
        %1122 = vmatpush1.bf16.msra.mxu0 %v1119
        %1123 = vmatprep.subr.bf16.mxu0 0
        %1124 = vmatpush1.bf16.msra.mxu0 0
        %1125 = vmatprep.subr.bf16.mxu0 0
        %1126 = vmatpush1.bf16.msra.mxu0 0
        %1127 = vmatprep.subr.bf16.mxu0 0
        %1128 = vmatpush1.bf16.msra.mxu0 0
        %1129 = vmatprep.subr.bf16.mxu0 0
        %1130 = vmatpush1.bf16.msra.mxu0 0
        %1131 = vmatprep.subr.bf16.mxu0 0
        %1132 = vmatpush1.bf16.msra.mxu0 0
        %1133 = vmatprep.subr.bf16.mxu0 0
        %1134 = vmatpush1.bf16.msra.mxu0 0
        %1135 = vmatprep.subr.bf16.mxu0 0
        %1136 = vmatpush1.bf16.msra.mxu0 0
        %1137 = vmatprep.subr.bf16.mxu0 0
        %1138 = vmatpush1.bf16.msra.mxu0 0
        %1139 = vmatprep.subr.bf16.mxu0 0
        %1140 = vmatpush1.bf16.msra.mxu0 0
        %1141 = vmatprep.subr.bf16.mxu0 0
        %1142 = vmatpush1.bf16.msra.mxu0 0
        %1143 = vmatprep.subr.bf16.mxu0 0
        %1144 = vmatpush1.bf16.msra.mxu0 0
        %1145 = vmatprep.subr.bf16.mxu0 0
        %1146 = vmatpush1.bf16.msra.mxu0 0
        %1147 = vmatprep.subr.bf16.mxu0 0
        %1148 = vmatpush1.bf16.msra.mxu0 0
        %1149 = vmatprep.subr.bf16.mxu0 0
        %1150 = vmatpush1.bf16.msra.mxu0 0
        %1151 = vmatprep.subr.bf16.mxu0 0
        %1152 = vmatpush1.bf16.msra.mxu0 0
        %1153 = vmatprep.mubr.bf16.mxu0 0
        %1154 = vmatmul.mubr.bf16.gmra.mrb[0].mxu0 %v1116
        %v1155 = vpop.f32.mrb[0].mxu0
        %v1156 = vadd.f32 0.0, %v1155
        %v1157 = vpop.f32.mrb[0].mxu0
        %v1158 = vpop.f32.mrb[0].mxu0
        %v1159 = vpop.f32.mrb[0].mxu0
        %1160 = vdwg.mxu0
        %1161 = vrot.lane.b32.xlu0 %v474, 64
        %v1162 = vpop.permute.xlu0 %1161
        %v1164 = vsel %vm871, %v964, 0
        %v1167 = vsel %vm973, %v1162, 0
        %1169 = vmatprep.subr.bf16.mxu0 0
        %1170 = vmatpush1.bf16.msra.mxu0 %v1167
        %1171 = vmatprep.subr.bf16.mxu0 0
        %1172 = vmatpush1.bf16.msra.mxu0 0
        %1173 = vmatprep.subr.bf16.mxu0 0
        %1174 = vmatpush1.bf16.msra.mxu0 0
        %1175 = vmatprep.subr.bf16.mxu0 0
        %1176 = vmatpush1.bf16.msra.mxu0 0
        %1177 = vmatprep.subr.bf16.mxu0 0
        %1178 = vmatpush1.bf16.msra.mxu0 0
        %1179 = vmatprep.subr.bf16.mxu0 0
        %1180 = vmatpush1.bf16.msra.mxu0 0
        %1181 = vmatprep.subr.bf16.mxu0 0
        %1182 = vmatpush1.bf16.msra.mxu0 0
        %1183 = vmatprep.subr.bf16.mxu0 0
        %1184 = vmatpush1.bf16.msra.mxu0 0
        %1185 = vmatprep.subr.bf16.mxu0 0
        %1186 = vmatpush1.bf16.msra.mxu0 0
        %1187 = vmatprep.subr.bf16.mxu0 0
        %1188 = vmatpush1.bf16.msra.mxu0 0
        %1189 = vmatprep.subr.bf16.mxu0 0
        %1190 = vmatpush1.bf16.msra.mxu0 0
        %1191 = vmatprep.subr.bf16.mxu0 0
        %1192 = vmatpush1.bf16.msra.mxu0 0
        %1193 = vmatprep.subr.bf16.mxu0 0
        %1194 = vmatpush1.bf16.msra.mxu0 0
        %1195 = vmatprep.subr.bf16.mxu0 0
        %1196 = vmatpush1.bf16.msra.mxu0 0
        %1197 = vmatprep.subr.bf16.mxu0 0
        %1198 = vmatpush1.bf16.msra.mxu0 0
        %1199 = vmatprep.subr.bf16.mxu0 0
        %1200 = vmatpush1.bf16.msra.mxu0 0
        %1201 = vmatprep.mubr.bf16.mxu0 0
        %1202 = vmatmul.mubr.bf16.gmra.mrb[0].mxu0 %v1164
        %v1203 = vpop.f32.mrb[0].mxu0
        %v1204 = vadd.f32 0.0, %v1203
        %v1205 = vpop.f32.mrb[0].mxu0
        %v1206 = vpop.f32.mrb[0].mxu0
        %v1207 = vpop.f32.mrb[0].mxu0
        %1208 = vdwg.mxu0
        %1209 = vrot.lane.b32.xlu0 %v475, 64
        %v1210 = vpop.permute.xlu0 %1209
        %v1212 = vsel %vm871, %v965, 0
        %v1215 = vsel %vm973, %v1210, 0
        %1217 = vmatprep.subr.bf16.mxu0 0
        %1218 = vmatpush1.bf16.msra.mxu0 %v1215
        %1219 = vmatprep.subr.bf16.mxu0 0
        %1220 = vmatpush1.bf16.msra.mxu0 0
        %1221 = vmatprep.subr.bf16.mxu0 0
        %1222 = vmatpush1.bf16.msra.mxu0 0
        %1223 = vmatprep.subr.bf16.mxu0 0
        %1224 = vmatpush1.bf16.msra.mxu0 0
        %1225 = vmatprep.subr.bf16.mxu0 0
        %1226 = vmatpush1.bf16.msra.mxu0 0
        %1227 = vmatprep.subr.bf16.mxu0 0
        %1228 = vmatpush1.bf16.msra.mxu0 0
        %1229 = vmatprep.subr.bf16.mxu0 0
        %1230 = vmatpush1.bf16.msra.mxu0 0
        %1231 = vmatprep.subr.bf16.mxu0 0
        %1232 = vmatpush1.bf16.msra.mxu0 0
        %1233 = vmatprep.subr.bf16.mxu0 0
        %1234 = vmatpush1.bf16.msra.mxu0 0
        %1235 = vmatprep.subr.bf16.mxu0 0
        %1236 = vmatpush1.bf16.msra.mxu0 0
        %1237 = vmatprep.subr.bf16.mxu0 0
        %1238 = vmatpush1.bf16.msra.mxu0 0
        %1239 = vmatprep.subr.bf16.mxu0 0
        %1240 = vmatpush1.bf16.msra.mxu0 0
        %1241 = vmatprep.subr.bf16.mxu0 0
        %1242 = vmatpush1.bf16.msra.mxu0 0
        %1243 = vmatprep.subr.bf16.mxu0 0
        %1244 = vmatpush1.bf16.msra.mxu0 0
        %1245 = vmatprep.subr.bf16.mxu0 0
        %1246 = vmatpush1.bf16.msra.mxu0 0
        %1247 = vmatprep.subr.bf16.mxu0 0
        %1248 = vmatpush1.bf16.msra.mxu0 0
        %1249 = vmatprep.mubr.bf16.mxu0 0
        %1250 = vmatmul.mubr.bf16.gmra.mrb[0].mxu0 %v1212
        %v1251 = vpop.f32.mrb[0].mxu0
        %v1252 = vadd.f32 0.0, %v1251
        %v1253 = vpop.f32.mrb[0].mxu0
        %v1254 = vpop.f32.mrb[0].mxu0
        %v1255 = vpop.f32.mrb[0].mxu0
        %1256 = vdwg.mxu0
        %1257 = vrot.lane.b32.xlu0 %v476, 64
        %v1258 = vpop.permute.xlu0 %1257
        %v1260 = vsel %vm871, %v966, 0
        %v1263 = vsel %vm973, %v1258, 0
        %1265 = vmatprep.subr.bf16.mxu0 0
        %1266 = vmatpush1.bf16.msra.mxu0 %v1263
        %1267 = vmatprep.subr.bf16.mxu0 0
        %1268 = vmatpush1.bf16.msra.mxu0 0
        %1269 = vmatprep.subr.bf16.mxu0 0
        %1270 = vmatpush1.bf16.msra.mxu0 0
        %1271 = vmatprep.subr.bf16.mxu0 0
        %1272 = vmatpush1.bf16.msra.mxu0 0
        %1273 = vmatprep.subr.bf16.mxu0 0
        %1274 = vmatpush1.bf16.msra.mxu0 0
        %1275 = vmatprep.subr.bf16.mxu0 0
        %1276 = vmatpush1.bf16.msra.mxu0 0
        %1277 = vmatprep.subr.bf16.mxu0 0
        %1278 = vmatpush1.bf16.msra.mxu0 0
        %1279 = vmatprep.subr.bf16.mxu0 0
        %1280 = vmatpush1.bf16.msra.mxu0 0
        %1281 = vmatprep.subr.bf16.mxu0 0
        %1282 = vmatpush1.bf16.msra.mxu0 0
        %1283 = vmatprep.subr.bf16.mxu0 0
        %1284 = vmatpush1.bf16.msra.mxu0 0
        %1285 = vmatprep.subr.bf16.mxu0 0
        %1286 = vmatpush1.bf16.msra.mxu0 0
        %1287 = vmatprep.subr.bf16.mxu0 0
        %1288 = vmatpush1.bf16.msra.mxu0 0
        %1289 = vmatprep.subr.bf16.mxu0 0
        %1290 = vmatpush1.bf16.msra.mxu0 0
        %1291 = vmatprep.subr.bf16.mxu0 0
        %1292 = vmatpush1.bf16.msra.mxu0 0
        %1293 = vmatprep.subr.bf16.mxu0 0
        %1294 = vmatpush1.bf16.msra.mxu0 0
        %1295 = vmatprep.subr.bf16.mxu0 0
        %1296 = vmatpush1.bf16.msra.mxu0 0
        %1297 = vmatprep.mubr.bf16.mxu0 0
        %1298 = vmatmul.mubr.bf16.gmra.mrb[0].mxu0 %v1260
        %v1299 = vpop.f32.mrb[0].mxu0
        %v1300 = vadd.f32 0.0, %v1299
        %v1301 = vpop.f32.mrb[0].mxu0
        %v1302 = vpop.f32.mrb[0].mxu0
        %v1303 = vpop.f32.mrb[0].mxu0
        %1304 = vdwg.mxu0
        %1305 = vrot.lane.b32.xlu0 %v477, 64
        %v1306 = vpop.permute.xlu0 %1305
        %v1308 = vsel %vm871, %v967, 0
        %v1311 = vsel %vm973, %v1306, 0
        %1313 = vmatprep.subr.bf16.mxu0 0
        %1314 = vmatpush1.bf16.msra.mxu0 %v1311
        %1315 = vmatprep.subr.bf16.mxu0 0
        %1316 = vmatpush1.bf16.msra.mxu0 0
        %1317 = vmatprep.subr.bf16.mxu0 0
        %1318 = vmatpush1.bf16.msra.mxu0 0
        %1319 = vmatprep.subr.bf16.mxu0 0
        %1320 = vmatpush1.bf16.msra.mxu0 0
        %1321 = vmatprep.subr.bf16.mxu0 0
        %1322 = vmatpush1.bf16.msra.mxu0 0
        %1323 = vmatprep.subr.bf16.mxu0 0
        %1324 = vmatpush1.bf16.msra.mxu0 0
        %1325 = vmatprep.subr.bf16.mxu0 0
        %1326 = vmatpush1.bf16.msra.mxu0 0
        %1327 = vmatprep.subr.bf16.mxu0 0
        %1328 = vmatpush1.bf16.msra.mxu0 0
        %1329 = vmatprep.subr.bf16.mxu0 0
        %1330 = vmatpush1.bf16.msra.mxu0 0
        %1331 = vmatprep.subr.bf16.mxu0 0
        %1332 = vmatpush1.bf16.msra.mxu0 0
        %1333 = vmatprep.subr.bf16.mxu0 0
        %1334 = vmatpush1.bf16.msra.mxu0 0
        %1335 = vmatprep.subr.bf16.mxu0 0
        %1336 = vmatpush1.bf16.msra.mxu0 0
        %1337 = vmatprep.subr.bf16.mxu0 0
        %1338 = vmatpush1.bf16.msra.mxu0 0
        %1339 = vmatprep.subr.bf16.mxu0 0
        %1340 = vmatpush1.bf16.msra.mxu0 0
        %1341 = vmatprep.subr.bf16.mxu0 0
        %1342 = vmatpush1.bf16.msra.mxu0 0
        %1343 = vmatprep.subr.bf16.mxu0 0
        %1344 = vmatpush1.bf16.msra.mxu0 0
        %1345 = vmatprep.mubr.bf16.mxu0 0
        %1346 = vmatmul.mubr.bf16.gmra.mrb[0].mxu0 %v1308
        %v1347 = vpop.f32.mrb[0].mxu0
        %v1348 = vadd.f32 0.0, %v1347
        %v1349 = vpop.f32.mrb[0].mxu0
        %v1350 = vpop.f32.mrb[0].mxu0
        %v1351 = vpop.f32.mrb[0].mxu0
        %1352 = vdwg.mxu0
        %1353 = vrot.lane.b32.xlu0 %v470, 112
        %v1354 = vpop.permute.xlu0 %1353
        %1355 = vrot.lane.b32.xlu0 %v470, 80
        %v1356 = vpop.permute.xlu0 %1355
        %v1358 = vsel %vm481, %v1354, 0
        %v1361 = vsel %vm481, %v1356, 0
        %1363 = vmatprep.subr.bf16.mxu0 0
        %1364 = vmatpush1.bf16.xpose.msra.mxu0 %v1361
        %1365 = vmatprep.subr.bf16.mxu0 0
        %1366 = vmatpush1.bf16.xpose.msra.mxu0 0
        %1367 = vmatprep.subr.bf16.mxu0 0
        %1368 = vmatpush1.bf16.xpose.msra.mxu0 0
        %1369 = vmatprep.subr.bf16.mxu0 0
        %1370 = vmatpush1.bf16.xpose.msra.mxu0 0
        %1371 = vmatprep.subr.bf16.mxu0 0
        %1372 = vmatpush1.bf16.xpose.msra.mxu0 0
        %1373 = vmatprep.subr.bf16.mxu0 0
        %1374 = vmatpush1.bf16.xpose.msra.mxu0 0
        %1375 = vmatprep.subr.bf16.mxu0 0
        %1376 = vmatpush1.bf16.xpose.msra.mxu0 0
        %1377 = vmatprep.subr.bf16.mxu0 0
        %1378 = vmatpush1.bf16.xpose.msra.mxu0 0
        %1379 = vmatprep.subr.bf16.mxu0 0
        %1380 = vmatpush1.bf16.xpose.msra.mxu0 0
        %1381 = vmatprep.subr.bf16.mxu0 0
        %1382 = vmatpush1.bf16.xpose.msra.mxu0 0
        %1383 = vmatprep.subr.bf16.mxu0 0
        %1384 = vmatpush1.bf16.xpose.msra.mxu0 0
        %1385 = vmatprep.subr.bf16.mxu0 0
        %1386 = vmatpush1.bf16.xpose.msra.mxu0 0
        %1387 = vmatprep.subr.bf16.mxu0 0
        %1388 = vmatpush1.bf16.xpose.msra.mxu0 0
        %1389 = vmatprep.subr.bf16.mxu0 0
        %1390 = vmatpush1.bf16.xpose.msra.mxu0 0
        %1391 = vmatprep.subr.bf16.mxu0 0
        %1392 = vmatpush1.bf16.xpose.msra.mxu0 0
        %1393 = vmatprep.subr.bf16.mxu0 0
        %1394 = vmatpush1.bf16.xpose.msra.mxu0 0
        %1395 = vmatprep.mubr.bf16.mxu0 0
        %1396 = vmatmul.mubr.bf16.gmra.mrb[0].mxu0 %v1358
        %v1397 = vpop.f32.mrb[0].mxu0
        %v1398 = vadd.f32 0.0, %v1397
        %v1399 = vpop.f32.mrb[0].mxu0
        %v1400 = vpop.f32.mrb[0].mxu0
        %v1401 = vpop.f32.mrb[0].mxu0
        %1402 = vdwg.mxu0
        %1403 = vrot.lane.b32.xlu0 %v471, 112
        %v1404 = vpop.permute.xlu0 %1403
        %1405 = vrot.lane.b32.xlu0 %v471, 80
        %v1406 = vpop.permute.xlu0 %1405
        %v1408 = vsel %vm481, %v1404, 0
        %v1411 = vsel %vm481, %v1406, 0
        %1413 = vmatprep.subr.bf16.mxu0 0
        %1414 = vmatpush1.bf16.xpose.msra.mxu0 %v1411
        %1415 = vmatprep.subr.bf16.mxu0 0
        %1416 = vmatpush1.bf16.xpose.msra.mxu0 0
        %1417 = vmatprep.subr.bf16.mxu0 0
        %1418 = vmatpush1.bf16.xpose.msra.mxu0 0
        %1419 = vmatprep.subr.bf16.mxu0 0
        %1420 = vmatpush1.bf16.xpose.msra.mxu0 0
        %1421 = vmatprep.subr.bf16.mxu0 0
        %1422 = vmatpush1.bf16.xpose.msra.mxu0 0
        %1423 = vmatprep.subr.bf16.mxu0 0
        %1424 = vmatpush1.bf16.xpose.msra.mxu0 0
        %1425 = vmatprep.subr.bf16.mxu0 0
        %1426 = vmatpush1.bf16.xpose.msra.mxu0 0
        %1427 = vmatprep.subr.bf16.mxu0 0
        %1428 = vmatpush1.bf16.xpose.msra.mxu0 0
        %1429 = vmatprep.subr.bf16.mxu0 0
        %1430 = vmatpush1.bf16.xpose.msra.mxu0 0
        %1431 = vmatprep.subr.bf16.mxu0 0
        %1432 = vmatpush1.bf16.xpose.msra.mxu0 0
        %1433 = vmatprep.subr.bf16.mxu0 0
        %1434 = vmatpush1.bf16.xpose.msra.mxu0 0
        %1435 = vmatprep.subr.bf16.mxu0 0
        %1436 = vmatpush1.bf16.xpose.msra.mxu0 0
        %1437 = vmatprep.subr.bf16.mxu0 0
        %1438 = vmatpush1.bf16.xpose.msra.mxu0 0
        %1439 = vmatprep.subr.bf16.mxu0 0
        %1440 = vmatpush1.bf16.xpose.msra.mxu0 0
        %1441 = vmatprep.subr.bf16.mxu0 0
        %1442 = vmatpush1.bf16.xpose.msra.mxu0 0
        %1443 = vmatprep.subr.bf16.mxu0 0
        %1444 = vmatpush1.bf16.xpose.msra.mxu0 0
        %1445 = vmatprep.mubr.bf16.mxu0 0
        %1446 = vmatmul.mubr.bf16.gmra.mrb[0].mxu0 %v1408
        %v1447 = vpop.f32.mrb[0].mxu0
        %v1448 = vadd.f32 0.0, %v1447
        %v1449 = vpop.f32.mrb[0].mxu0
        %v1450 = vpop.f32.mrb[0].mxu0
        %v1451 = vpop.f32.mrb[0].mxu0
        %1452 = vdwg.mxu0
        %1453 = vrot.lane.b32.xlu0 %v472, 112
        %v1454 = vpop.permute.xlu0 %1453
        %1455 = vrot.lane.b32.xlu0 %v472, 80
        %v1456 = vpop.permute.xlu0 %1455
        %v1458 = vsel %vm481, %v1454, 0
        %v1461 = vsel %vm481, %v1456, 0
        %1463 = vmatprep.subr.bf16.mxu0 0
        %1464 = vmatpush1.bf16.xpose.msra.mxu0 %v1461
        %1465 = vmatprep.subr.bf16.mxu0 0
        %1466 = vmatpush1.bf16.xpose.msra.mxu0 0
        %1467 = vmatprep.subr.bf16.mxu0 0
        %1468 = vmatpush1.bf16.xpose.msra.mxu0 0
        %1469 = vmatprep.subr.bf16.mxu0 0
        %1470 = vmatpush1.bf16.xpose.msra.mxu0 0
        %1471 = vmatprep.subr.bf16.mxu0 0
        %1472 = vmatpush1.bf16.xpose.msra.mxu0 0
        %1473 = vmatprep.subr.bf16.mxu0 0
        %1474 = vmatpush1.bf16.xpose.msra.mxu0 0
        %1475 = vmatprep.subr.bf16.mxu0 0
        %1476 = vmatpush1.bf16.xpose.msra.mxu0 0
        %1477 = vmatprep.subr.bf16.mxu0 0
        %1478 = vmatpush1.bf16.xpose.msra.mxu0 0
        %1479 = vmatprep.subr.bf16.mxu0 0
        %1480 = vmatpush1.bf16.xpose.msra.mxu0 0
        %1481 = vmatprep.subr.bf16.mxu0 0
        %1482 = vmatpush1.bf16.xpose.msra.mxu0 0
        %1483 = vmatprep.subr.bf16.mxu0 0
        %1484 = vmatpush1.bf16.xpose.msra.mxu0 0
        %1485 = vmatprep.subr.bf16.mxu0 0
        %1486 = vmatpush1.bf16.xpose.msra.mxu0 0
        %1487 = vmatprep.subr.bf16.mxu0 0
        %1488 = vmatpush1.bf16.xpose.msra.mxu0 0
        %1489 = vmatprep.subr.bf16.mxu0 0
        %1490 = vmatpush1.bf16.xpose.msra.mxu0 0
        %1491 = vmatprep.subr.bf16.mxu0 0
        %1492 = vmatpush1.bf16.xpose.msra.mxu0 0
        %1493 = vmatprep.subr.bf16.mxu0 0
        %1494 = vmatpush1.bf16.xpose.msra.mxu0 0
        %1495 = vmatprep.mubr.bf16.mxu0 0
        %1496 = vmatmul.mubr.bf16.gmra.mrb[0].mxu0 %v1458
        %v1497 = vpop.f32.mrb[0].mxu0
        %v1498 = vadd.f32 0.0, %v1497
        %v1499 = vpop.f32.mrb[0].mxu0
        %v1500 = vpop.f32.mrb[0].mxu0
        %v1501 = vpop.f32.mrb[0].mxu0
        %1502 = vdwg.mxu0
        %1503 = vrot.lane.b32.xlu0 %v473, 112
        %v1504 = vpop.permute.xlu0 %1503
        %1505 = vrot.lane.b32.xlu0 %v473, 80
        %v1506 = vpop.permute.xlu0 %1505
        %v1508 = vsel %vm481, %v1504, 0
        %v1511 = vsel %vm481, %v1506, 0
        %1513 = vmatprep.subr.bf16.mxu0 0
        %1514 = vmatpush1.bf16.xpose.msra.mxu0 %v1511
        %1515 = vmatprep.subr.bf16.mxu0 0
        %1516 = vmatpush1.bf16.xpose.msra.mxu0 0
        %1517 = vmatprep.subr.bf16.mxu0 0
        %1518 = vmatpush1.bf16.xpose.msra.mxu0 0
        %1519 = vmatprep.subr.bf16.mxu0 0
        %1520 = vmatpush1.bf16.xpose.msra.mxu0 0
        %1521 = vmatprep.subr.bf16.mxu0 0
        %1522 = vmatpush1.bf16.xpose.msra.mxu0 0
        %1523 = vmatprep.subr.bf16.mxu0 0
        %1524 = vmatpush1.bf16.xpose.msra.mxu0 0
        %1525 = vmatprep.subr.bf16.mxu0 0
        %1526 = vmatpush1.bf16.xpose.msra.mxu0 0
        %1527 = vmatprep.subr.bf16.mxu0 0
        %1528 = vmatpush1.bf16.xpose.msra.mxu0 0
        %1529 = vmatprep.subr.bf16.mxu0 0
        %1530 = vmatpush1.bf16.xpose.msra.mxu0 0
        %1531 = vmatprep.subr.bf16.mxu0 0
        %1532 = vmatpush1.bf16.xpose.msra.mxu0 0
        %1533 = vmatprep.subr.bf16.mxu0 0
        %1534 = vmatpush1.bf16.xpose.msra.mxu0 0
        %1535 = vmatprep.subr.bf16.mxu0 0
        %1536 = vmatpush1.bf16.xpose.msra.mxu0 0
        %1537 = vmatprep.subr.bf16.mxu0 0
        %1538 = vmatpush1.bf16.xpose.msra.mxu0 0
        %1539 = vmatprep.subr.bf16.mxu0 0
        %1540 = vmatpush1.bf16.xpose.msra.mxu0 0
        %1541 = vmatprep.subr.bf16.mxu0 0
        %1542 = vmatpush1.bf16.xpose.msra.mxu0 0
        %1543 = vmatprep.subr.bf16.mxu0 0
        %1544 = vmatpush1.bf16.xpose.msra.mxu0 0
        %1545 = vmatprep.mubr.bf16.mxu0 0
        %1546 = vmatmul.mubr.bf16.gmra.mrb[0].mxu0 %v1508
        %v1547 = vpop.f32.mrb[0].mxu0
        %v1548 = vadd.f32 0.0, %v1547
        %v1549 = vpop.f32.mrb[0].mxu0
        %v1550 = vpop.f32.mrb[0].mxu0
        %v1551 = vpop.f32.mrb[0].mxu0
        %1552 = vdwg.mxu0
        %1553 = vrot.lane.b32.xlu0 %v474, 112
        %v1554 = vpop.permute.xlu0 %1553
        %1555 = vrot.lane.b32.xlu0 %v474, 80
        %v1556 = vpop.permute.xlu0 %1555
        %v1558 = vsel %vm481, %v1554, 0
        %v1561 = vsel %vm481, %v1556, 0
        %1563 = vmatprep.subr.bf16.mxu0 0
        %1564 = vmatpush1.bf16.xpose.msra.mxu0 %v1561
        %1565 = vmatprep.subr.bf16.mxu0 0
        %1566 = vmatpush1.bf16.xpose.msra.mxu0 0
        %1567 = vmatprep.subr.bf16.mxu0 0
        %1568 = vmatpush1.bf16.xpose.msra.mxu0 0
        %1569 = vmatprep.subr.bf16.mxu0 0
        %1570 = vmatpush1.bf16.xpose.msra.mxu0 0
        %1571 = vmatprep.subr.bf16.mxu0 0
        %1572 = vmatpush1.bf16.xpose.msra.mxu0 0
        %1573 = vmatprep.subr.bf16.mxu0 0
        %1574 = vmatpush1.bf16.xpose.msra.mxu0 0
        %1575 = vmatprep.subr.bf16.mxu0 0
        %1576 = vmatpush1.bf16.xpose.msra.mxu0 0
        %1577 = vmatprep.subr.bf16.mxu0 0
        %1578 = vmatpush1.bf16.xpose.msra.mxu0 0
        %1579 = vmatprep.subr.bf16.mxu0 0
        %1580 = vmatpush1.bf16.xpose.msra.mxu0 0
        %1581 = vmatprep.subr.bf16.mxu0 0
        %1582 = vmatpush1.bf16.xpose.msra.mxu0 0
        %1583 = vmatprep.subr.bf16.mxu0 0
        %1584 = vmatpush1.bf16.xpose.msra.mxu0 0
        %1585 = vmatprep.subr.bf16.mxu0 0
        %1586 = vmatpush1.bf16.xpose.msra.mxu0 0
        %1587 = vmatprep.subr.bf16.mxu0 0
        %1588 = vmatpush1.bf16.xpose.msra.mxu0 0
        %1589 = vmatprep.subr.bf16.mxu0 0
        %1590 = vmatpush1.bf16.xpose.msra.mxu0 0
        %1591 = vmatprep.subr.bf16.mxu0 0
        %1592 = vmatpush1.bf16.xpose.msra.mxu0 0
        %1593 = vmatprep.subr.bf16.mxu0 0
        %1594 = vmatpush1.bf16.xpose.msra.mxu0 0
        %1595 = vmatprep.mubr.bf16.mxu0 0
        %1596 = vmatmul.mubr.bf16.gmra.mrb[0].mxu0 %v1558
        %v1597 = vpop.f32.mrb[0].mxu0
        %v1598 = vadd.f32 0.0, %v1597
        %v1599 = vpop.f32.mrb[0].mxu0
        %v1600 = vpop.f32.mrb[0].mxu0
        %v1601 = vpop.f32.mrb[0].mxu0
        %1602 = vdwg.mxu0
        %1603 = vrot.lane.b32.xlu0 %v475, 112
        %v1604 = vpop.permute.xlu0 %1603
        %1605 = vrot.lane.b32.xlu0 %v475, 80
        %v1606 = vpop.permute.xlu0 %1605
        %v1608 = vsel %vm481, %v1604, 0
        %v1611 = vsel %vm481, %v1606, 0
        %1613 = vmatprep.subr.bf16.mxu0 0
        %1614 = vmatpush1.bf16.xpose.msra.mxu0 %v1611
        %1615 = vmatprep.subr.bf16.mxu0 0
        %1616 = vmatpush1.bf16.xpose.msra.mxu0 0
        %1617 = vmatprep.subr.bf16.mxu0 0
        %1618 = vmatpush1.bf16.xpose.msra.mxu0 0
        %1619 = vmatprep.subr.bf16.mxu0 0
        %1620 = vmatpush1.bf16.xpose.msra.mxu0 0
        %1621 = vmatprep.subr.bf16.mxu0 0
        %1622 = vmatpush1.bf16.xpose.msra.mxu0 0
        %1623 = vmatprep.subr.bf16.mxu0 0
        %1624 = vmatpush1.bf16.xpose.msra.mxu0 0
        %1625 = vmatprep.subr.bf16.mxu0 0
        %1626 = vmatpush1.bf16.xpose.msra.mxu0 0
        %1627 = vmatprep.subr.bf16.mxu0 0
        %1628 = vmatpush1.bf16.xpose.msra.mxu0 0
        %1629 = vmatprep.subr.bf16.mxu0 0
        %1630 = vmatpush1.bf16.xpose.msra.mxu0 0
        %1631 = vmatprep.subr.bf16.mxu0 0
        %1632 = vmatpush1.bf16.xpose.msra.mxu0 0
        %1633 = vmatprep.subr.bf16.mxu0 0
        %1634 = vmatpush1.bf16.xpose.msra.mxu0 0
        %1635 = vmatprep.subr.bf16.mxu0 0
        %1636 = vmatpush1.bf16.xpose.msra.mxu0 0
        %1637 = vmatprep.subr.bf16.mxu0 0
        %1638 = vmatpush1.bf16.xpose.msra.mxu0 0
        %1639 = vmatprep.subr.bf16.mxu0 0
        %1640 = vmatpush1.bf16.xpose.msra.mxu0 0
        %1641 = vmatprep.subr.bf16.mxu0 0
        %1642 = vmatpush1.bf16.xpose.msra.mxu0 0
        %1643 = vmatprep.subr.bf16.mxu0 0
        %1644 = vmatpush1.bf16.xpose.msra.mxu0 0
        %1645 = vmatprep.mubr.bf16.mxu0 0
        %1646 = vmatmul.mubr.bf16.gmra.mrb[0].mxu0 %v1608
        %v1647 = vpop.f32.mrb[0].mxu0
        %v1648 = vadd.f32 0.0, %v1647
        %v1649 = vpop.f32.mrb[0].mxu0
        %v1650 = vpop.f32.mrb[0].mxu0
        %v1651 = vpop.f32.mrb[0].mxu0
        %1652 = vdwg.mxu0
        %1653 = vrot.lane.b32.xlu0 %v476, 112
        %v1654 = vpop.permute.xlu0 %1653
        %1655 = vrot.lane.b32.xlu0 %v476, 80
        %v1656 = vpop.permute.xlu0 %1655
        %v1658 = vsel %vm481, %v1654, 0
        %v1661 = vsel %vm481, %v1656, 0
        %1663 = vmatprep.subr.bf16.mxu0 0
        %1664 = vmatpush1.bf16.xpose.msra.mxu0 %v1661
        %1665 = vmatprep.subr.bf16.mxu0 0
        %1666 = vmatpush1.bf16.xpose.msra.mxu0 0
        %1667 = vmatprep.subr.bf16.mxu0 0
        %1668 = vmatpush1.bf16.xpose.msra.mxu0 0
        %1669 = vmatprep.subr.bf16.mxu0 0
        %1670 = vmatpush1.bf16.xpose.msra.mxu0 0
        %1671 = vmatprep.subr.bf16.mxu0 0
        %1672 = vmatpush1.bf16.xpose.msra.mxu0 0
        %1673 = vmatprep.subr.bf16.mxu0 0
        %1674 = vmatpush1.bf16.xpose.msra.mxu0 0
        %1675 = vmatprep.subr.bf16.mxu0 0
        %1676 = vmatpush1.bf16.xpose.msra.mxu0 0
        %1677 = vmatprep.subr.bf16.mxu0 0
        %1678 = vmatpush1.bf16.xpose.msra.mxu0 0
        %1679 = vmatprep.subr.bf16.mxu0 0
        %1680 = vmatpush1.bf16.xpose.msra.mxu0 0
        %1681 = vmatprep.subr.bf16.mxu0 0
        %1682 = vmatpush1.bf16.xpose.msra.mxu0 0
        %1683 = vmatprep.subr.bf16.mxu0 0
        %1684 = vmatpush1.bf16.xpose.msra.mxu0 0
        %1685 = vmatprep.subr.bf16.mxu0 0
        %1686 = vmatpush1.bf16.xpose.msra.mxu0 0
        %1687 = vmatprep.subr.bf16.mxu0 0
        %1688 = vmatpush1.bf16.xpose.msra.mxu0 0
        %1689 = vmatprep.subr.bf16.mxu0 0
        %1690 = vmatpush1.bf16.xpose.msra.mxu0 0
        %1691 = vmatprep.subr.bf16.mxu0 0
        %1692 = vmatpush1.bf16.xpose.msra.mxu0 0
        %1693 = vmatprep.subr.bf16.mxu0 0
        %1694 = vmatpush1.bf16.xpose.msra.mxu0 0
        %1695 = vmatprep.mubr.bf16.mxu0 0
        %1696 = vmatmul.mubr.bf16.gmra.mrb[0].mxu0 %v1658
        %v1697 = vpop.f32.mrb[0].mxu0
        %v1698 = vadd.f32 0.0, %v1697
        %v1699 = vpop.f32.mrb[0].mxu0
        %v1700 = vpop.f32.mrb[0].mxu0
        %v1701 = vpop.f32.mrb[0].mxu0
        %1702 = vdwg.mxu0
        %1703 = vrot.lane.b32.xlu0 %v477, 112
        %v1704 = vpop.permute.xlu0 %1703
        %1705 = vrot.lane.b32.xlu0 %v477, 80
        %v1706 = vpop.permute.xlu0 %1705
        %v1708 = vsel %vm481, %v1704, 0
        %v1711 = vsel %vm481, %v1706, 0
        %1713 = vmatprep.subr.bf16.mxu0 0
        %1714 = vmatpush1.bf16.xpose.msra.mxu0 %v1711
        %1715 = vmatprep.subr.bf16.mxu0 0
        %1716 = vmatpush1.bf16.xpose.msra.mxu0 0
        %1717 = vmatprep.subr.bf16.mxu0 0
        %1718 = vmatpush1.bf16.xpose.msra.mxu0 0
        %1719 = vmatprep.subr.bf16.mxu0 0
        %1720 = vmatpush1.bf16.xpose.msra.mxu0 0
        %1721 = vmatprep.subr.bf16.mxu0 0
        %1722 = vmatpush1.bf16.xpose.msra.mxu0 0
        %1723 = vmatprep.subr.bf16.mxu0 0
        %1724 = vmatpush1.bf16.xpose.msra.mxu0 0
        %1725 = vmatprep.subr.bf16.mxu0 0
        %1726 = vmatpush1.bf16.xpose.msra.mxu0 0
        %1727 = vmatprep.subr.bf16.mxu0 0
        %1728 = vmatpush1.bf16.xpose.msra.mxu0 0
        %1729 = vmatprep.subr.bf16.mxu0 0
        %1730 = vmatpush1.bf16.xpose.msra.mxu0 0
        %1731 = vmatprep.subr.bf16.mxu0 0
        %1732 = vmatpush1.bf16.xpose.msra.mxu0 0
        %1733 = vmatprep.subr.bf16.mxu0 0
        %1734 = vmatpush1.bf16.xpose.msra.mxu0 0
        %1735 = vmatprep.subr.bf16.mxu0 0
        %1736 = vmatpush1.bf16.xpose.msra.mxu0 0
        %1737 = vmatprep.subr.bf16.mxu0 0
        %1738 = vmatpush1.bf16.xpose.msra.mxu0 0
        %1739 = vmatprep.subr.bf16.mxu0 0
        %1740 = vmatpush1.bf16.xpose.msra.mxu0 0
        %1741 = vmatprep.subr.bf16.mxu0 0
        %1742 = vmatpush1.bf16.xpose.msra.mxu0 0
        %1743 = vmatprep.subr.bf16.mxu0 0
        %1744 = vmatpush1.bf16.xpose.msra.mxu0 0
        %1745 = vmatprep.mubr.bf16.mxu0 0
        %1746 = vmatmul.mubr.bf16.gmra.mrb[0].mxu0 %v1708
        %v1747 = vpop.f32.mrb[0].mxu0
        %v1748 = vadd.f32 0.0, %v1747
        %v1749 = vpop.f32.mrb[0].mxu0
        %v1750 = vpop.f32.mrb[0].mxu0
        %v1751 = vpop.f32.mrb[0].mxu0
        %1752 = vdwg.mxu0
        %v1753 = vsel %vm871, %v1398, -inf
        %1754 = vmax.xlane.f32.xlu0 %v1753
        %v1755 = vpop.xlane.xlu0 %1754
        %v1756 = vsel %vm871, %v1448, -inf
        %1757 = vmax.xlane.f32.xlu0 %v1756
        %v1758 = vpop.xlane.xlu0 %1757
        %v1759 = vsel %vm871, %v1498, -inf
        %1760 = vmax.xlane.f32.xlu0 %v1759
        %v1761 = vpop.xlane.xlu0 %1760
        %v1762 = vsel %vm871, %v1548, -inf
        %1763 = vmax.xlane.f32.xlu0 %v1762
        %v1764 = vpop.xlane.xlu0 %1763
        %v1765 = vsel %vm871, %v1598, -inf
        %1766 = vmax.xlane.f32.xlu0 %v1765
        %v1767 = vpop.xlane.xlu0 %1766
        %v1768 = vsel %vm871, %v1648, -inf
        %1769 = vmax.xlane.f32.xlu0 %v1768
        %v1770 = vpop.xlane.xlu0 %1769
        %v1771 = vsel %vm871, %v1698, -inf
        %1772 = vmax.xlane.f32.xlu0 %v1771
        %v1773 = vpop.xlane.xlu0 %1772
        %v1774 = vsel %vm871, %v1748, -inf
        %1775 = vmax.xlane.f32.xlu0 %v1774
        %v1776 = vpop.xlane.xlu0 %1775
        %v1777 = vsub.f32 %v1398, %v1755
        %v1778 = vsub.f32 %v1448, %v1758
        %v1779 = vsub.f32 %v1498, %v1761
        %v1780 = vsub.f32 %v1548, %v1764
        %v1781 = vsub.f32 %v1598, %v1767
        %v1782 = vsub.f32 %v1648, %v1770
        %v1783 = vsub.f32 %v1698, %v1773
        %v1784 = vsub.f32 %v1748, %v1776
        %v1785 = vmul.f32 %v1777, 1.442695
        %v1786 = vpow.pop %v1785
        %v1787 = vmul.f32 %v1778, 1.442695
        %v1788 = vpow.pop %v1787
        %v1789 = vmul.f32 %v1779, 1.442695
        %v1790 = vpow.pop %v1789
        %v1791 = vmul.f32 %v1780, 1.442695
        %v1792 = vpow.pop %v1791
        %v1793 = vmul.f32 %v1781, 1.442695
        %v1794 = vpow.pop %v1793
        %v1795 = vmul.f32 %v1782, 1.442695
        %v1796 = vpow.pop %v1795
        %v1797 = vmul.f32 %v1783, 1.442695
        %v1798 = vpow.pop %v1797
        %v1799 = vmul.f32 %v1784, 1.442695
        %v1800 = vpow.pop %v1799
        %v1801 = vsel %vm871, %v1786, 0.0
        %1802 = vadd.xlane.f32.xlu0 %v1801
        %v1803 = vpop.xlane.xlu0 %1802
        %v1804 = vsel %vm871, %v1788, 0.0
        %1805 = vadd.xlane.f32.xlu0 %v1804
        %v1806 = vpop.xlane.xlu0 %1805
        %v1807 = vsel %vm871, %v1790, 0.0
        %1808 = vadd.xlane.f32.xlu0 %v1807
        %v1809 = vpop.xlane.xlu0 %1808
        %v1810 = vsel %vm871, %v1792, 0.0
        %1811 = vadd.xlane.f32.xlu0 %v1810
        %v1812 = vpop.xlane.xlu0 %1811
        %v1813 = vsel %vm871, %v1794, 0.0
        %1814 = vadd.xlane.f32.xlu0 %v1813
        %v1815 = vpop.xlane.xlu0 %1814
        %v1816 = vsel %vm871, %v1796, 0.0
        %1817 = vadd.xlane.f32.xlu0 %v1816
        %v1818 = vpop.xlane.xlu0 %1817
        %v1819 = vsel %vm871, %v1798, 0.0
        %1820 = vadd.xlane.f32.xlu0 %v1819
        %v1821 = vpop.xlane.xlu0 %1820
        %v1822 = vsel %vm871, %v1800, 0.0
        %1823 = vadd.xlane.f32.xlu0 %v1822
        %v1824 = vpop.xlane.xlu0 %1823
        %v1825 = vrcp.pop %v1803
        %v1826 = vmul.f32 %v1786, %v1825
        %v1827 = vrcp.pop %v1806
        %v1828 = vmul.f32 %v1788, %v1827
        %v1829 = vrcp.pop %v1809
        %v1830 = vmul.f32 %v1790, %v1829
        %v1831 = vrcp.pop %v1812
        %v1832 = vmul.f32 %v1792, %v1831
        %v1833 = vrcp.pop %v1815
        %v1834 = vmul.f32 %v1794, %v1833
        %v1835 = vrcp.pop %v1818
        %v1836 = vmul.f32 %v1796, %v1835
        %v1837 = vrcp.pop %v1821
        %v1838 = vmul.f32 %v1798, %v1837
        %v1839 = vrcp.pop %v1824
        %v1840 = vmul.f32 %v1800, %v1839
        %v1841 = vpack.c.bf16 %v1826, %v1826
        %v1842 = vpack.c.bf16 %v1828, %v1828
        %v1843 = vpack.c.bf16 %v1830, %v1830
        %v1844 = vpack.c.bf16 %v1832, %v1832
        %v1845 = vpack.c.bf16 %v1834, %v1834
        %v1846 = vpack.c.bf16 %v1836, %v1836
        %v1847 = vpack.c.bf16 %v1838, %v1838
        %v1848 = vpack.c.bf16 %v1840, %v1840
        %1849 = vrot.lane.b32.xlu0 %v470, 48
        %v1850 = vpop.permute.xlu0 %1849
        %v1852 = vsel %vm871, %v1841, 0
        %v1855 = vsel %vm973, %v1850, 0
        %1857 = vmatprep.subr.bf16.mxu0 0
        %1858 = vmatpush1.bf16.msra.mxu0 %v1855
        %1859 = vmatprep.subr.bf16.mxu0 0
        %1860 = vmatpush1.bf16.msra.mxu0 0
        %1861 = vmatprep.subr.bf16.mxu0 0
        %1862 = vmatpush1.bf16.msra.mxu0 0
        %1863 = vmatprep.subr.bf16.mxu0 0
        %1864 = vmatpush1.bf16.msra.mxu0 0
        %1865 = vmatprep.subr.bf16.mxu0 0
        %1866 = vmatpush1.bf16.msra.mxu0 0
        %1867 = vmatprep.subr.bf16.mxu0 0
        %1868 = vmatpush1.bf16.msra.mxu0 0
        %1869 = vmatprep.subr.bf16.mxu0 0
        %1870 = vmatpush1.bf16.msra.mxu0 0
        %1871 = vmatprep.subr.bf16.mxu0 0
        %1872 = vmatpush1.bf16.msra.mxu0 0
        %1873 = vmatprep.subr.bf16.mxu0 0
        %1874 = vmatpush1.bf16.msra.mxu0 0
        %1875 = vmatprep.subr.bf16.mxu0 0
        %1876 = vmatpush1.bf16.msra.mxu0 0
        %1877 = vmatprep.subr.bf16.mxu0 0
        %1878 = vmatpush1.bf16.msra.mxu0 0
        %1879 = vmatprep.subr.bf16.mxu0 0
        %1880 = vmatpush1.bf16.msra.mxu0 0
        %1881 = vmatprep.subr.bf16.mxu0 0
        %1882 = vmatpush1.bf16.msra.mxu0 0
        %1883 = vmatprep.subr.bf16.mxu0 0
        %1884 = vmatpush1.bf16.msra.mxu0 0
        %1885 = vmatprep.subr.bf16.mxu0 0
        %1886 = vmatpush1.bf16.msra.mxu0 0
        %1887 = vmatprep.subr.bf16.mxu0 0
        %1888 = vmatpush1.bf16.msra.mxu0 0
        %1889 = vmatprep.mubr.bf16.mxu0 0
        %1890 = vmatmul.mubr.bf16.gmra.mrb[0].mxu0 %v1852
        %v1891 = vpop.f32.mrb[0].mxu0
        %v1892 = vadd.f32 0.0, %v1891
        %v1893 = vpop.f32.mrb[0].mxu0
        %v1894 = vpop.f32.mrb[0].mxu0
        %v1895 = vpop.f32.mrb[0].mxu0
        %1896 = vdwg.mxu0
        %1897 = vrot.lane.b32.xlu0 %v471, 48
        %v1898 = vpop.permute.xlu0 %1897
        %v1900 = vsel %vm871, %v1842, 0
        %v1903 = vsel %vm973, %v1898, 0
        %1905 = vmatprep.subr.bf16.mxu0 0
        %1906 = vmatpush1.bf16.msra.mxu0 %v1903
        %1907 = vmatprep.subr.bf16.mxu0 0
        %1908 = vmatpush1.bf16.msra.mxu0 0
        %1909 = vmatprep.subr.bf16.mxu0 0
        %1910 = vmatpush1.bf16.msra.mxu0 0
        %1911 = vmatprep.subr.bf16.mxu0 0
        %1912 = vmatpush1.bf16.msra.mxu0 0
        %1913 = vmatprep.subr.bf16.mxu0 0
        %1914 = vmatpush1.bf16.msra.mxu0 0
        %1915 = vmatprep.subr.bf16.mxu0 0
        %1916 = vmatpush1.bf16.msra.mxu0 0
        %1917 = vmatprep.subr.bf16.mxu0 0
        %1918 = vmatpush1.bf16.msra.mxu0 0
        %1919 = vmatprep.subr.bf16.mxu0 0
        %1920 = vmatpush1.bf16.msra.mxu0 0
        %1921 = vmatprep.subr.bf16.mxu0 0
        %1922 = vmatpush1.bf16.msra.mxu0 0
        %1923 = vmatprep.subr.bf16.mxu0 0
        %1924 = vmatpush1.bf16.msra.mxu0 0
        %1925 = vmatprep.subr.bf16.mxu0 0
        %1926 = vmatpush1.bf16.msra.mxu0 0
        %1927 = vmatprep.subr.bf16.mxu0 0
        %1928 = vmatpush1.bf16.msra.mxu0 0
        %1929 = vmatprep.subr.bf16.mxu0 0
        %1930 = vmatpush1.bf16.msra.mxu0 0
        %1931 = vmatprep.subr.bf16.mxu0 0
        %1932 = vmatpush1.bf16.msra.mxu0 0
        %1933 = vmatprep.subr.bf16.mxu0 0
        %1934 = vmatpush1.bf16.msra.mxu0 0
        %1935 = vmatprep.subr.bf16.mxu0 0
        %1936 = vmatpush1.bf16.msra.mxu0 0
        %1937 = vmatprep.mubr.bf16.mxu0 0
        %1938 = vmatmul.mubr.bf16.gmra.mrb[0].mxu0 %v1900
        %v1939 = vpop.f32.mrb[0].mxu0
        %v1940 = vadd.f32 0.0, %v1939
        %v1941 = vpop.f32.mrb[0].mxu0
        %v1942 = vpop.f32.mrb[0].mxu0
        %v1943 = vpop.f32.mrb[0].mxu0
        %1944 = vdwg.mxu0
        %1945 = vrot.lane.b32.xlu0 %v472, 48
        %v1946 = vpop.permute.xlu0 %1945
        %v1948 = vsel %vm871, %v1843, 0
        %v1951 = vsel %vm973, %v1946, 0
        %1953 = vmatprep.subr.bf16.mxu0 0
        %1954 = vmatpush1.bf16.msra.mxu0 %v1951
        %1955 = vmatprep.subr.bf16.mxu0 0
        %1956 = vmatpush1.bf16.msra.mxu0 0
        %1957 = vmatprep.subr.bf16.mxu0 0
        %1958 = vmatpush1.bf16.msra.mxu0 0
        %1959 = vmatprep.subr.bf16.mxu0 0
        %1960 = vmatpush1.bf16.msra.mxu0 0
        %1961 = vmatprep.subr.bf16.mxu0 0
        %1962 = vmatpush1.bf16.msra.mxu0 0
        %1963 = vmatprep.subr.bf16.mxu0 0
        %1964 = vmatpush1.bf16.msra.mxu0 0
        %1965 = vmatprep.subr.bf16.mxu0 0
        %1966 = vmatpush1.bf16.msra.mxu0 0
        %1967 = vmatprep.subr.bf16.mxu0 0
        %1968 = vmatpush1.bf16.msra.mxu0 0
        %1969 = vmatprep.subr.bf16.mxu0 0
        %1970 = vmatpush1.bf16.msra.mxu0 0
        %1971 = vmatprep.subr.bf16.mxu0 0
        %1972 = vmatpush1.bf16.msra.mxu0 0
        %1973 = vmatprep.subr.bf16.mxu0 0
        %1974 = vmatpush1.bf16.msra.mxu0 0
        %1975 = vmatprep.subr.bf16.mxu0 0
        %1976 = vmatpush1.bf16.msra.mxu0 0
        %1977 = vmatprep.subr.bf16.mxu0 0
        %1978 = vmatpush1.bf16.msra.mxu0 0
        %1979 = vmatprep.subr.bf16.mxu0 0
        %1980 = vmatpush1.bf16.msra.mxu0 0
        %1981 = vmatprep.subr.bf16.mxu0 0
        %1982 = vmatpush1.bf16.msra.mxu0 0
        %1983 = vmatprep.subr.bf16.mxu0 0
        %1984 = vmatpush1.bf16.msra.mxu0 0
        %1985 = vmatprep.mubr.bf16.mxu0 0
        %1986 = vmatmul.mubr.bf16.gmra.mrb[0].mxu0 %v1948
        %v1987 = vpop.f32.mrb[0].mxu0
        %v1988 = vadd.f32 0.0, %v1987
        %v1989 = vpop.f32.mrb[0].mxu0
        %v1990 = vpop.f32.mrb[0].mxu0
        %v1991 = vpop.f32.mrb[0].mxu0
        %1992 = vdwg.mxu0
        %1993 = vrot.lane.b32.xlu0 %v473, 48
        %v1994 = vpop.permute.xlu0 %1993
        %v1996 = vsel %vm871, %v1844, 0
        %v1999 = vsel %vm973, %v1994, 0
        %2001 = vmatprep.subr.bf16.mxu0 0
        %2002 = vmatpush1.bf16.msra.mxu0 %v1999
        %2003 = vmatprep.subr.bf16.mxu0 0
        %2004 = vmatpush1.bf16.msra.mxu0 0
        %2005 = vmatprep.subr.bf16.mxu0 0
        %2006 = vmatpush1.bf16.msra.mxu0 0
        %2007 = vmatprep.subr.bf16.mxu0 0
        %2008 = vmatpush1.bf16.msra.mxu0 0
        %2009 = vmatprep.subr.bf16.mxu0 0
        %2010 = vmatpush1.bf16.msra.mxu0 0
        %2011 = vmatprep.subr.bf16.mxu0 0
        %2012 = vmatpush1.bf16.msra.mxu0 0
        %2013 = vmatprep.subr.bf16.mxu0 0
        %2014 = vmatpush1.bf16.msra.mxu0 0
        %2015 = vmatprep.subr.bf16.mxu0 0
        %2016 = vmatpush1.bf16.msra.mxu0 0
        %2017 = vmatprep.subr.bf16.mxu0 0
        %2018 = vmatpush1.bf16.msra.mxu0 0
        %2019 = vmatprep.subr.bf16.mxu0 0
        %2020 = vmatpush1.bf16.msra.mxu0 0
        %2021 = vmatprep.subr.bf16.mxu0 0
        %2022 = vmatpush1.bf16.msra.mxu0 0
        %2023 = vmatprep.subr.bf16.mxu0 0
        %2024 = vmatpush1.bf16.msra.mxu0 0
        %2025 = vmatprep.subr.bf16.mxu0 0
        %2026 = vmatpush1.bf16.msra.mxu0 0
        %2027 = vmatprep.subr.bf16.mxu0 0
        %2028 = vmatpush1.bf16.msra.mxu0 0
        %2029 = vmatprep.subr.bf16.mxu0 0
        %2030 = vmatpush1.bf16.msra.mxu0 0
        %2031 = vmatprep.subr.bf16.mxu0 0
        %2032 = vmatpush1.bf16.msra.mxu0 0
        %2033 = vmatprep.mubr.bf16.mxu0 0
        %2034 = vmatmul.mubr.bf16.gmra.mrb[0].mxu0 %v1996
        %v2035 = vpop.f32.mrb[0].mxu0
        %v2036 = vadd.f32 0.0, %v2035
        %v2037 = vpop.f32.mrb[0].mxu0
        %v2038 = vpop.f32.mrb[0].mxu0
        %v2039 = vpop.f32.mrb[0].mxu0
        %2040 = vdwg.mxu0
        %2041 = vrot.lane.b32.xlu0 %v474, 48
        %v2042 = vpop.permute.xlu0 %2041
        %v2044 = vsel %vm871, %v1845, 0
        %v2047 = vsel %vm973, %v2042, 0
        %2049 = vmatprep.subr.bf16.mxu0 0
        %2050 = vmatpush1.bf16.msra.mxu0 %v2047
        %2051 = vmatprep.subr.bf16.mxu0 0
        %2052 = vmatpush1.bf16.msra.mxu0 0
        %2053 = vmatprep.subr.bf16.mxu0 0
        %2054 = vmatpush1.bf16.msra.mxu0 0
        %2055 = vmatprep.subr.bf16.mxu0 0
        %2056 = vmatpush1.bf16.msra.mxu0 0
        %2057 = vmatprep.subr.bf16.mxu0 0
        %2058 = vmatpush1.bf16.msra.mxu0 0
        %2059 = vmatprep.subr.bf16.mxu0 0
        %2060 = vmatpush1.bf16.msra.mxu0 0
        %2061 = vmatprep.subr.bf16.mxu0 0
        %2062 = vmatpush1.bf16.msra.mxu0 0
        %2063 = vmatprep.subr.bf16.mxu0 0
        %2064 = vmatpush1.bf16.msra.mxu0 0
        %2065 = vmatprep.subr.bf16.mxu0 0
        %2066 = vmatpush1.bf16.msra.mxu0 0
        %2067 = vmatprep.subr.bf16.mxu0 0
        %2068 = vmatpush1.bf16.msra.mxu0 0
        %2069 = vmatprep.subr.bf16.mxu0 0
        %2070 = vmatpush1.bf16.msra.mxu0 0
        %2071 = vmatprep.subr.bf16.mxu0 0
        %2072 = vmatpush1.bf16.msra.mxu0 0
        %2073 = vmatprep.subr.bf16.mxu0 0
        %2074 = vmatpush1.bf16.msra.mxu0 0
        %2075 = vmatprep.subr.bf16.mxu0 0
        %2076 = vmatpush1.bf16.msra.mxu0 0
        %2077 = vmatprep.subr.bf16.mxu0 0
        %2078 = vmatpush1.bf16.msra.mxu0 0
        %2079 = vmatprep.subr.bf16.mxu0 0
        %2080 = vmatpush1.bf16.msra.mxu0 0
        %2081 = vmatprep.mubr.bf16.mxu0 0
        %2082 = vmatmul.mubr.bf16.gmra.mrb[0].mxu0 %v2044
        %v2083 = vpop.f32.mrb[0].mxu0
        %v2084 = vadd.f32 0.0, %v2083
        %v2085 = vpop.f32.mrb[0].mxu0
        %v2086 = vpop.f32.mrb[0].mxu0
        %v2087 = vpop.f32.mrb[0].mxu0
        %2088 = vdwg.mxu0
        %2089 = vrot.lane.b32.xlu0 %v475, 48
        %v2090 = vpop.permute.xlu0 %2089
        %v2092 = vsel %vm871, %v1846, 0
        %v2095 = vsel %vm973, %v2090, 0
        %2097 = vmatprep.subr.bf16.mxu0 0
        %2098 = vmatpush1.bf16.msra.mxu0 %v2095
        %2099 = vmatprep.subr.bf16.mxu0 0
        %2100 = vmatpush1.bf16.msra.mxu0 0
        %2101 = vmatprep.subr.bf16.mxu0 0
        %2102 = vmatpush1.bf16.msra.mxu0 0
        %2103 = vmatprep.subr.bf16.mxu0 0
        %2104 = vmatpush1.bf16.msra.mxu0 0
        %2105 = vmatprep.subr.bf16.mxu0 0
        %2106 = vmatpush1.bf16.msra.mxu0 0
        %2107 = vmatprep.subr.bf16.mxu0 0
        %2108 = vmatpush1.bf16.msra.mxu0 0
        %2109 = vmatprep.subr.bf16.mxu0 0
        %2110 = vmatpush1.bf16.msra.mxu0 0
        %2111 = vmatprep.subr.bf16.mxu0 0
        %2112 = vmatpush1.bf16.msra.mxu0 0
        %2113 = vmatprep.subr.bf16.mxu0 0
        %2114 = vmatpush1.bf16.msra.mxu0 0
        %2115 = vmatprep.subr.bf16.mxu0 0
        %2116 = vmatpush1.bf16.msra.mxu0 0
        %2117 = vmatprep.subr.bf16.mxu0 0
        %2118 = vmatpush1.bf16.msra.mxu0 0
        %2119 = vmatprep.subr.bf16.mxu0 0
        %2120 = vmatpush1.bf16.msra.mxu0 0
        %2121 = vmatprep.subr.bf16.mxu0 0
        %2122 = vmatpush1.bf16.msra.mxu0 0
        %2123 = vmatprep.subr.bf16.mxu0 0
        %2124 = vmatpush1.bf16.msra.mxu0 0
        %2125 = vmatprep.subr.bf16.mxu0 0
        %2126 = vmatpush1.bf16.msra.mxu0 0
        %2127 = vmatprep.subr.bf16.mxu0 0
        %2128 = vmatpush1.bf16.msra.mxu0 0
        %2129 = vmatprep.mubr.bf16.mxu0 0
        %2130 = vmatmul.mubr.bf16.gmra.mrb[0].mxu0 %v2092
        %v2131 = vpop.f32.mrb[0].mxu0
        %v2132 = vadd.f32 0.0, %v2131
        %v2133 = vpop.f32.mrb[0].mxu0
        %v2134 = vpop.f32.mrb[0].mxu0
        %v2135 = vpop.f32.mrb[0].mxu0
        %2136 = vdwg.mxu0
        %2137 = vrot.lane.b32.xlu0 %v476, 48
        %v2138 = vpop.permute.xlu0 %2137
        %v2140 = vsel %vm871, %v1847, 0
        %v2143 = vsel %vm973, %v2138, 0
        %2145 = vmatprep.subr.bf16.mxu0 0
        %2146 = vmatpush1.bf16.msra.mxu0 %v2143
        %2147 = vmatprep.subr.bf16.mxu0 0
        %2148 = vmatpush1.bf16.msra.mxu0 0
        %2149 = vmatprep.subr.bf16.mxu0 0
        %2150 = vmatpush1.bf16.msra.mxu0 0
        %2151 = vmatprep.subr.bf16.mxu0 0
        %2152 = vmatpush1.bf16.msra.mxu0 0
        %2153 = vmatprep.subr.bf16.mxu0 0
        %2154 = vmatpush1.bf16.msra.mxu0 0
        %2155 = vmatprep.subr.bf16.mxu0 0
        %2156 = vmatpush1.bf16.msra.mxu0 0
        %2157 = vmatprep.subr.bf16.mxu0 0
        %2158 = vmatpush1.bf16.msra.mxu0 0
        %2159 = vmatprep.subr.bf16.mxu0 0
        %2160 = vmatpush1.bf16.msra.mxu0 0
        %2161 = vmatprep.subr.bf16.mxu0 0
        %2162 = vmatpush1.bf16.msra.mxu0 0
        %2163 = vmatprep.subr.bf16.mxu0 0
        %2164 = vmatpush1.bf16.msra.mxu0 0
        %2165 = vmatprep.subr.bf16.mxu0 0
        %2166 = vmatpush1.bf16.msra.mxu0 0
        %2167 = vmatprep.subr.bf16.mxu0 0
        %2168 = vmatpush1.bf16.msra.mxu0 0
        %2169 = vmatprep.subr.bf16.mxu0 0
        %2170 = vmatpush1.bf16.msra.mxu0 0
        %2171 = vmatprep.subr.bf16.mxu0 0
        %2172 = vmatpush1.bf16.msra.mxu0 0
        %2173 = vmatprep.subr.bf16.mxu0 0
        %2174 = vmatpush1.bf16.msra.mxu0 0
        %2175 = vmatprep.subr.bf16.mxu0 0
        %2176 = vmatpush1.bf16.msra.mxu0 0
        %2177 = vmatprep.mubr.bf16.mxu0 0
        %2178 = vmatmul.mubr.bf16.gmra.mrb[0].mxu0 %v2140
        %v2179 = vpop.f32.mrb[0].mxu0
        %v2180 = vadd.f32 0.0, %v2179
        %v2181 = vpop.f32.mrb[0].mxu0
        %v2182 = vpop.f32.mrb[0].mxu0
        %v2183 = vpop.f32.mrb[0].mxu0
        %2184 = vdwg.mxu0
        %2185 = vrot.lane.b32.xlu0 %v477, 48
        %v2186 = vpop.permute.xlu0 %2185
        %v2188 = vsel %vm871, %v1848, 0
        %v2191 = vsel %vm973, %v2186, 0
        %2193 = vmatprep.subr.bf16.mxu0 0
        %2194 = vmatpush1.bf16.msra.mxu0 %v2191
        %2195 = vmatprep.subr.bf16.mxu0 0
        %2196 = vmatpush1.bf16.msra.mxu0 0
        %2197 = vmatprep.subr.bf16.mxu0 0
        %2198 = vmatpush1.bf16.msra.mxu0 0
        %2199 = vmatprep.subr.bf16.mxu0 0
        %2200 = vmatpush1.bf16.msra.mxu0 0
        %2201 = vmatprep.subr.bf16.mxu0 0
        %2202 = vmatpush1.bf16.msra.mxu0 0
        %2203 = vmatprep.subr.bf16.mxu0 0
        %2204 = vmatpush1.bf16.msra.mxu0 0
        %2205 = vmatprep.subr.bf16.mxu0 0
        %2206 = vmatpush1.bf16.msra.mxu0 0
        %2207 = vmatprep.subr.bf16.mxu0 0
        %2208 = vmatpush1.bf16.msra.mxu0 0
        %2209 = vmatprep.subr.bf16.mxu0 0
        %2210 = vmatpush1.bf16.msra.mxu0 0
        %2211 = vmatprep.subr.bf16.mxu0 0
        %2212 = vmatpush1.bf16.msra.mxu0 0
        %2213 = vmatprep.subr.bf16.mxu0 0
        %2214 = vmatpush1.bf16.msra.mxu0 0
        %2215 = vmatprep.subr.bf16.mxu0 0
        %2216 = vmatpush1.bf16.msra.mxu0 0
        %2217 = vmatprep.subr.bf16.mxu0 0
        %2218 = vmatpush1.bf16.msra.mxu0 0
        %2219 = vmatprep.subr.bf16.mxu0 0
        %2220 = vmatpush1.bf16.msra.mxu0 0
        %2221 = vmatprep.subr.bf16.mxu0 0
        %2222 = vmatpush1.bf16.msra.mxu0 0
        %2223 = vmatprep.subr.bf16.mxu0 0
        %2224 = vmatpush1.bf16.msra.mxu0 0
        %2225 = vmatprep.mubr.bf16.mxu0 0
        %2226 = vmatmul.mubr.bf16.gmra.mrb[0].mxu0 %v2188
        %v2227 = vpop.f32.mrb[0].mxu0
        %v2228 = vadd.f32 0.0, %v2227
        %v2229 = vpop.f32.mrb[0].mxu0
        %v2230 = vpop.f32.mrb[0].mxu0
        %v2231 = vpop.f32.mrb[0].mxu0
        %2232 = vdwg.mxu0
        %2241 = vrot.lane.b32.xlu0 %v1892, 16
        %v2242 = vpop.permute.xlu0 %2241
        %2243 = vrot.lane.b32.xlu0 %v1940, 16
        %v2244 = vpop.permute.xlu0 %2243
        %2245 = vrot.lane.b32.xlu0 %v1988, 16
        %v2246 = vpop.permute.xlu0 %2245
        %2247 = vrot.lane.b32.xlu0 %v2036, 16
        %v2248 = vpop.permute.xlu0 %2247
        %2249 = vrot.lane.b32.xlu0 %v2084, 16
        %v2250 = vpop.permute.xlu0 %2249
        %2251 = vrot.lane.b32.xlu0 %v2132, 16
        %v2252 = vpop.permute.xlu0 %2251
        %2253 = vrot.lane.b32.xlu0 %v2180, 16
        %v2254 = vpop.permute.xlu0 %2253
        %2255 = vrot.lane.b32.xlu0 %v2228, 16
        %v2256 = vpop.permute.xlu0 %2255
        %v2265 = vsel %vm481, %v1012, %v2242
        %v2266 = vsel %vm481, %v1060, %v2244
        %v2267 = vsel %vm481, %v1108, %v2246
        %v2268 = vsel %vm481, %v1156, %v2248
        %v2269 = vsel %vm481, %v1204, %v2250
        %v2270 = vsel %vm481, %v1252, %v2252
        %v2271 = vsel %vm481, %v1300, %v2254
        %v2272 = vsel %vm481, %v1348, %v2256
        %v2273 = vld [vmem:[%s2] sm:$0xf]
        %v2274 = vld [vmem:[%s2 + $0x10] sm:$0xf]
        %v2275 = vld [vmem:[%s2 + $0x20] sm:$0xf]
        %v2276 = vld [vmem:[%s2 + $0x30] sm:$0xf]
        %v2277 = vpack.c.bf16 %v2266, %v2265
        %v2278 = vpack.c.bf16 %v2268, %v2267
        %v2279 = vpack.c.bf16 %v2270, %v2269
        %v2280 = vpack.c.bf16 %v2272, %v2271
        %v2285 = vunpack.c.l.b16 %v2273
        %v2286 = vunpack.c.l.b16 %v2274
        %v2287 = vunpack.c.l.b16 %v2275
        %v2288 = vunpack.c.l.b16 %v2276
        %v2289 = vpack.c.b16 %v2286, %v2285
        %v2290 = vpack.c.b16 %v2288, %v2287
        %2291 = vrot.lane.b32.xlu0 %v2289, 32
        %v2292 = vpop.permute.xlu0 %2291
        %2293 = vrot.lane.b32.xlu0 %v2290, 32
        %v2294 = vpop.permute.xlu0 %2293
        %v2298 = vsel %vm235, %v2277, 0
        %v2301 = vsel %vm235, %v2278, 0
        %v2304 = vsel %vm235, %v2279, 0
        %v2307 = vsel %vm235, %v2280, 0
        %2309 = vmatprep.subr.bf16.mxu0 0
        %2310 = vmatpush1.bf16.msra.mxu0 %v2292
        %2311 = vmatprep.subr.bf16.mxu0 0
        %2312 = vmatpush1.bf16.msra.mxu0 %v2294
        %2313 = vmatprep.subr.bf16.mxu0 0
        %2314 = vmatpush1.bf16.msra.mxu0 0
        %2315 = vmatprep.subr.bf16.mxu0 0
        %2316 = vmatpush1.bf16.msra.mxu0 0
        %2317 = vmatprep.subr.bf16.mxu0 0
        %2318 = vmatpush1.bf16.msra.mxu0 0
        %2319 = vmatprep.subr.bf16.mxu0 0
        %2320 = vmatpush1.bf16.msra.mxu0 0
        %2321 = vmatprep.subr.bf16.mxu0 0
        %2322 = vmatpush1.bf16.msra.mxu0 0
        %2323 = vmatprep.subr.bf16.mxu0 0
        %2324 = vmatpush1.bf16.msra.mxu0 0
        %2325 = vmatprep.subr.bf16.mxu0 0
        %2326 = vmatpush1.bf16.msra.mxu0 0
        %2327 = vmatprep.subr.bf16.mxu0 0
        %2328 = vmatpush1.bf16.msra.mxu0 0
        %2329 = vmatprep.subr.bf16.mxu0 0
        %2330 = vmatpush1.bf16.msra.mxu0 0
        %2331 = vmatprep.subr.bf16.mxu0 0
        %2332 = vmatpush1.bf16.msra.mxu0 0
        %2333 = vmatprep.subr.bf16.mxu0 0
        %2334 = vmatpush1.bf16.msra.mxu0 0
        %2335 = vmatprep.subr.bf16.mxu0 0
        %2336 = vmatpush1.bf16.msra.mxu0 0
        %2337 = vmatprep.subr.bf16.mxu0 0
        %2338 = vmatpush1.bf16.msra.mxu0 0
        %2339 = vmatprep.subr.bf16.mxu0 0
        %2340 = vmatpush1.bf16.msra.mxu0 0
        %2341 = vmatprep.mubr.bf16.mxu0 0
        %2342 = vmatmul.mubr.bf16.gmra.mrb[0].mxu0 %v2298
        %v2343 = vpop.f32.mrb[0].mxu0
        %v2344 = vadd.f32 0.0, %v2343
        %v2345 = vpop.f32.mrb[0].mxu0
        %v2346 = vpop.f32.mrb[0].mxu0
        %v2347 = vadd.f32 0.0, %v2346
        %v2348 = vpop.f32.mrb[0].mxu0
        %2349 = vmatprep.mubr.bf16.mxu0 0
        %2350 = vmatmul.mubr.bf16.gmra.mrb[0].mxu0 %v2301
        %v2351 = vpop.f32.mrb[0].mxu0
        %v2352 = vadd.f32 0.0, %v2351
        %v2353 = vpop.f32.mrb[0].mxu0
        %v2354 = vpop.f32.mrb[0].mxu0
        %v2355 = vadd.f32 0.0, %v2354
        %v2356 = vpop.f32.mrb[0].mxu0
        %2357 = vmatprep.mubr.bf16.mxu0 0
        %2358 = vmatmul.mubr.bf16.gmra.mrb[0].mxu0 %v2304
        %v2359 = vpop.f32.mrb[0].mxu0
        %v2360 = vadd.f32 0.0, %v2359
        %v2361 = vpop.f32.mrb[0].mxu0
        %v2362 = vpop.f32.mrb[0].mxu0
        %v2363 = vadd.f32 0.0, %v2362
        %v2364 = vpop.f32.mrb[0].mxu0
        %2365 = vmatprep.mubr.bf16.mxu0 0
        %2366 = vmatmul.mubr.bf16.gmra.mrb[0].mxu0 %v2307
        %v2367 = vpop.f32.mrb[0].mxu0
        %v2368 = vadd.f32 0.0, %v2367
        %v2369 = vpop.f32.mrb[0].mxu0
        %v2370 = vpop.f32.mrb[0].mxu0
        %v2371 = vadd.f32 0.0, %v2370
        %v2372 = vpop.f32.mrb[0].mxu0
        %2373 = vdwg.mxu0
        %v2374 = vadd.f32 %v226, %v2344
        %v2375 = vadd.f32 %v227, %v2347
        %v2376 = vadd.f32 %v228, %v2352
        %v2377 = vadd.f32 %v229, %v2355
        %v2378 = vadd.f32 %v230, %v2360
        %v2379 = vadd.f32 %v231, %v2363
        %v2380 = vadd.f32 %v232, %v2368
        %v2381 = vadd.f32 %v233, %v2371
        %v2382 = vld [vmem:[%s1 + $0x1] sm:$0x1]
        %v2384 = vlaneseq
        %v2385 = vshrl.u32 %v2384, 7
        %v2386 = vsub.s32 0, %v2385
        %v2387 = vrot.slane %v2382, %v2386
        %2388 = vrot.lane.b32.xlu0 %v2387, 32
        %v2389 = vpop.permute.xlu0 %2388
        %v2391 = vadd.f32 %v2374, %v2389
        %v2392 = vadd.f32 %v2375, %v2389
        %v2393 = vadd.f32 %v2376, %v2389
        %v2394 = vadd.f32 %v2377, %v2389
        %v2395 = vadd.f32 %v2378, %v2389
        %v2396 = vadd.f32 %v2379, %v2389
        %v2397 = vadd.f32 %v2380, %v2389
        %v2398 = vadd.f32 %v2381, %v2389
        %v2399 = vld [vmem:[%s1] sm:$0x1]
        %v2400 = vsel %vm235, %v2391, 0.0
        %2401 = vadd.xlane.f32.xlu0 %v2400
        %v2402 = vpop.xlane.xlu0 %2401
        %v2403 = vsel %vm235, %v2392, 0.0
        %2404 = vadd.xlane.f32.xlu0 %v2403
        %v2405 = vpop.xlane.xlu0 %2404
        %v2406 = vsel %vm235, %v2393, 0.0
        %2407 = vadd.xlane.f32.xlu0 %v2406
        %v2408 = vpop.xlane.xlu0 %2407
        %v2409 = vsel %vm235, %v2394, 0.0
        %2410 = vadd.xlane.f32.xlu0 %v2409
        %v2411 = vpop.xlane.xlu0 %2410
        %v2412 = vsel %vm235, %v2395, 0.0
        %2413 = vadd.xlane.f32.xlu0 %v2412
        %v2414 = vpop.xlane.xlu0 %2413
        %v2415 = vsel %vm235, %v2396, 0.0
        %2416 = vadd.xlane.f32.xlu0 %v2415
        %v2417 = vpop.xlane.xlu0 %2416
        %v2418 = vsel %vm235, %v2397, 0.0
        %2419 = vadd.xlane.f32.xlu0 %v2418
        %v2420 = vpop.xlane.xlu0 %2419
        %v2421 = vsel %vm235, %v2398, 0.0
        %2422 = vadd.xlane.f32.xlu0 %v2421
        %v2423 = vpop.xlane.xlu0 %2422
        %v2424 = vmul.f32 %v2402, %v260
        %v2425 = vmul.f32 %v2405, %v260
        %v2426 = vmul.f32 %v2408, %v260
        %v2427 = vmul.f32 %v2411, %v260
        %v2428 = vmul.f32 %v2414, %v260
        %v2429 = vmul.f32 %v2417, %v260
        %v2430 = vmul.f32 %v2420, %v260
        %v2431 = vmul.f32 %v2423, %v260
        %v2432 = vsub.f32 %v2391, %v2424
        %v2433 = vsub.f32 %v2392, %v2425
        %v2434 = vsub.f32 %v2393, %v2426
        %v2435 = vsub.f32 %v2394, %v2427
        %v2436 = vsub.f32 %v2395, %v2428
        %v2437 = vsub.f32 %v2396, %v2429
        %v2438 = vsub.f32 %v2397, %v2430
        %v2439 = vsub.f32 %v2398, %v2431
        %v2440 = vmul.f32 %v2432, %v2432
        %v2441 = vmul.f32 %v2433, %v2433
        %v2442 = vmul.f32 %v2434, %v2434
        %v2443 = vmul.f32 %v2435, %v2435
        %v2444 = vmul.f32 %v2436, %v2436
        %v2445 = vmul.f32 %v2437, %v2437
        %v2446 = vmul.f32 %v2438, %v2438
        %v2447 = vmul.f32 %v2439, %v2439
        %v2448 = vsel %vm235, %v2440, 0.0
        %2449 = vadd.xlane.f32.xlu0 %v2448
        %v2450 = vpop.xlane.xlu0 %2449
        %v2451 = vsel %vm235, %v2441, 0.0
        %2452 = vadd.xlane.f32.xlu0 %v2451
        %v2453 = vpop.xlane.xlu0 %2452
        %v2454 = vsel %vm235, %v2442, 0.0
        %2455 = vadd.xlane.f32.xlu0 %v2454
        %v2456 = vpop.xlane.xlu0 %2455
        %v2457 = vsel %vm235, %v2443, 0.0
        %2458 = vadd.xlane.f32.xlu0 %v2457
        %v2459 = vpop.xlane.xlu0 %2458
        %v2460 = vsel %vm235, %v2444, 0.0
        %2461 = vadd.xlane.f32.xlu0 %v2460
        %v2462 = vpop.xlane.xlu0 %2461
        %v2463 = vsel %vm235, %v2445, 0.0
        %2464 = vadd.xlane.f32.xlu0 %v2463
        %v2465 = vpop.xlane.xlu0 %2464
        %v2466 = vsel %vm235, %v2446, 0.0
        %2467 = vadd.xlane.f32.xlu0 %v2466
        %v2468 = vpop.xlane.xlu0 %2467
        %v2469 = vsel %vm235, %v2447, 0.0
        %2470 = vadd.xlane.f32.xlu0 %v2469
        %v2471 = vpop.xlane.xlu0 %2470
        %v2472 = vmul.f32 %v2450, %v260
        %v2473 = vmul.f32 %v2453, %v260
        %v2474 = vmul.f32 %v2456, %v260
        %v2475 = vmul.f32 %v2459, %v260
        %v2476 = vmul.f32 %v2462, %v260
        %v2477 = vmul.f32 %v2465, %v260
        %v2478 = vmul.f32 %v2468, %v260
        %v2479 = vmul.f32 %v2471, %v260
        %v2480 = vadd.f32 %v2472, 1e-06
        %v2481 = vadd.f32 %v2473, 1e-06
        %v2482 = vadd.f32 %v2474, 1e-06
        %v2483 = vadd.f32 %v2475, 1e-06
        %v2484 = vadd.f32 %v2476, 1e-06
        %v2485 = vadd.f32 %v2477, 1e-06
        %v2486 = vadd.f32 %v2478, 1e-06
        %v2487 = vadd.f32 %v2479, 1e-06
        %v2488 = vrsqrt.pop %v2480
        %v2489 = vrsqrt.pop %v2481
        %v2490 = vrsqrt.pop %v2482
        %v2491 = vrsqrt.pop %v2483
        %v2492 = vrsqrt.pop %v2484
        %v2493 = vrsqrt.pop %v2485
        %v2494 = vrsqrt.pop %v2486
        %v2495 = vrsqrt.pop %v2487
        %v2496 = vmul.f32 %v2432, %v2488
        %v2497 = vmul.f32 %v2433, %v2489
        %v2498 = vmul.f32 %v2434, %v2490
        %v2499 = vmul.f32 %v2435, %v2491
        %v2500 = vmul.f32 %v2436, %v2492
        %v2501 = vmul.f32 %v2437, %v2493
        %v2502 = vmul.f32 %v2438, %v2494
        %v2503 = vmul.f32 %v2439, %v2495
        %v2505 = vlaneseq
        %v2506 = vshrl.u32 %v2505, 7
        %v2507 = vsub.s32 0, %v2506
        %v2508 = vrot.slane %v2399, %v2507
        %2509 = vrot.lane.b32.xlu0 %v2508, 64
        %v2510 = vpop.permute.xlu0 %2509
        %v2512 = vmul.f32 %v2496, %v2510
        %v2513 = vmul.f32 %v2497, %v2510
        %v2514 = vmul.f32 %v2498, %v2510
        %v2515 = vmul.f32 %v2499, %v2510
        %v2516 = vmul.f32 %v2500, %v2510
        %v2517 = vmul.f32 %v2501, %v2510
        %v2518 = vmul.f32 %v2502, %v2510
        %v2519 = vmul.f32 %v2503, %v2510
        %2520 = vrot.lane.b32.xlu0 %v2508, 32
        %v2521 = vpop.permute.xlu0 %2520
        %v2523 = vadd.f32 %v2512, %v2521
        %v2524 = vadd.f32 %v2513, %v2521
        %v2525 = vadd.f32 %v2514, %v2521
        %v2526 = vadd.f32 %v2515, %v2521
        %v2527 = vadd.f32 %v2516, %v2521
        %v2528 = vadd.f32 %v2517, %v2521
        %v2529 = vadd.f32 %v2518, %v2521
        %v2530 = vadd.f32 %v2519, %v2521
        %v2531 = vld [vmem:[%s2 + $0x4] sm:$0xf]
        %v2532 = vld [vmem:[%s2 + $0x14] sm:$0xf]
        %v2533 = vld [vmem:[%s2 + $0x24] sm:$0xf]
        %v2534 = vld [vmem:[%s2 + $0x34] sm:$0xf]
        %v2535 = vpack.c.bf16 %v2524, %v2523
        %v2536 = vpack.c.bf16 %v2526, %v2525
        %v2537 = vpack.c.bf16 %v2528, %v2527
        %v2538 = vpack.c.bf16 %v2530, %v2529
        %v2539 = vld [vmem:[%s1 + $0x2] sm:$0x1]
        %v2541 = vlaneseq
        %v2542 = vshrl.u32 %v2541, 7
        %v2543 = vsub.s32 0, %v2542
        %v2544 = vrot.slane %v2539, %v2543
        %v2550 = vunpack.c.l.b16 %v2531
        %v2551 = vunpack.c.l.b16 %v2532
        %v2552 = vunpack.c.l.b16 %v2533
        %v2553 = vunpack.c.l.b16 %v2534
        %v2554 = vpack.c.b16 %v2551, %v2550
        %v2555 = vpack.c.b16 %v2553, %v2552
        %v2559 = vsel %vm235, %v2535, 0
        %v2562 = vsel %vm235, %v2536, 0
        %v2565 = vsel %vm235, %v2537, 0
        %v2568 = vsel %vm235, %v2538, 0
        %2570 = vmatprep.subr.bf16.mxu0 0
        %2571 = vmatpush1.bf16.msra.mxu0 %v2554
        %2572 = vmatprep.subr.bf16.mxu0 0
        %2573 = vmatpush1.bf16.msra.mxu0 %v2555
        %2574 = vmatprep.subr.bf16.mxu0 0
        %2575 = vmatpush1.bf16.msra.mxu0 0
        %2576 = vmatprep.subr.bf16.mxu0 0
        %2577 = vmatpush1.bf16.msra.mxu0 0
        %2578 = vmatprep.subr.bf16.mxu0 0
        %2579 = vmatpush1.bf16.msra.mxu0 0
        %2580 = vmatprep.subr.bf16.mxu0 0
        %2581 = vmatpush1.bf16.msra.mxu0 0
        %2582 = vmatprep.subr.bf16.mxu0 0
        %2583 = vmatpush1.bf16.msra.mxu0 0
        %2584 = vmatprep.subr.bf16.mxu0 0
        %2585 = vmatpush1.bf16.msra.mxu0 0
        %2586 = vmatprep.subr.bf16.mxu0 0
        %2587 = vmatpush1.bf16.msra.mxu0 0
        %2588 = vmatprep.subr.bf16.mxu0 0
        %2589 = vmatpush1.bf16.msra.mxu0 0
        %2590 = vmatprep.subr.bf16.mxu0 0
        %2591 = vmatpush1.bf16.msra.mxu0 0
        %2592 = vmatprep.subr.bf16.mxu0 0
        %2593 = vmatpush1.bf16.msra.mxu0 0
        %2594 = vmatprep.subr.bf16.mxu0 0
        %2595 = vmatpush1.bf16.msra.mxu0 0
        %2596 = vmatprep.subr.bf16.mxu0 0
        %2597 = vmatpush1.bf16.msra.mxu0 0
        %2598 = vmatprep.subr.bf16.mxu0 0
        %2599 = vmatpush1.bf16.msra.mxu0 0
        %2600 = vmatprep.subr.bf16.mxu0 0
        %2601 = vmatpush1.bf16.msra.mxu0 0
        %2602 = vmatprep.mubr.bf16.mxu0 0
        %2603 = vmatmul.mubr.bf16.gmra.mrb[0].mxu0 %v2559
        %v2604 = vpop.f32.mrb[0].mxu0
        %v2605 = vadd.f32 %v2544, %v2604
        %v2606 = vpop.f32.mrb[0].mxu0
        %v2607 = vpop.f32.mrb[0].mxu0
        %v2608 = vadd.f32 %v2544, %v2607
        %v2609 = vpop.f32.mrb[0].mxu0
        %2610 = vmatprep.mubr.bf16.mxu0 0
        %2611 = vmatmul.mubr.bf16.gmra.mrb[0].mxu0 %v2562
        %v2612 = vpop.f32.mrb[0].mxu0
        %v2613 = vadd.f32 %v2544, %v2612
        %v2614 = vpop.f32.mrb[0].mxu0
        %v2615 = vpop.f32.mrb[0].mxu0
        %v2616 = vadd.f32 %v2544, %v2615
        %v2617 = vpop.f32.mrb[0].mxu0
        %2618 = vmatprep.mubr.bf16.mxu0 0
        %2619 = vmatmul.mubr.bf16.gmra.mrb[0].mxu0 %v2565
        %v2620 = vpop.f32.mrb[0].mxu0
        %v2621 = vadd.f32 %v2544, %v2620
        %v2622 = vpop.f32.mrb[0].mxu0
        %v2623 = vpop.f32.mrb[0].mxu0
        %v2624 = vadd.f32 %v2544, %v2623
        %v2625 = vpop.f32.mrb[0].mxu0
        %2626 = vmatprep.mubr.bf16.mxu0 0
        %2627 = vmatmul.mubr.bf16.gmra.mrb[0].mxu0 %v2568
        %v2628 = vpop.f32.mrb[0].mxu0
        %v2629 = vadd.f32 %v2544, %v2628
        %v2630 = vpop.f32.mrb[0].mxu0
        %v2631 = vpop.f32.mrb[0].mxu0
        %v2632 = vadd.f32 %v2544, %v2631
        %v2633 = vpop.f32.mrb[0].mxu0
        %2634 = vdwg.mxu0
        %v2635 = vmul.f32 %v2605, %v2605
        %v2636 = vmul.f32 %v2608, %v2608
        %v2637 = vmul.f32 %v2613, %v2613
        %v2638 = vmul.f32 %v2616, %v2616
        %v2639 = vmul.f32 %v2621, %v2621
        %v2640 = vmul.f32 %v2624, %v2624
        %v2641 = vmul.f32 %v2629, %v2629
        %v2642 = vmul.f32 %v2632, %v2632
        %v2643 = vmul.f32 %v2605, %v2635
        %v2644 = vmul.f32 %v2608, %v2636
        %v2645 = vmul.f32 %v2613, %v2637
        %v2646 = vmul.f32 %v2616, %v2638
        %v2647 = vmul.f32 %v2621, %v2639
        %v2648 = vmul.f32 %v2624, %v2640
        %v2649 = vmul.f32 %v2629, %v2641
        %v2650 = vmul.f32 %v2632, %v2642
        %v2651 = vmul.f32 %v2643, 0.044715
        %v2652 = vmul.f32 %v2644, 0.044715
        %v2653 = vmul.f32 %v2645, 0.044715
        %v2654 = vmul.f32 %v2646, 0.044715
        %v2655 = vmul.f32 %v2647, 0.044715
        %v2656 = vmul.f32 %v2648, 0.044715
        %v2657 = vmul.f32 %v2649, 0.044715
        %v2658 = vmul.f32 %v2650, 0.044715
        %v2659 = vadd.f32 %v2605, %v2651
        %v2660 = vadd.f32 %v2608, %v2652
        %v2661 = vadd.f32 %v2613, %v2653
        %v2662 = vadd.f32 %v2616, %v2654
        %v2663 = vadd.f32 %v2621, %v2655
        %v2664 = vadd.f32 %v2624, %v2656
        %v2665 = vadd.f32 %v2629, %v2657
        %v2666 = vadd.f32 %v2632, %v2658
        %v2667 = vmul.f32 %v2659, 0.7978846
        %v2668 = vmul.f32 %v2660, 0.7978846
        %v2669 = vmul.f32 %v2661, 0.7978846
        %v2670 = vmul.f32 %v2662, 0.7978846
        %v2671 = vmul.f32 %v2663, 0.7978846
        %v2672 = vmul.f32 %v2664, 0.7978846
        %v2673 = vmul.f32 %v2665, 0.7978846
        %v2674 = vmul.f32 %v2666, 0.7978846
        %v2675 = vtanh.pop %v2667
        %v2676 = vtanh.pop %v2668
        %v2677 = vtanh.pop %v2669
        %v2678 = vtanh.pop %v2670
        %v2679 = vtanh.pop %v2671
        %v2680 = vtanh.pop %v2672
        %v2681 = vtanh.pop %v2673
        %v2682 = vtanh.pop %v2674
        %v2683 = vadd.f32 %v2675, 1.0
        %v2684 = vadd.f32 %v2676, 1.0
        %v2685 = vadd.f32 %v2677, 1.0
        %v2686 = vadd.f32 %v2678, 1.0
        %v2687 = vadd.f32 %v2679, 1.0
        %v2688 = vadd.f32 %v2680, 1.0
        %v2689 = vadd.f32 %v2681, 1.0
        %v2690 = vadd.f32 %v2682, 1.0
        %v2691 = vmul.f32 %v2683, 0.5
        %v2692 = vmul.f32 %v2684, 0.5
        %v2693 = vmul.f32 %v2685, 0.5
        %v2694 = vmul.f32 %v2686, 0.5
        %v2695 = vmul.f32 %v2687, 0.5
        %v2696 = vmul.f32 %v2688, 0.5
        %v2697 = vmul.f32 %v2689, 0.5
        %v2698 = vmul.f32 %v2690, 0.5
        %v2699 = vmul.f32 %v2605, %v2691
        %v2700 = vmul.f32 %v2608, %v2692
        %v2701 = vmul.f32 %v2613, %v2693
        %v2702 = vmul.f32 %v2616, %v2694
        %v2703 = vmul.f32 %v2621, %v2695
        %v2704 = vmul.f32 %v2624, %v2696
        %v2705 = vmul.f32 %v2629, %v2697
        %v2706 = vmul.f32 %v2632, %v2698
        %v2707 = vld [vmem:[%s4] sm:$0xf]
        %v2708 = vld [vmem:[%s4 + $0x4] sm:$0xf]
        %v2709 = vld [vmem:[%s4 + $0x8] sm:$0xf]
        %v2710 = vld [vmem:[%s4 + $0xc] sm:$0xf]
        %v2711 = vld [vmem:[%s4 + $0x10] sm:$0xf]
        %v2712 = vld [vmem:[%s4 + $0x14] sm:$0xf]
        %v2713 = vld [vmem:[%s4 + $0x18] sm:$0xf]
        %v2714 = vld [vmem:[%s4 + $0x1c] sm:$0xf]
        %v2715 = vld [vmem:[%s4 + $0x20] sm:$0xf]
        %v2716 = vld [vmem:[%s4 + $0x24] sm:$0xf]
        %v2717 = vld [vmem:[%s4 + $0x28] sm:$0xf]
        %v2718 = vld [vmem:[%s4 + $0x2c] sm:$0xf]
        %v2719 = vld [vmem:[%s4 + $0x30] sm:$0xf]
        %v2720 = vld [vmem:[%s4 + $0x34] sm:$0xf]
        %v2721 = vld [vmem:[%s4 + $0x38] sm:$0xf]
        %v2722 = vld [vmem:[%s4 + $0x3c] sm:$0xf]
        %v2723 = vpack.c.bf16 %v2700, %v2699
        %v2724 = vpack.c.bf16 %v2702, %v2701
        %v2725 = vpack.c.bf16 %v2704, %v2703
        %v2726 = vpack.c.bf16 %v2706, %v2705
        %v2727 = vld [vmem:[%s1 + $0x3] sm:$0x1]
        %v2729 = vlaneseq
        %v2730 = vshrl.u32 %v2729, 7
        %v2731 = vsub.s32 0, %v2730
        %v2732 = vrot.slane %v2727, %v2731
        %v2750 = vunpack.c.l.b16 %v2707
        %v2751 = vunpack.c.l.b16 %v2708
        %v2752 = vunpack.c.l.b16 %v2709
        %v2753 = vunpack.c.l.b16 %v2710
        %v2754 = vunpack.c.l.b16 %v2711
        %v2755 = vunpack.c.l.b16 %v2712
        %v2756 = vunpack.c.l.b16 %v2713
        %v2757 = vunpack.c.l.b16 %v2714
        %v2758 = vunpack.c.l.b16 %v2715
        %v2759 = vunpack.c.l.b16 %v2716
        %v2760 = vunpack.c.l.b16 %v2717
        %v2761 = vunpack.c.l.b16 %v2718
        %v2762 = vunpack.c.l.b16 %v2719
        %v2763 = vunpack.c.l.b16 %v2720
        %v2764 = vunpack.c.l.b16 %v2721
        %v2765 = vunpack.c.l.b16 %v2722
        %v2766 = vpack.c.b16 %v2751, %v2750
        %v2767 = vpack.c.b16 %v2753, %v2752
        %v2768 = vpack.c.b16 %v2755, %v2754
        %v2769 = vpack.c.b16 %v2757, %v2756
        %v2770 = vpack.c.b16 %v2759, %v2758
        %v2771 = vpack.c.b16 %v2761, %v2760
        %v2772 = vpack.c.b16 %v2763, %v2762
        %v2773 = vpack.c.b16 %v2765, %v2764
        %2782 = vmatprep.subr.bf16.mxu0 0
        %2783 = vmatpush1.bf16.msra.mxu0 %v2766
        %2784 = vmatprep.subr.bf16.mxu0 0
        %2785 = vmatpush1.bf16.msra.mxu0 %v2767
        %2786 = vmatprep.subr.bf16.mxu0 0
        %2787 = vmatpush1.bf16.msra.mxu0 %v2768
        %2788 = vmatprep.subr.bf16.mxu0 0
        %2789 = vmatpush1.bf16.msra.mxu0 %v2769
        %2790 = vmatprep.subr.bf16.mxu0 0
        %2791 = vmatpush1.bf16.msra.mxu0 %v2770
        %2792 = vmatprep.subr.bf16.mxu0 0
        %2793 = vmatpush1.bf16.msra.mxu0 %v2771
        %2794 = vmatprep.subr.bf16.mxu0 0
        %2795 = vmatpush1.bf16.msra.mxu0 %v2772
        %2796 = vmatprep.subr.bf16.mxu0 0
        %2797 = vmatpush1.bf16.msra.mxu0 %v2773
        %2798 = vmatprep.subr.bf16.mxu0 0
        %2799 = vmatpush1.bf16.msra.mxu0 0
        %2800 = vmatprep.subr.bf16.mxu0 0
        %2801 = vmatpush1.bf16.msra.mxu0 0
        %2802 = vmatprep.subr.bf16.mxu0 0
        %2803 = vmatpush1.bf16.msra.mxu0 0
        %2804 = vmatprep.subr.bf16.mxu0 0
        %2805 = vmatpush1.bf16.msra.mxu0 0
        %2806 = vmatprep.subr.bf16.mxu0 0
        %2807 = vmatpush1.bf16.msra.mxu0 0
        %2808 = vmatprep.subr.bf16.mxu0 0
        %2809 = vmatpush1.bf16.msra.mxu0 0
        %2810 = vmatprep.subr.bf16.mxu0 0
        %2811 = vmatpush1.bf16.msra.mxu0 0
        %2812 = vmatprep.subr.bf16.mxu0 0
        %2813 = vmatpush1.bf16.msra.mxu0 0
        %2814 = vmatprep.mubr.bf16.mxu0 0
        %2815 = vmatmul.mubr.bf16.gmra.mrb[0].mxu0 %v2723
        %v2816 = vpop.f32.mrb[0].mxu0
        %v2817 = vadd.f32 %v2732, %v2816
        %v2818 = vpop.f32.mrb[0].mxu0
        %v2819 = vpop.f32.mrb[0].mxu0
        %v2820 = vadd.f32 %v2732, %v2819
        %v2821 = vpop.f32.mrb[0].mxu0
        %2822 = vmatprep.mubr.bf16.mxu0 0
        %2823 = vmatmul.mubr.bf16.gmra.mrb[0].mxu0 %v2724
        %v2824 = vpop.f32.mrb[0].mxu0
        %v2825 = vadd.f32 %v2732, %v2824
        %v2826 = vpop.f32.mrb[0].mxu0
        %v2827 = vpop.f32.mrb[0].mxu0
        %v2828 = vadd.f32 %v2732, %v2827
        %v2829 = vpop.f32.mrb[0].mxu0
        %2830 = vmatprep.mubr.bf16.mxu0 0
        %2831 = vmatmul.mubr.bf16.gmra.mrb[0].mxu0 %v2725
        %v2832 = vpop.f32.mrb[0].mxu0
        %v2833 = vadd.f32 %v2732, %v2832
        %v2834 = vpop.f32.mrb[0].mxu0
        %v2835 = vpop.f32.mrb[0].mxu0
        %v2836 = vadd.f32 %v2732, %v2835
        %v2837 = vpop.f32.mrb[0].mxu0
        %2838 = vmatprep.mubr.bf16.mxu0 0
        %2839 = vmatmul.mubr.bf16.gmra.mrb[0].mxu0 %v2726
        %v2840 = vpop.f32.mrb[0].mxu0
        %v2841 = vadd.f32 %v2732, %v2840
        %v2842 = vpop.f32.mrb[0].mxu0
        %v2843 = vpop.f32.mrb[0].mxu0
        %v2844 = vadd.f32 %v2732, %v2843
        %v2845 = vpop.f32.mrb[0].mxu0
        %2846 = vdwg.mxu0
        %v2847 = vadd.f32 %v2391, %v2817
        %v2848 = vadd.f32 %v2392, %v2820
        %v2849 = vadd.f32 %v2393, %v2825
        %v2850 = vadd.f32 %v2394, %v2828
        %v2851 = vadd.f32 %v2395, %v2833
        %v2852 = vadd.f32 %v2396, %v2836
        %v2853 = vadd.f32 %v2397, %v2841
        %v2854 = vadd.f32 %v2398, %v2844
        %v2855 = vsel %vm235, %v2847, 0.0
        %v2856 = vrot.slane %v2855, 4
        %v2857 = vadd.f32 %v2855, %v2856
        %v2858 = vrot.slane %v2857, 2
        %v2859 = vadd.f32 %v2857, %v2858
        %v2860 = vrot.slane %v2859, 1
        %v2861 = vadd.f32 %v2859, %v2860
        %v2862 = vsel %vm235, %v2848, 0.0
        %v2863 = vrot.slane %v2862, 4
        %v2864 = vadd.f32 %v2862, %v2863
        %v2865 = vrot.slane %v2864, 2
        %v2866 = vadd.f32 %v2864, %v2865
        %v2867 = vrot.slane %v2866, 1
        %v2868 = vadd.f32 %v2866, %v2867
        %v2869 = vsel %vm235, %v2849, 0.0
        %v2870 = vrot.slane %v2869, 4
        %v2871 = vadd.f32 %v2869, %v2870
        %v2872 = vrot.slane %v2871, 2
        %v2873 = vadd.f32 %v2871, %v2872
        %v2874 = vrot.slane %v2873, 1
        %v2875 = vadd.f32 %v2873, %v2874
        %v2876 = vsel %vm235, %v2850, 0.0
        %v2877 = vrot.slane %v2876, 4
        %v2878 = vadd.f32 %v2876, %v2877
        %v2879 = vrot.slane %v2878, 2
        %v2880 = vadd.f32 %v2878, %v2879
        %v2881 = vrot.slane %v2880, 1
        %v2882 = vadd.f32 %v2880, %v2881
        %v2883 = vsel %vm235, %v2851, 0.0
        %v2884 = vrot.slane %v2883, 4
        %v2885 = vadd.f32 %v2883, %v2884
        %v2886 = vrot.slane %v2885, 2
        %v2887 = vadd.f32 %v2885, %v2886
        %v2888 = vrot.slane %v2887, 1
        %v2889 = vadd.f32 %v2887, %v2888
        %v2890 = vsel %vm235, %v2852, 0.0
        %v2891 = vrot.slane %v2890, 4
        %v2892 = vadd.f32 %v2890, %v2891
        %v2893 = vrot.slane %v2892, 2
        %v2894 = vadd.f32 %v2892, %v2893
        %v2895 = vrot.slane %v2894, 1
        %v2896 = vadd.f32 %v2894, %v2895
        %v2897 = vsel %vm235, %v2853, 0.0
        %v2898 = vrot.slane %v2897, 4
        %v2899 = vadd.f32 %v2897, %v2898
        %v2900 = vrot.slane %v2899, 2
        %v2901 = vadd.f32 %v2899, %v2900
        %v2902 = vrot.slane %v2901, 1
        %v2903 = vadd.f32 %v2901, %v2902
        %v2904 = vsel %vm235, %v2854, 0.0
        %v2905 = vrot.slane %v2904, 4
        %v2906 = vadd.f32 %v2904, %v2905
        %v2907 = vrot.slane %v2906, 2
        %v2908 = vadd.f32 %v2906, %v2907
        %v2909 = vrot.slane %v2908, 1
        %v2910 = vadd.f32 %v2908, %v2909
        %v2911 = vld [vmem:[%s2 + $0x8] sm:$0xf]
        %v2912 = vld [vmem:[%s2 + $0x18] sm:$0xf]
        %v2913 = vld [vmem:[%s2 + $0x28] sm:$0xf]
        %v2914 = vld [vmem:[%s2 + $0x38] sm:$0xf]
        %v2915 = vpack.c.bf16 %v2861, %v2861
        %v2916 = vpack.c.bf16 %v2868, %v2868
        %v2917 = vpack.c.bf16 %v2875, %v2875
        %v2918 = vpack.c.bf16 %v2882, %v2882
        %v2919 = vpack.c.bf16 %v2889, %v2889
        %v2920 = vpack.c.bf16 %v2896, %v2896
        %v2921 = vpack.c.bf16 %v2903, %v2903
        %v2922 = vpack.c.bf16 %v2910, %v2910
        %v2931 = vunpack.c.l.b16 %v2915
        %v2932 = vunpack.c.l.b16 %v2916
        %v2933 = vunpack.c.l.b16 %v2917
        %v2934 = vunpack.c.l.b16 %v2918
        %v2935 = vunpack.c.l.b16 %v2919
        %v2936 = vunpack.c.l.b16 %v2920
        %v2937 = vunpack.c.l.b16 %v2921
        %v2938 = vunpack.c.l.b16 %v2922
        %vm2939 = vcmask 1041409
        %v2940 = vsel %vm2939, %v2932, %v2931
        %vm2941 = vcmask 1042434
        %v2942 = vsel %vm2941, %v2933, %v2940
        %vm2943 = vcmask 1043459
        %v2944 = vsel %vm2943, %v2934, %v2942
        %vm2945 = vcmask 1044484
        %v2946 = vsel %vm2945, %v2935, %v2944
        %vm2947 = vcmask 1045509
        %v2948 = vsel %vm2947, %v2936, %v2946
        %vm2949 = vcmask 1046534
        %v2950 = vsel %vm2949, %v2937, %v2948
        %vm2951 = vcmask 1047559
        %v2952 = vsel %vm2951, %v2938, %v2950
        %v2953 = vpack.c.b16 %v2952, %v2952
        %v2958 = vunpack.c.l.b16 %v2911
        %v2959 = vunpack.c.l.b16 %v2912
        %v2960 = vunpack.c.l.b16 %v2913
        %v2961 = vunpack.c.l.b16 %v2914
        %v2962 = vpack.c.b16 %v2959, %v2958
        %v2963 = vpack.c.b16 %v2961, %v2960
        %2966 = vrot.lane.b32.xlu0 %v2732, 96
        %v2967 = vpop.permute.xlu0 %2966
        %v2970 = vsel %vm235, %v2953, 0
        %2972 = vmatprep.subr.bf16.mxu0 0
        %2973 = vmatpush1.bf16.msra.mxu0 %v2962
        %2974 = vmatprep.subr.bf16.mxu0 0
        %2975 = vmatpush1.bf16.msra.mxu0 %v2963
        %2976 = vmatprep.subr.bf16.mxu0 0
        %2977 = vmatpush1.bf16.msra.mxu0 0
        %2978 = vmatprep.subr.bf16.mxu0 0
        %2979 = vmatpush1.bf16.msra.mxu0 0
        %2980 = vmatprep.subr.bf16.mxu0 0
        %2981 = vmatpush1.bf16.msra.mxu0 0
        %2982 = vmatprep.subr.bf16.mxu0 0
        %2983 = vmatpush1.bf16.msra.mxu0 0
        %2984 = vmatprep.subr.bf16.mxu0 0
        %2985 = vmatpush1.bf16.msra.mxu0 0
        %2986 = vmatprep.subr.bf16.mxu0 0
        %2987 = vmatpush1.bf16.msra.mxu0 0
        %2988 = vmatprep.subr.bf16.mxu0 0
        %2989 = vmatpush1.bf16.msra.mxu0 0
        %2990 = vmatprep.subr.bf16.mxu0 0
        %2991 = vmatpush1.bf16.msra.mxu0 0
        %2992 = vmatprep.subr.bf16.mxu0 0
        %2993 = vmatpush1.bf16.msra.mxu0 0
        %2994 = vmatprep.subr.bf16.mxu0 0
        %2995 = vmatpush1.bf16.msra.mxu0 0
        %2996 = vmatprep.subr.bf16.mxu0 0
        %2997 = vmatpush1.bf16.msra.mxu0 0
        %2998 = vmatprep.subr.bf16.mxu0 0
        %2999 = vmatpush1.bf16.msra.mxu0 0
        %3000 = vmatprep.subr.bf16.mxu0 0
        %3001 = vmatpush1.bf16.msra.mxu0 0
        %3002 = vmatprep.subr.bf16.mxu0 0
        %3003 = vmatpush1.bf16.msra.mxu0 0
        %3004 = vmatprep.mubr.bf16.mxu0 0
        %3005 = vmatmul.mubr.bf16.gmra.mrb[0].mxu0 %v2970
        %v3006 = vpop.f32.mrb[0].mxu0
        %v3007 = vadd.f32 %v2967, %v3006
        %v3008 = vpop.f32.mrb[0].mxu0
        %v3009 = vpop.f32.mrb[0].mxu0
        %v3010 = vpop.f32.mrb[0].mxu0
        %3011 = vdwg.mxu0
        %v3012 = vmax.f32 %v3007, 0.0
        %v3013 = vld [vmem:[%s3] sm:$0xf]
        %v3014 = vld [vmem:[%s3 + $0x8] sm:$0xf]
        %v3015 = vld [vmem:[%s3 + $0x10] sm:$0xf]
        %v3016 = vld [vmem:[%s3 + $0x18] sm:$0xf]
        %v3017 = vld [vmem:[%s3 + $0x20] sm:$0xf]
        %v3018 = vld [vmem:[%s3 + $0x28] sm:$0xf]
        %v3019 = vld [vmem:[%s3 + $0x30] sm:$0xf]
        %v3020 = vld [vmem:[%s3 + $0x38] sm:$0xf]
        %v3021 = vld [vmem:[%s1 + $0x3] sm:$0x3]
        %v3022 = vpack.c.bf16 %v3012, %v3012
        %v3024 = vlaneseq
        %v3025 = vshrl.u32 %v3024, 7
        %v3026 = vsub.s32 0, %v3025
        %v3027 = vrot.slane %v3021, %v3026
        %v3028 = vlaneseq
        %v3029 = vshrl.u32 %v3028, 7
        %v3030 = vsub.s32 1, %v3029
        %v3031 = vrot.slane %v3021, %v3030
        %v3040 = vunpack.c.l.b16 %v3013
        %v3041 = vunpack.c.l.b16 %v3014
        %v3042 = vunpack.c.l.b16 %v3015
        %v3043 = vunpack.c.l.b16 %v3016
        %v3044 = vunpack.c.l.b16 %v3017
        %v3045 = vunpack.c.l.b16 %v3018
        %v3046 = vunpack.c.l.b16 %v3019
        %v3047 = vunpack.c.l.b16 %v3020
        %v3048 = vpack.c.b16 %v3041, %v3040
        %v3049 = vpack.c.b16 %v3043, %v3042
        %v3050 = vpack.c.b16 %v3045, %v3044
        %v3051 = vpack.c.b16 %v3047, %v3046
        %3056 = vrot.lane.b32.xlu0 %v3027, 32
        %v3057 = vpop.permute.xlu0 %3056
        %3058 = vrot.lane.b32.xlu0 %v3031, 32
        %v3059 = vpop.permute.xlu0 %3058
        %v3060 = vsel %vm235, %v3057, %v3059
        %vm3062 = vcmask 523264
        %v3064 = vsel %vm3062, %v3022, 0
        %3066 = vmatprep.subr.bf16.mxu0 0
        %3067 = vmatpush1.bf16.msra.mxu0 %v3048
        %3068 = vmatprep.subr.bf16.mxu0 0
        %3069 = vmatpush1.bf16.msra.mxu0 %v3049
        %3070 = vmatprep.subr.bf16.mxu0 0
        %3071 = vmatpush1.bf16.msra.mxu0 %v3050
        %3072 = vmatprep.subr.bf16.mxu0 0
        %3073 = vmatpush1.bf16.msra.mxu0 %v3051
        %3074 = vmatprep.subr.bf16.mxu0 0
        %3075 = vmatpush1.bf16.msra.mxu0 0
        %3076 = vmatprep.subr.bf16.mxu0 0
        %3077 = vmatpush1.bf16.msra.mxu0 0
        %3078 = vmatprep.subr.bf16.mxu0 0
        %3079 = vmatpush1.bf16.msra.mxu0 0
        %3080 = vmatprep.subr.bf16.mxu0 0
        %3081 = vmatpush1.bf16.msra.mxu0 0
        %3082 = vmatprep.subr.bf16.mxu0 0
        %3083 = vmatpush1.bf16.msra.mxu0 0
        %3084 = vmatprep.subr.bf16.mxu0 0
        %3085 = vmatpush1.bf16.msra.mxu0 0
        %3086 = vmatprep.subr.bf16.mxu0 0
        %3087 = vmatpush1.bf16.msra.mxu0 0
        %3088 = vmatprep.subr.bf16.mxu0 0
        %3089 = vmatpush1.bf16.msra.mxu0 0
        %3090 = vmatprep.subr.bf16.mxu0 0
        %3091 = vmatpush1.bf16.msra.mxu0 0
        %3092 = vmatprep.subr.bf16.mxu0 0
        %3093 = vmatpush1.bf16.msra.mxu0 0
        %3094 = vmatprep.subr.bf16.mxu0 0
        %3095 = vmatpush1.bf16.msra.mxu0 0
        %3096 = vmatprep.subr.bf16.mxu0 0
        %3097 = vmatpush1.bf16.msra.mxu0 0
        %3098 = vmatprep.mubr.bf16.mxu0 0
        %3099 = vmatmul.mubr.bf16.gmra.mrb[0].mxu0 %v3064
        %v3100 = vpop.f32.mrb[0].mxu0
        %v3101 = vadd.f32 %v3060, %v3100
        %v3102 = vpop.f32.mrb[0].mxu0
        %v3103 = vpop.f32.mrb[0].mxu0
        %v3104 = vpop.f32.mrb[0].mxu0
        %3105 = vdwg.mxu0
        %v3106 = vmax.f32 %v3101, 0.0
        %v3107 = vld [vmem:[%s1 + $0x4] sm:$0x1]
        %v3108 = vpack.c.bf16 %v3106, %v3106
        %v3110 = vlaneseq
        %v3111 = vshrl.u32 %v3110, 7
        %v3112 = vsub.s32 0, %v3111
        %v3113 = vrot.slane %v3107, %v3112
        %3114 = vrot.lane.b32.xlu0 %v2766, 96
        %v3115 = vpop.permute.xlu0 %3114
        %3116 = vrot.lane.b32.xlu0 %v2767, 96
        %v3117 = vpop.permute.xlu0 %3116
        %3118 = vrot.lane.b32.xlu0 %v2768, 96
        %v3119 = vpop.permute.xlu0 %3118
        %3120 = vrot.lane.b32.xlu0 %v2769, 96
        %v3121 = vpop.permute.xlu0 %3120
        %3122 = vrot.lane.b32.xlu0 %v2770, 96
        %v3123 = vpop.permute.xlu0 %3122
        %3124 = vrot.lane.b32.xlu0 %v2771, 96
        %v3125 = vpop.permute.xlu0 %3124
        %3126 = vrot.lane.b32.xlu0 %v2772, 96
        %v3127 = vpop.permute.xlu0 %3126
        %3128 = vrot.lane.b32.xlu0 %v2773, 96
        %v3129 = vpop.permute.xlu0 %3128
        %3138 = vrot.lane.b32.xlu0 %v3113, 32
        %v3139 = vpop.permute.xlu0 %3138
        %3141 = vmatprep.subr.bf16.mxu0 0
        %3142 = vmatpush1.bf16.msra.mxu0 %v3115
        %3143 = vmatprep.subr.bf16.mxu0 0
        %3144 = vmatpush1.bf16.msra.mxu0 %v3117
        %3145 = vmatprep.subr.bf16.mxu0 0
        %3146 = vmatpush1.bf16.msra.mxu0 %v3119
        %3147 = vmatprep.subr.bf16.mxu0 0
        %3148 = vmatpush1.bf16.msra.mxu0 %v3121
        %3149 = vmatprep.subr.bf16.mxu0 0
        %3150 = vmatpush1.bf16.msra.mxu0 %v3123
        %3151 = vmatprep.subr.bf16.mxu0 0
        %3152 = vmatpush1.bf16.msra.mxu0 %v3125
        %3153 = vmatprep.subr.bf16.mxu0 0
        %3154 = vmatpush1.bf16.msra.mxu0 %v3127
        %3155 = vmatprep.subr.bf16.mxu0 0
        %3156 = vmatpush1.bf16.msra.mxu0 %v3129
        %3157 = vmatprep.subr.bf16.mxu0 0
        %3158 = vmatpush1.bf16.msra.mxu0 0
        %3159 = vmatprep.subr.bf16.mxu0 0
        %3160 = vmatpush1.bf16.msra.mxu0 0
        %3161 = vmatprep.subr.bf16.mxu0 0
        %3162 = vmatpush1.bf16.msra.mxu0 0
        %3163 = vmatprep.subr.bf16.mxu0 0
        %3164 = vmatpush1.bf16.msra.mxu0 0
        %3165 = vmatprep.subr.bf16.mxu0 0
        %3166 = vmatpush1.bf16.msra.mxu0 0
        %3167 = vmatprep.subr.bf16.mxu0 0
        %3168 = vmatpush1.bf16.msra.mxu0 0
        %3169 = vmatprep.subr.bf16.mxu0 0
        %3170 = vmatpush1.bf16.msra.mxu0 0
        %3171 = vmatprep.subr.bf16.mxu0 0
        %3172 = vmatpush1.bf16.msra.mxu0 0
        %3173 = vmatprep.mubr.bf16.mxu0 0
        %3174 = vmatmul.mubr.bf16.gmra.mrb[0].mxu0 %v3108
        %v3175 = vpop.f32.mrb[0].mxu0
        %v3176 = vadd.f32 %v3139, %v3175
        %v3177 = vpop.f32.mrb[0].mxu0
        %v3178 = vpop.f32.mrb[0].mxu0
        %v3179 = vpop.f32.mrb[0].mxu0
        %3180 = vdwg.mxu0
        %v3181 = vmax.f32 %v3176, 0.0
        %v3182 = vld [vmem:[%s1 + $0x5] sm:$0x1]
        %v3183 = vpack.c.bf16 %v3181, %v3181
        %v3185 = vlaneseq
        %v3186 = vshrl.u32 %v3185, 7
        %v3187 = vsub.s32 0, %v3186
        %v3188 = vrot.slane %v3182, %v3187
        %3190 = vrot.lane.b32.xlu0 %v2962, 64
        %v3191 = vpop.permute.xlu0 %3190
        %3192 = vrot.lane.b32.xlu0 %v2963, 64
        %v3193 = vpop.permute.xlu0 %3192
        %v3197 = vsel %vm235, %v3183, 0
        %3199 = vmatprep.subr.bf16.mxu0 0
        %3200 = vmatpush1.bf16.msra.mxu0 %v3191
        %3201 = vmatprep.subr.bf16.mxu0 0
        %3202 = vmatpush1.bf16.msra.mxu0 %v3193
        %3203 = vmatprep.subr.bf16.mxu0 0
        %3204 = vmatpush1.bf16.msra.mxu0 0
        %3205 = vmatprep.subr.bf16.mxu0 0
        %3206 = vmatpush1.bf16.msra.mxu0 0
        %3207 = vmatprep.subr.bf16.mxu0 0
        %3208 = vmatpush1.bf16.msra.mxu0 0
        %3209 = vmatprep.subr.bf16.mxu0 0
        %3210 = vmatpush1.bf16.msra.mxu0 0
        %3211 = vmatprep.subr.bf16.mxu0 0
        %3212 = vmatpush1.bf16.msra.mxu0 0
        %3213 = vmatprep.subr.bf16.mxu0 0
        %3214 = vmatpush1.bf16.msra.mxu0 0
        %3215 = vmatprep.subr.bf16.mxu0 0
        %3216 = vmatpush1.bf16.msra.mxu0 0
        %3217 = vmatprep.subr.bf16.mxu0 0
        %3218 = vmatpush1.bf16.msra.mxu0 0
        %3219 = vmatprep.subr.bf16.mxu0 0
        %3220 = vmatpush1.bf16.msra.mxu0 0
        %3221 = vmatprep.subr.bf16.mxu0 0
        %3222 = vmatpush1.bf16.msra.mxu0 0
        %3223 = vmatprep.subr.bf16.mxu0 0
        %3224 = vmatpush1.bf16.msra.mxu0 0
        %3225 = vmatprep.subr.bf16.mxu0 0
        %3226 = vmatpush1.bf16.msra.mxu0 0
        %3227 = vmatprep.subr.bf16.mxu0 0
        %3228 = vmatpush1.bf16.msra.mxu0 0
        %3229 = vmatprep.subr.bf16.mxu0 0
        %3230 = vmatpush1.bf16.msra.mxu0 0
        %3231 = vmatprep.mubr.bf16.mxu0 0
        %3232 = vmatmul.mubr.bf16.gmra.mrb[0].mxu0 %v3197
        %v3233 = vpop.f32.mrb[0].mxu0
        %v3234 = vadd.f32 %v3188, %v3233
        %v3235 = vpop.f32.mrb[0].mxu0
        %v3236 = vpop.f32.mrb[0].mxu0
        %v3237 = vpop.f32.mrb[0].mxu0
        %3238 = vdwg.mxu0
        %v3239 = vmax.f32 %v3234, 0.0
        %v3240 = vld [vmem:[%s3 + $0x4] sm:$0xf]
        %v3241 = vld [vmem:[%s3 + $0xc] sm:$0xf]
        %v3242 = vld [vmem:[%s3 + $0x14] sm:$0xf]
        %v3243 = vld [vmem:[%s3 + $0x1c] sm:$0xf]
        %v3244 = vld [vmem:[%s3 + $0x24] sm:$0xf]
        %v3245 = vld [vmem:[%s3 + $0x2c] sm:$0xf]
        %v3246 = vld [vmem:[%s3 + $0x34] sm:$0xf]
        %v3247 = vld [vmem:[%s3 + $0x3c] sm:$0xf]
        %v3248 = vld [vmem:[%s1 + $0x5] sm:$0x3]
        %v3249 = vpack.c.bf16 %v3239, %v3239
        %v3251 = vlaneseq
        %v3252 = vshrl.u32 %v3251, 7
        %v3253 = vsub.s32 0, %v3252
        %v3254 = vrot.slane %v3248, %v3253
        %v3255 = vlaneseq
        %v3256 = vshrl.u32 %v3255, 7
        %v3257 = vsub.s32 1, %v3256
        %v3258 = vrot.slane %v3248, %v3257
        %v3267 = vunpack.c.l.b16 %v3240
        %v3268 = vunpack.c.l.b16 %v3241
        %v3269 = vunpack.c.l.b16 %v3242
        %v3270 = vunpack.c.l.b16 %v3243
        %v3271 = vunpack.c.l.b16 %v3244
        %v3272 = vunpack.c.l.b16 %v3245
        %v3273 = vunpack.c.l.b16 %v3246
        %v3274 = vunpack.c.l.b16 %v3247
        %v3275 = vpack.c.b16 %v3268, %v3267
        %v3276 = vpack.c.b16 %v3270, %v3269
        %v3277 = vpack.c.b16 %v3272, %v3271
        %v3278 = vpack.c.b16 %v3274, %v3273
        %3283 = vrot.lane.b32.xlu0 %v3254, 64
        %v3284 = vpop.permute.xlu0 %3283
        %3285 = vrot.lane.b32.xlu0 %v3258, 64
        %v3286 = vpop.permute.xlu0 %3285
        %v3287 = vsel %vm3062, %v3284, %v3286
        %v3290 = vsel %vm3062, %v3249, 0
        %3292 = vmatprep.subr.bf16.mxu0 0
        %3293 = vmatpush1.bf16.msra.mxu0 %v3275
        %3294 = vmatprep.subr.bf16.mxu0 0
        %3295 = vmatpush1.bf16.msra.mxu0 %v3276
        %3296 = vmatprep.subr.bf16.mxu0 0
        %3297 = vmatpush1.bf16.msra.mxu0 %v3277
        %3298 = vmatprep.subr.bf16.mxu0 0
        %3299 = vmatpush1.bf16.msra.mxu0 %v3278
        %3300 = vmatprep.subr.bf16.mxu0 0
        %3301 = vmatpush1.bf16.msra.mxu0 0
        %3302 = vmatprep.subr.bf16.mxu0 0
        %3303 = vmatpush1.bf16.msra.mxu0 0
        %3304 = vmatprep.subr.bf16.mxu0 0
        %3305 = vmatpush1.bf16.msra.mxu0 0
        %3306 = vmatprep.subr.bf16.mxu0 0
        %3307 = vmatpush1.bf16.msra.mxu0 0
        %3308 = vmatprep.subr.bf16.mxu0 0
        %3309 = vmatpush1.bf16.msra.mxu0 0
        %3310 = vmatprep.subr.bf16.mxu0 0
        %3311 = vmatpush1.bf16.msra.mxu0 0
        %3312 = vmatprep.subr.bf16.mxu0 0
        %3313 = vmatpush1.bf16.msra.mxu0 0
        %3314 = vmatprep.subr.bf16.mxu0 0
        %3315 = vmatpush1.bf16.msra.mxu0 0
        %3316 = vmatprep.subr.bf16.mxu0 0
        %3317 = vmatpush1.bf16.msra.mxu0 0
        %3318 = vmatprep.subr.bf16.mxu0 0
        %3319 = vmatpush1.bf16.msra.mxu0 0
        %3320 = vmatprep.subr.bf16.mxu0 0
        %3321 = vmatpush1.bf16.msra.mxu0 0
        %3322 = vmatprep.subr.bf16.mxu0 0
        %3323 = vmatpush1.bf16.msra.mxu0 0
        %3324 = vmatprep.mubr.bf16.mxu0 0
        %3325 = vmatmul.mubr.bf16.gmra.mrb[0].mxu0 %v3290
        %v3326 = vpop.f32.mrb[0].mxu0
        %v3327 = vadd.f32 %v3287, %v3326
        %v3328 = vpop.f32.mrb[0].mxu0
        %v3329 = vpop.f32.mrb[0].mxu0
        %v3330 = vpop.f32.mrb[0].mxu0
        %3331 = vdwg.mxu0
        %v3332 = vmax.f32 %v3327, 0.0
        %v3333 = vld [vmem:[%s1 + $0x6] sm:$0x1]
        %v3334 = vpack.c.bf16 %v3332, %v3332
        %v3336 = vlaneseq
        %v3337 = vshrl.u32 %v3336, 7
        %v3338 = vsub.s32 0, %v3337
        %v3339 = vrot.slane %v3333, %v3338
        %3340 = vrot.lane.b32.xlu0 %v2766, 64
        %v3341 = vpop.permute.xlu0 %3340
        %3342 = vrot.lane.b32.xlu0 %v2767, 64
        %v3343 = vpop.permute.xlu0 %3342
        %3344 = vrot.lane.b32.xlu0 %v2768, 64
        %v3345 = vpop.permute.xlu0 %3344
        %3346 = vrot.lane.b32.xlu0 %v2769, 64
        %v3347 = vpop.permute.xlu0 %3346
        %3348 = vrot.lane.b32.xlu0 %v2770, 64
        %v3349 = vpop.permute.xlu0 %3348
        %3350 = vrot.lane.b32.xlu0 %v2771, 64
        %v3351 = vpop.permute.xlu0 %3350
        %3352 = vrot.lane.b32.xlu0 %v2772, 64
        %v3353 = vpop.permute.xlu0 %3352
        %3354 = vrot.lane.b32.xlu0 %v2773, 64
        %v3355 = vpop.permute.xlu0 %3354
        %3364 = vrot.lane.b32.xlu0 %v3339, 64
        %v3365 = vpop.permute.xlu0 %3364
        %3367 = vmatprep.subr.bf16.mxu0 0
        %3368 = vmatpush1.bf16.msra.mxu0 %v3341
        %3369 = vmatprep.subr.bf16.mxu0 0
        %3370 = vmatpush1.bf16.msra.mxu0 %v3343
        %3371 = vmatprep.subr.bf16.mxu0 0
        %3372 = vmatpush1.bf16.msra.mxu0 %v3345
        %3373 = vmatprep.subr.bf16.mxu0 0
        %3374 = vmatpush1.bf16.msra.mxu0 %v3347
        %3375 = vmatprep.subr.bf16.mxu0 0
        %3376 = vmatpush1.bf16.msra.mxu0 %v3349
        %3377 = vmatprep.subr.bf16.mxu0 0
        %3378 = vmatpush1.bf16.msra.mxu0 %v3351
        %3379 = vmatprep.subr.bf16.mxu0 0
        %3380 = vmatpush1.bf16.msra.mxu0 %v3353
        %3381 = vmatprep.subr.bf16.mxu0 0
        %3382 = vmatpush1.bf16.msra.mxu0 %v3355
        %3383 = vmatprep.subr.bf16.mxu0 0
        %3384 = vmatpush1.bf16.msra.mxu0 0
        %3385 = vmatprep.subr.bf16.mxu0 0
        %3386 = vmatpush1.bf16.msra.mxu0 0
        %3387 = vmatprep.subr.bf16.mxu0 0
        %3388 = vmatpush1.bf16.msra.mxu0 0
        %3389 = vmatprep.subr.bf16.mxu0 0
        %3390 = vmatpush1.bf16.msra.mxu0 0
        %3391 = vmatprep.subr.bf16.mxu0 0
        %3392 = vmatpush1.bf16.msra.mxu0 0
        %3393 = vmatprep.subr.bf16.mxu0 0
        %3394 = vmatpush1.bf16.msra.mxu0 0
        %3395 = vmatprep.subr.bf16.mxu0 0
        %3396 = vmatpush1.bf16.msra.mxu0 0
        %3397 = vmatprep.subr.bf16.mxu0 0
        %3398 = vmatpush1.bf16.msra.mxu0 0
        %3399 = vmatprep.mubr.bf16.mxu0 0
        %3400 = vmatmul.mubr.bf16.gmra.mrb[0].mxu0 %v3334
        %v3401 = vpop.f32.mrb[0].mxu0
        %v3402 = vadd.f32 %v3365, %v3401
        %v3403 = vpop.f32.mrb[0].mxu0
        %v3404 = vpop.f32.mrb[0].mxu0
        %v3405 = vpop.f32.mrb[0].mxu0
        %3406 = vdwg.mxu0
        %v3407 = vmax.f32 %v3402, 0.0
        %v3408 = vld [vmem:[%s2 + $0xc] sm:$0xf]
        %v3409 = vld [vmem:[%s2 + $0x1c] sm:$0xf]
        %v3410 = vld [vmem:[%s2 + $0x2c] sm:$0xf]
        %v3411 = vld [vmem:[%s2 + $0x3c] sm:$0xf]
        %v3412 = vpack.c.bf16 %v3407, %v3407
        %v3413 = vld [vmem:[%s1 + $0x6] sm:$0x3]
        %v3415 = vlaneseq
        %v3416 = vshrl.u32 %v3415, 7
        %v3417 = vsub.s32 0, %v3416
        %v3418 = vrot.slane %v3413, %v3417
        %v3419 = vlaneseq
        %v3420 = vshrl.u32 %v3419, 7
        %v3421 = vsub.s32 1, %v3420
        %v3422 = vrot.slane %v3413, %v3421
        %v3427 = vunpack.c.l.b16 %v3408
        %v3428 = vunpack.c.l.b16 %v3409
        %v3429 = vunpack.c.l.b16 %v3410
        %v3430 = vunpack.c.l.b16 %v3411
        %v3431 = vpack.c.b16 %v3428, %v3427
        %v3432 = vpack.c.b16 %v3430, %v3429
        %3435 = vrot.lane.b32.xlu0 %v3418, 32
        %v3436 = vpop.permute.xlu0 %3435
        %3437 = vrot.lane.b32.xlu0 %v3422, 32
        %v3438 = vpop.permute.xlu0 %3437
        %v3439 = vsel %vm235, %v3436, %v3438
        %v3442 = vsel %vm235, %v3412, 0
        %3444 = vmatprep.subr.bf16.mxu0 0
        %3445 = vmatpush1.bf16.msra.mxu0 %v3431
        %3446 = vmatprep.subr.bf16.mxu0 0
        %3447 = vmatpush1.bf16.msra.mxu0 %v3432
        %3448 = vmatprep.subr.bf16.mxu0 0
        %3449 = vmatpush1.bf16.msra.mxu0 0
        %3450 = vmatprep.subr.bf16.mxu0 0
        %3451 = vmatpush1.bf16.msra.mxu0 0
        %3452 = vmatprep.subr.bf16.mxu0 0
        %3453 = vmatpush1.bf16.msra.mxu0 0
        %3454 = vmatprep.subr.bf16.mxu0 0
        %3455 = vmatpush1.bf16.msra.mxu0 0
        %3456 = vmatprep.subr.bf16.mxu0 0
        %3457 = vmatpush1.bf16.msra.mxu0 0
        %3458 = vmatprep.subr.bf16.mxu0 0
        %3459 = vmatpush1.bf16.msra.mxu0 0
        %3460 = vmatprep.subr.bf16.mxu0 0
        %3461 = vmatpush1.bf16.msra.mxu0 0
        %3462 = vmatprep.subr.bf16.mxu0 0
        %3463 = vmatpush1.bf16.msra.mxu0 0
        %3464 = vmatprep.subr.bf16.mxu0 0
        %3465 = vmatpush1.bf16.msra.mxu0 0
        %3466 = vmatprep.subr.bf16.mxu0 0
        %3467 = vmatpush1.bf16.msra.mxu0 0
        %3468 = vmatprep.subr.bf16.mxu0 0
        %3469 = vmatpush1.bf16.msra.mxu0 0
        %3470 = vmatprep.subr.bf16.mxu0 0
        %3471 = vmatpush1.bf16.msra.mxu0 0
        %3472 = vmatprep.subr.bf16.mxu0 0
        %3473 = vmatpush1.bf16.msra.mxu0 0
        %3474 = vmatprep.subr.bf16.mxu0 0
        %3475 = vmatpush1.bf16.msra.mxu0 0
        %3476 = vmatprep.mubr.bf16.mxu0 0
        %3477 = vmatmul.mubr.bf16.gmra.mrb[0].mxu0 %v3442
        %v3478 = vpop.f32.mrb[0].mxu0
        %v3479 = vadd.f32 %v3439, %v3478
        %v3480 = vpop.f32.mrb[0].mxu0
        %v3481 = vpop.f32.mrb[0].mxu0
        %v3482 = vpop.f32.mrb[0].mxu0
        %3483 = vdwg.mxu0
        %3484 = vst [vmem:[%s218] sm:$0xff] %v3479
        %s3485 = sand.u32 %s137, 1
        %s3486 = scalar_lea.sflag [#allocation3], %s3485
        %s3487 = sand.u32 %s137, 1
        %s3488 = smul.addr %s3487, 8
        %s3489 = scalar_lea.vmem [#allocation2], %s3488
        // Predicated region
        $region41: #{tpu_custom_call.1} parent=39 // pred_check
          %p3490 = pneg %p147
        $region42: #{tpu_custom_call.1} parent=39 // pred_check_branch
          %3492 = sbr.rel (%p3490) target = $region44
        $region43: #{tpu_custom_call.1} parent=39 // pred_region
          %s3494 = ssub.s32 128, 128
          %3495 = vsyncadd %s3486, %s3494
          %s3496 = smul.addr %s19, 128
          %s3497 = scalar_lea.hbm %s5, %s3496
          %s3499 = sshll.u32 %s3489, 4
          %s3500 = int_to_ptr.vmem [resolvable:$true] %s3499
          %3502 = dma.vmem_to_hbm [thread:$0]  %s3500, 128, %s3497, %s3486
        $region44: #{tpu_custom_call.1} parent=39 // pred_fallthru
          _
      $region40: #{tpu_custom_call.1} parent=5 // pred_fallthru
        _
      %p3503 = scmp.le.s32.totalorder 2, %s14
      // Predicated region
      $region45: #{tpu_custom_call.1} parent=5 // pred_check
        %p3504 = pneg %p3503
      $region46: #{tpu_custom_call.1} parent=5 // pred_check_branch
        %3506 = sbr.rel (%p3504) target = $region48
      $region47: #{tpu_custom_call.1} parent=5 // pred_region
        %s3507 = ssub.s32 %s14, 2
        // Predicated region
        $region49: #{tpu_custom_call.1} parent=47 // pred_check
          %p3508 = pneg %p153
        $region50: #{tpu_custom_call.1} parent=47 // pred_check_branch
          %3510 = sbr.rel (%p3508) target = $region52
        $region51: #{tpu_custom_call.1} parent=47 // pred_region
          %s3511 = sand.u32 %s138, 1
          %s3512 = scalar_lea.sflag [#allocation3], %s3511
          %s3513 = sand.u32 %s138, 1
          %s3514 = smul.addr %s3513, 8
          %s3515 = scalar_lea.vmem [#allocation2], %s3514
          %3516 = dma.done %s3512, 128
        $region52: #{tpu_custom_call.1} parent=47 // pred_fallthru
          _
      $region48: #{tpu_custom_call.1} parent=5 // pred_fallthru
        _
    $region6: #{tpu_custom_call.1} parent=1 // loop_footer
      %s18 = sadd.s32 1, %s14
    $region7: #{tpu_custom_call.1} parent=1 // loop_footer_branch
      %13 = sbr.rel target = $region3
    $region8: #{tpu_custom_call.1} parent=1 // loop_exit
      _
    %3517 = vsyncpa [#allocation3], 1
    %s3518 = scalar_lea.sflag [#allocation3], 1
    %3519 = vsyncpa %s3518, 1

</llo_original>
